<compile_context>
chip_gen: v7x
topology: tpu7x:2x2x1
jax: 0.10.0
libtpu: 0.0.40
codegen_flags: <defaults>
</compile_context>

<pallas_src>
import numpy as np
import jax
import jax.numpy as jnp
from jax.experimental import pallas as pl
from jax.experimental.pallas import tpu as pltpu

LEAKY_SLOPE = 0.01
BN_EPS = 1e-5
KH = KW = 4
N_TAPS = KH * KW


# ---------------------------------------------------------------------------
# Fused whole-network kernel (single VMEM block, no grid)
# ---------------------------------------------------------------------------
def _lrelu_bn(y, gamma, beta):
    """LeakyReLU(0.01) -> training-mode BatchNorm (biased batch variance)."""
    y = jnp.where(y >= 0, y, LEAKY_SLOPE * y)
    inv_n = 1.0 / y.shape[0]
    mean = jnp.sum(y, axis=0, keepdims=True) * inv_n
    ex2 = jnp.sum(y * y, axis=0, keepdims=True) * inv_n
    var = jnp.maximum(ex2 - mean * mean, 0.0)
    scale = jax.lax.rsqrt(var + BN_EPS) * gamma
    return (y - mean) * scale + beta


def cnn_arc_kernel(cols0_ref, w0_ref, b0_ref, gamma0_ref, beta0_ref,
                   gt1_ref, w1_ref, b1_ref, gamma1_ref, beta1_ref,
                   gt2_ref, w2_ref, b2_ref, gamma2_ref, beta2_ref,
                   wfc_ref, bfc_ref, gamma3_ref, beta3_ref,
                   o_ref):
    batch = o_ref.shape[0]

    def conv_layer(y_prev, gt_ref, w_ref, b_ref, gamma_ref, beta_ref):
        # y_prev : (B*h*w, Cin)  f32, rows ordered (b, h, w)
        # gt_ref : (16*oh*ow, h*w)  batch-independent 0/1 tap gather (bf16)
        # w_ref  : (16*Cin, Cout)   tap-major conv weights (bf16)
        p_in = y_prev.shape[0] // batch
        p_out = gt_ref.shape[0] // N_TAPS
        gt = gt_ref[...]
        w = w_ref[...]
        outs = []
        for b in range(batch):
            yb = y_prev[b * p_in:(b + 1) * p_in, :].astype(jnp.bfloat16)
            # One matmul gathers all 16 taps (exact 0/1 row selection).
            pg = jnp.dot(gt, yb, preferred_element_type=jnp.float32)   # (16*p_out, Cin)
            # Lane-concat the taps -> im2col patches -> one big-K weight matmul.
            patches = jnp.concatenate(
                [pg[t * p_out:(t + 1) * p_out, :] for t in range(N_TAPS)],
                axis=1).astype(jnp.bfloat16)                           # (p_out, 16*Cin)
            outs.append(jnp.dot(patches, w,
                                preferred_element_type=jnp.float32))   # (p_out, Cout)
        y = jnp.concatenate(outs, axis=0)                              # (B*p_out, Cout)
        return _lrelu_bn(y + b_ref[...], gamma_ref[...], beta_ref[...])

    # ---- layer 0: im2col'd input (from the jitted wrapper) -> one matmul ----
    y0 = jnp.dot(cols0_ref[...], w0_ref[...],
                 preferred_element_type=jnp.float32) + b0_ref[...]     # (B*s1*s1, 32)
    y0 = _lrelu_bn(y0, gamma0_ref[...], beta0_ref[...])

    # ---- layers 1 and 2: in-kernel stride-2 convs -----------------------
    y1 = conv_layer(y0, gt1_ref, w1_ref, b1_ref, gamma1_ref, beta1_ref)  # (B*s2*s2, 64)
    y2 = conv_layer(y1, gt2_ref, w2_ref, b2_ref, gamma2_ref, beta2_ref)  # (B*s3*s3, 128)

    # ---- fc1: NCHW flatten absorbed into row-permuted wfc; single K=512 dot
    p2 = y2.shape[0] // batch
    rows = []
    for b in range(batch):
        y2b = y2[b * p2:(b + 1) * p2, :]                                 # (p2, 128)
        rows.append(jnp.concatenate([y2b[p:p + 1, :] for p in range(p2)],
                                    axis=1))                             # (1, p2*128)
    flat = jnp.concatenate(rows, axis=0).astype(jnp.bfloat16)            # (B, p2*128)
    out = jnp.dot(flat, wfc_ref[...],
                  preferred_element_type=jnp.float32) + bfc_ref[...]     # (B, 768)
    o_ref[...] = _lrelu_bn(out, gamma3_ref[...], beta3_ref[...])


# ---------------------------------------------------------------------------
# Glue (under jax.jit): layer-0 im2col of the raw NCHW input
# ---------------------------------------------------------------------------
def im2col_nchw(x, kh=KH, kw=KW, stride=2, pad=1):
    b, c, h, w = x.shape
    xp = jnp.pad(x, ((0, 0), (0, 0), (pad, pad), (pad, pad)))
    oh = (h + 2 * pad - kh) // stride + 1
    ow = (w + 2 * pad - kw) // stride + 1
    cols = [xp[:, :, ki:ki + stride * oh:stride, kj:kj + stride * ow:stride]
            for ki in range(kh) for kj in range(kw)]
    p = jnp.stack(cols, axis=0)              # (16, B, C, OH, OW)
    p = p.transpose(1, 3, 4, 2, 0)           # (B, OH, OW, C, 16)
    # feature index = c*16 + ki*4 + kj  (matches torch weight.view(Cout, -1))
    return p.reshape(b * oh * ow, c * kh * kw)


KERNEL_PARAM_ORDER = ("w0", "b0", "gamma0", "beta0",
                      "gt1", "w1", "b1", "gamma1", "beta1",
                      "gt2", "w2", "b2", "gamma2", "beta2",
                      "wfc", "bfc", "gamma3", "beta3")


def _flops_estimate(batch, image_size):
    s1, s2, s3 = image_size // 2, image_size // 4, image_size // 8
    p0, p1, p2 = s1 * s1, s2 * s2, s3 * s3
    macs = (p0 * 16 * 32                                       # conv0
            + N_TAPS * p1 * p0 * 32 + p1 * (N_TAPS * 32) * 64  # l1 gather + conv
            + N_TAPS * p2 * p1 * 64 + p2 * (N_TAPS * 64) * 128  # l2 gather + conv
            + (p2 * 128) * 768)                                 # fc1
    return 2 * batch * macs


@jax.jit
def cnn_arc_forward(images, params):
    batch = images.shape[0]
    image_size = images.shape[-1]
    cols0 = im2col_nchw(images.astype(jnp.float32)).astype(jnp.bfloat16)
    args = (cols0,) + tuple(params[k] for k in KERNEL_PARAM_ORDER)
    n_out_features = params["wfc"].shape[1]
    bytes_accessed = (sum(int(np.prod(a.shape)) * a.dtype.itemsize for a in args)
                      + batch * n_out_features * 4)
    vmem = pl.BlockSpec(memory_space=pltpu.MemorySpace.VMEM)
    return pl.pallas_call(
        cnn_arc_kernel,
        out_shape=jax.ShapeDtypeStruct((batch, n_out_features), jnp.float32),
        in_specs=[vmem] * len(args),
        out_specs=vmem,
        compiler_params=pltpu.CompilerParams(vmem_limit_bytes=32 * 1024 * 1024),
        cost_estimate=pl.CostEstimate(
            flops=_flops_estimate(batch, image_size),
            transcendentals=0,
            bytes_accessed=bytes_accessed),
    )(*args)


# ---------------------------------------------------------------------------
# Init: torch-style raw params + precomputed kernel layouts / gather matrices
# ---------------------------------------------------------------------------
def _make_tap_gather(h, w):
    """Batch-independent 0/1 gather: row (t*oh*ow + r*ow + c) selects the
    stride-2 / pad-1 source pixel of tap t for output (r, c); out-of-range
    (padding) taps are zero rows."""
    oh, ow = h // 2, w // 2
    g = np.zeros((N_TAPS * oh * ow, h * w), np.float32)
    for ki in range(KH):
        for kj in range(KW):
            t = ki * KW + kj
            for r in range(oh):
                for c in range(ow):
                    sr, sc = 2 * r + ki - 1, 2 * c + kj - 1
                    if 0 <= sr < h and 0 <= sc < w:
                        g[t * oh * ow + r * ow + c, sr * w + sc] = 1.0
    return jnp.asarray(g, dtype=jnp.bfloat16)


def _stack_conv_taps(w):
    # w: (Cout, Cin, 4, 4) -> (16*Cin, Cout), rows ordered (tap, ci)
    cout, cin = w.shape[0], w.shape[1]
    return jnp.transpose(w, (2, 3, 1, 0)).reshape(
        N_TAPS * cin, cout).astype(jnp.bfloat16)


def _stack_fc_blocks(fc_w, n_spatial):
    # fc_w: (768, in) torch layout, in-features in NCHW flatten order (c, p).
    # -> (n_spatial*128, 768); row p*128 + c <-> torch column c*n_spatial + p.
    wt = fc_w.T
    c = wt.shape[0] // n_spatial
    return wt.reshape(c, n_spatial, wt.shape[1]).transpose(1, 0, 2).reshape(
        n_spatial * c, wt.shape[1]).astype(jnp.bfloat16)


def init_params(image_size, key):
    ks = jax.random.split(key, 8)

    def kaiming_fan_out(k, shape):
        fan_out = shape[0] * shape[2] * shape[3]
        return ((2.0 / fan_out) ** 0.5) * jax.random.normal(k, shape, jnp.float32)

    s1, s2, s3 = image_size // 2, image_size // 4, image_size // 8
    n_spatial = s3 * s3
    in_features = int((image_size / 8) ** 2 * 128)

    raw = dict(
        conv0_w=kaiming_fan_out(ks[0], (32, 1, 4, 4)),   conv0_b=jnp.zeros((32,), jnp.float32),
        bn0_g=jnp.ones((32,), jnp.float32),              bn0_b=jnp.zeros((32,), jnp.float32),
        conv1_w=kaiming_fan_out(ks[1], (64, 32, 4, 4)),  conv1_b=jnp.zeros((64,), jnp.float32),
        bn1_g=jnp.ones((64,), jnp.float32),              bn1_b=jnp.zeros((64,), jnp.float32),
        conv2_w=kaiming_fan_out(ks[2], (128, 64, 4, 4)), conv2_b=jnp.zeros((128,), jnp.float32),
        bn2_g=jnp.ones((128,), jnp.float32),             bn2_b=jnp.zeros((128,), jnp.float32),
        fc1_w=0.01 * jax.random.normal(ks[3], (768, in_features), jnp.float32),
        fc1_b=jnp.zeros((768,), jnp.float32),
        bn3_g=1.0 + jax.random.normal(ks[4], (768,), jnp.float32),  # nn.init.normal_(w, 1)
        bn3_b=jnp.zeros((768,), jnp.float32),
    )

    row = lambda v: v.reshape(1, -1).astype(jnp.float32)
    kparams = dict(
        w0=raw["conv0_w"].reshape(32, -1).T.astype(jnp.bfloat16),
        b0=row(raw["conv0_b"]), gamma0=row(raw["bn0_g"]), beta0=row(raw["bn0_b"]),
        gt1=_make_tap_gather(s1, s1),
        w1=_stack_conv_taps(raw["conv1_w"]),
        b1=row(raw["conv1_b"]), gamma1=row(raw["bn1_g"]), beta1=row(raw["bn1_b"]),
        gt2=_make_tap_gather(s2, s2),
        w2=_stack_conv_taps(raw["conv2_w"]),
        b2=row(raw["conv2_b"]), gamma2=row(raw["bn2_g"]), beta2=row(raw["bn2_b"]),
        wfc=_stack_fc_blocks(raw["fc1_w"], n_spatial),
        bfc=row(raw["fc1_b"]), gamma3=row(raw["bn3_g"]), beta3=row(raw["bn3_b"]),
    )
    return kparams, raw


# ---------------------------------------------------------------------------
# Pure-JAX reference with the SAME bf16 MXU operands / f32 accumulation
# ---------------------------------------------------------------------------
def reference_forward(images, raw):
    def conv_block(x, w, b, g, be):
        y = jax.lax.conv_general_dilated(
            x.astype(jnp.bfloat16), w.astype(jnp.bfloat16),
            window_strides=(2, 2), padding=((1, 1), (1, 1)),
            dimension_numbers=("NCHW", "OIHW", "NCHW"),
            preferred_element_type=jnp.float32)
        y = y + b.reshape(1, -1, 1, 1)
        y = jnp.where(y >= 0, y, LEAKY_SLOPE * y)
        mean = jnp.mean(y, axis=(0, 2, 3), keepdims=True)
        var = jnp.mean((y - mean) ** 2, axis=(0, 2, 3), keepdims=True)
        return (y - mean) * jax.lax.rsqrt(var + BN_EPS) * g.reshape(1, -1, 1, 1) \
            + be.reshape(1, -1, 1, 1)

    x = conv_block(images, raw["conv0_w"], raw["conv0_b"], raw["bn0_g"], raw["bn0_b"])
    x = conv_block(x, raw["conv1_w"], raw["conv1_b"], raw["bn1_g"], raw["bn1_b"])
    x = conv_block(x, raw["conv2_w"], raw["conv2_b"], raw["bn2_g"], raw["bn2_b"])
    flat = x.reshape(x.shape[0], -1)
    y = jnp.dot(flat.astype(jnp.bfloat16), raw["fc1_w"].T.astype(jnp.bfloat16),
                preferred_element_type=jnp.float32) + raw["fc1_b"]
    y = jnp.where(y >= 0, y, LEAKY_SLOPE * y)
    mean = jnp.mean(y, axis=0, keepdims=True)
    var = jnp.mean((y - mean) ** 2, axis=0, keepdims=True)
    return (y - mean) * jax.lax.rsqrt(var + BN_EPS) * raw["bn3_g"] + raw["bn3_b"]


if __name__ == "__main__":
    image_size = 16
    batch = 2
    key = jax.random.PRNGKey(0)
    k_img, k_par = jax.random.split(key)

    images = jax.random.normal(k_img, (batch, 1, image_size, image_size), jnp.float32)
    kparams, raw = init_params(image_size, k_par)

    out = jax.block_until_ready(cnn_arc_forward(images, kparams))
    assert out.shape == (batch, 768), out.shape
    assert bool(jnp.all(jnp.isfinite(out)))

    # TODO(synk): BatchNorm running-stat updates (training-mode side effect)
    # are not modeled; the forward output does not depend on them.
    ref = reference_forward(images, raw)
    err = float(jnp.max(jnp.abs(out - ref)))
    assert err < 2e-2, err
    print("KERNEL_OK")
</pallas_src>

<mosaic_0001>
module attributes {stable_mosaic.version = 11 : i64} {
  func.func @cnn_arc_kernel(%arg0: memref<128x16xbf16, #tpu.memory_space<vmem>>, %arg1: memref<16x32xbf16, #tpu.memory_space<vmem>>, %arg2: memref<1x32xf32, #tpu.memory_space<vmem>>, %arg3: memref<1x32xf32, #tpu.memory_space<vmem>>, %arg4: memref<1x32xf32, #tpu.memory_space<vmem>>, %arg5: memref<256x64xbf16, #tpu.memory_space<vmem>>, %arg6: memref<512x64xbf16, #tpu.memory_space<vmem>>, %arg7: memref<1x64xf32, #tpu.memory_space<vmem>>, %arg8: memref<1x64xf32, #tpu.memory_space<vmem>>, %arg9: memref<1x64xf32, #tpu.memory_space<vmem>>, %arg10: memref<64x16xbf16, #tpu.memory_space<vmem>>, %arg11: memref<1024x128xbf16, #tpu.memory_space<vmem>>, %arg12: memref<1x128xf32, #tpu.memory_space<vmem>>, %arg13: memref<1x128xf32, #tpu.memory_space<vmem>>, %arg14: memref<1x128xf32, #tpu.memory_space<vmem>>, %arg15: memref<512x768xbf16, #tpu.memory_space<vmem>>, %arg16: memref<1x768xf32, #tpu.memory_space<vmem>>, %arg17: memref<1x768xf32, #tpu.memory_space<vmem>>, %arg18: memref<1x768xf32, #tpu.memory_space<vmem>>, %arg19: memref<2x768xf32, #tpu.memory_space<vmem>>) attributes {dimension_semantics = [], scalar_prefetch = 0 : i64, scratch_operands = 0 : i64, tpu.core_type = #tpu.core_type<tc>} {
    %c0 = arith.constant 0 : index
    %c0_0 = arith.constant 0 : index
    %0 = vector.load %arg0[%c0, %c0_0] : memref<128x16xbf16, #tpu.memory_space<vmem>>, vector<128x16xbf16>
    %c0_1 = arith.constant 0 : index
    %c0_2 = arith.constant 0 : index
    %1 = vector.load %arg1[%c0_1, %c0_2] : memref<16x32xbf16, #tpu.memory_space<vmem>>, vector<16x32xbf16>
    %cst = arith.constant dense<0.000000e+00> : vector<128x32xf32>
    %2 = tpu.matmul %0, %1, %cst {dimension_numbers = #tpu.dot_dimension_numbers<[1], [0], [0], [1], [0, 0, 1, 1], [], []>} : vector<128x16xbf16>, vector<16x32xbf16>, vector<128x32xf32> -> vector<128x32xf32>
    %c0_3 = arith.constant 0 : index
    %c0_4 = arith.constant 0 : index
    %3 = vector.load %arg2[%c0_3, %c0_4] : memref<1x32xf32, #tpu.memory_space<vmem>>, vector<1x32xf32>
    %4 = vector.broadcast %3 : vector<1x32xf32> to vector<128x32xf32>
    %5 = arith.addf %2, %4 : vector<128x32xf32>
    %c0_5 = arith.constant 0 : index
    %c0_6 = arith.constant 0 : index
    %6 = vector.load %arg3[%c0_5, %c0_6] : memref<1x32xf32, #tpu.memory_space<vmem>>, vector<1x32xf32>
    %c0_7 = arith.constant 0 : index
    %c0_8 = arith.constant 0 : index
    %7 = vector.load %arg4[%c0_7, %c0_8] : memref<1x32xf32, #tpu.memory_space<vmem>>, vector<1x32xf32>
    %cst_9 = arith.constant 0.000000e+00 : f32
    %8 = vector.broadcast %cst_9 : f32 to vector<128x32xf32>
    %9 = arith.cmpf oge, %5, %8 : vector<128x32xf32>
    %cst_10 = arith.constant 0.00999999977 : f32
    %10 = vector.broadcast %cst_10 : f32 to vector<128x32xf32>
    %11 = arith.mulf %10, %5 : vector<128x32xf32>
    %12 = arith.select %9, %5, %11 : vector<128x32xi1>, vector<128x32xf32>
    %cst_11 = arith.constant dense<0.000000e+00> : vector<32xf32>
    %13 = vector.multi_reduction <add>, %12, %cst_11 [0] : vector<128x32xf32> to vector<32xf32>
    %14 = vector.shape_cast %13 : vector<32xf32> to vector<1x32xf32>
    %cst_12 = arith.constant 7.812500e-03 : f32
    %15 = vector.broadcast %cst_12 : f32 to vector<1x32xf32>
    %16 = arith.mulf %14, %15 : vector<1x32xf32>
    %17 = arith.mulf %12, %12 : vector<128x32xf32>
    %cst_13 = arith.constant dense<0.000000e+00> : vector<32xf32>
    %18 = vector.multi_reduction <add>, %17, %cst_13 [0] : vector<128x32xf32> to vector<32xf32>
    %19 = vector.shape_cast %18 : vector<32xf32> to vector<1x32xf32>
    %cst_14 = arith.constant 7.812500e-03 : f32
    %20 = vector.broadcast %cst_14 : f32 to vector<1x32xf32>
    %21 = arith.mulf %19, %20 : vector<1x32xf32>
    %22 = arith.mulf %16, %16 : vector<1x32xf32>
    %23 = arith.subf %21, %22 : vector<1x32xf32>
    %cst_15 = arith.constant 0.000000e+00 : f32
    %24 = vector.broadcast %cst_15 : f32 to vector<1x32xf32>
    %25 = arith.maximumf %23, %24 : vector<1x32xf32>
    %cst_16 = arith.constant 9.99999974E-6 : f32
    %26 = vector.broadcast %cst_16 : f32 to vector<1x32xf32>
    %27 = arith.addf %25, %26 : vector<1x32xf32>
    %28 = math.rsqrt %27 : vector<1x32xf32>
    %29 = arith.mulf %28, %6 : vector<1x32xf32>
    %30 = vector.broadcast %16 : vector<1x32xf32> to vector<128x32xf32>
    %31 = arith.subf %12, %30 : vector<128x32xf32>
    %32 = vector.broadcast %29 : vector<1x32xf32> to vector<128x32xf32>
    %33 = arith.mulf %31, %32 : vector<128x32xf32>
    %34 = vector.broadcast %7 : vector<1x32xf32> to vector<128x32xf32>
    %35 = arith.addf %33, %34 : vector<128x32xf32>
    %c0_17 = arith.constant 0 : index
    %c0_18 = arith.constant 0 : index
    %36 = vector.load %arg5[%c0_17, %c0_18] : memref<256x64xbf16, #tpu.memory_space<vmem>>, vector<256x64xbf16>
    %c0_19 = arith.constant 0 : index
    %c0_20 = arith.constant 0 : index
    %37 = vector.load %arg6[%c0_19, %c0_20] : memref<512x64xbf16, #tpu.memory_space<vmem>>, vector<512x64xbf16>
    %38 = vector.extract_strided_slice %35 {offsets = [0, 0], sizes = [64, 32], strides = [1, 1]} : vector<128x32xf32> to vector<64x32xf32>
    %39 = arith.truncf %38 : vector<64x32xf32> to vector<64x32xbf16>
    %cst_21 = arith.constant dense<0.000000e+00> : vector<256x32xf32>
    %40 = tpu.matmul %36, %39, %cst_21 {dimension_numbers = #tpu.dot_dimension_numbers<[1], [0], [0], [1], [0, 0, 1, 1], [], []>} : vector<256x64xbf16>, vector<64x32xbf16>, vector<256x32xf32> -> vector<256x32xf32>
    %41 = vector.extract_strided_slice %40 {offsets = [0, 0], sizes = [16, 32], strides = [1, 1]} : vector<256x32xf32> to vector<16x32xf32>
    %42 = vector.extract_strided_slice %40 {offsets = [16, 0], sizes = [16, 32], strides = [1, 1]} : vector<256x32xf32> to vector<16x32xf32>
    %43 = vector.extract_strided_slice %40 {offsets = [32, 0], sizes = [16, 32], strides = [1, 1]} : vector<256x32xf32> to vector<16x32xf32>
    %44 = vector.extract_strided_slice %40 {offsets = [48, 0], sizes = [16, 32], strides = [1, 1]} : vector<256x32xf32> to vector<16x32xf32>
    %45 = vector.extract_strided_slice %40 {offsets = [64, 0], sizes = [16, 32], strides = [1, 1]} : vector<256x32xf32> to vector<16x32xf32>
    %46 = vector.extract_strided_slice %40 {offsets = [80, 0], sizes = [16, 32], strides = [1, 1]} : vector<256x32xf32> to vector<16x32xf32>
    %47 = vector.extract_strided_slice %40 {offsets = [96, 0], sizes = [16, 32], strides = [1, 1]} : vector<256x32xf32> to vector<16x32xf32>
    %48 = vector.extract_strided_slice %40 {offsets = [112, 0], sizes = [16, 32], strides = [1, 1]} : vector<256x32xf32> to vector<16x32xf32>
    %49 = vector.extract_strided_slice %40 {offsets = [128, 0], sizes = [16, 32], strides = [1, 1]} : vector<256x32xf32> to vector<16x32xf32>
    %50 = vector.extract_strided_slice %40 {offsets = [144, 0], sizes = [16, 32], strides = [1, 1]} : vector<256x32xf32> to vector<16x32xf32>
    %51 = vector.extract_strided_slice %40 {offsets = [160, 0], sizes = [16, 32], strides = [1, 1]} : vector<256x32xf32> to vector<16x32xf32>
    %52 = vector.extract_strided_slice %40 {offsets = [176, 0], sizes = [16, 32], strides = [1, 1]} : vector<256x32xf32> to vector<16x32xf32>
    %53 = vector.extract_strided_slice %40 {offsets = [192, 0], sizes = [16, 32], strides = [1, 1]} : vector<256x32xf32> to vector<16x32xf32>
    %54 = vector.extract_strided_slice %40 {offsets = [208, 0], sizes = [16, 32], strides = [1, 1]} : vector<256x32xf32> to vector<16x32xf32>
    %55 = vector.extract_strided_slice %40 {offsets = [224, 0], sizes = [16, 32], strides = [1, 1]} : vector<256x32xf32> to vector<16x32xf32>
    %56 = vector.extract_strided_slice %40 {offsets = [240, 0], sizes = [16, 32], strides = [1, 1]} : vector<256x32xf32> to vector<16x32xf32>
    %57 = tpu.concatenate %41, %42, %43, %44, %45, %46, %47, %48, %49, %50, %51, %52, %53, %54, %55, %56 in 1 : vector<16x32xf32>, vector<16x32xf32>, vector<16x32xf32>, vector<16x32xf32>, vector<16x32xf32>, vector<16x32xf32>, vector<16x32xf32>, vector<16x32xf32>, vector<16x32xf32>, vector<16x32xf32>, vector<16x32xf32>, vector<16x32xf32>, vector<16x32xf32>, vector<16x32xf32>, vector<16x32xf32>, vector<16x32xf32> -> vector<16x512xf32>
    %58 = arith.truncf %57 : vector<16x512xf32> to vector<16x512xbf16>
    %cst_22 = arith.constant dense<0.000000e+00> : vector<16x64xf32>
    %59 = tpu.matmul %58, %37, %cst_22 {dimension_numbers = #tpu.dot_dimension_numbers<[1], [0], [0], [1], [0, 0, 1, 1], [], []>} : vector<16x512xbf16>, vector<512x64xbf16>, vector<16x64xf32> -> vector<16x64xf32>
    %60 = vector.extract_strided_slice %35 {offsets = [64, 0], sizes = [64, 32], strides = [1, 1]} : vector<128x32xf32> to vector<64x32xf32>
    %61 = arith.truncf %60 : vector<64x32xf32> to vector<64x32xbf16>
    %cst_23 = arith.constant dense<0.000000e+00> : vector<256x32xf32>
    %62 = tpu.matmul %36, %61, %cst_23 {dimension_numbers = #tpu.dot_dimension_numbers<[1], [0], [0], [1], [0, 0, 1, 1], [], []>} : vector<256x64xbf16>, vector<64x32xbf16>, vector<256x32xf32> -> vector<256x32xf32>
    %63 = vector.extract_strided_slice %62 {offsets = [0, 0], sizes = [16, 32], strides = [1, 1]} : vector<256x32xf32> to vector<16x32xf32>
    %64 = vector.extract_strided_slice %62 {offsets = [16, 0], sizes = [16, 32], strides = [1, 1]} : vector<256x32xf32> to vector<16x32xf32>
    %65 = vector.extract_strided_slice %62 {offsets = [32, 0], sizes = [16, 32], strides = [1, 1]} : vector<256x32xf32> to vector<16x32xf32>
    %66 = vector.extract_strided_slice %62 {offsets = [48, 0], sizes = [16, 32], strides = [1, 1]} : vector<256x32xf32> to vector<16x32xf32>
    %67 = vector.extract_strided_slice %62 {offsets = [64, 0], sizes = [16, 32], strides = [1, 1]} : vector<256x32xf32> to vector<16x32xf32>
    %68 = vector.extract_strided_slice %62 {offsets = [80, 0], sizes = [16, 32], strides = [1, 1]} : vector<256x32xf32> to vector<16x32xf32>
    %69 = vector.extract_strided_slice %62 {offsets = [96, 0], sizes = [16, 32], strides = [1, 1]} : vector<256x32xf32> to vector<16x32xf32>
    %70 = vector.extract_strided_slice %62 {offsets = [112, 0], sizes = [16, 32], strides = [1, 1]} : vector<256x32xf32> to vector<16x32xf32>
    %71 = vector.extract_strided_slice %62 {offsets = [128, 0], sizes = [16, 32], strides = [1, 1]} : vector<256x32xf32> to vector<16x32xf32>
    %72 = vector.extract_strided_slice %62 {offsets = [144, 0], sizes = [16, 32], strides = [1, 1]} : vector<256x32xf32> to vector<16x32xf32>
    %73 = vector.extract_strided_slice %62 {offsets = [160, 0], sizes = [16, 32], strides = [1, 1]} : vector<256x32xf32> to vector<16x32xf32>
    %74 = vector.extract_strided_slice %62 {offsets = [176, 0], sizes = [16, 32], strides = [1, 1]} : vector<256x32xf32> to vector<16x32xf32>
    %75 = vector.extract_strided_slice %62 {offsets = [192, 0], sizes = [16, 32], strides = [1, 1]} : vector<256x32xf32> to vector<16x32xf32>
    %76 = vector.extract_strided_slice %62 {offsets = [208, 0], sizes = [16, 32], strides = [1, 1]} : vector<256x32xf32> to vector<16x32xf32>
    %77 = vector.extract_strided_slice %62 {offsets = [224, 0], sizes = [16, 32], strides = [1, 1]} : vector<256x32xf32> to vector<16x32xf32>
    %78 = vector.extract_strided_slice %62 {offsets = [240, 0], sizes = [16, 32], strides = [1, 1]} : vector<256x32xf32> to vector<16x32xf32>
    %79 = tpu.concatenate %63, %64, %65, %66, %67, %68, %69, %70, %71, %72, %73, %74, %75, %76, %77, %78 in 1 : vector<16x32xf32>, vector<16x32xf32>, vector<16x32xf32>, vector<16x32xf32>, vector<16x32xf32>, vector<16x32xf32>, vector<16x32xf32>, vector<16x32xf32>, vector<16x32xf32>, vector<16x32xf32>, vector<16x32xf32>, vector<16x32xf32>, vector<16x32xf32>, vector<16x32xf32>, vector<16x32xf32>, vector<16x32xf32> -> vector<16x512xf32>
    %80 = arith.truncf %79 : vector<16x512xf32> to vector<16x512xbf16>
    %cst_24 = arith.constant dense<0.000000e+00> : vector<16x64xf32>
    %81 = tpu.matmul %80, %37, %cst_24 {dimension_numbers = #tpu.dot_dimension_numbers<[1], [0], [0], [1], [0, 0, 1, 1], [], []>} : vector<16x512xbf16>, vector<512x64xbf16>, vector<16x64xf32> -> vector<16x64xf32>
    %82 = tpu.concatenate %59, %81 in 0 : vector<16x64xf32>, vector<16x64xf32> -> vector<32x64xf32>
    %c0_25 = arith.constant 0 : index
    %c0_26 = arith.constant 0 : index
    %83 = vector.load %arg7[%c0_25, %c0_26] : memref<1x64xf32, #tpu.memory_space<vmem>>, vector<1x64xf32>
    %84 = vector.broadcast %83 : vector<1x64xf32> to vector<32x64xf32>
    %85 = arith.addf %82, %84 : vector<32x64xf32>
    %c0_27 = arith.constant 0 : index
    %c0_28 = arith.constant 0 : index
    %86 = vector.load %arg8[%c0_27, %c0_28] : memref<1x64xf32, #tpu.memory_space<vmem>>, vector<1x64xf32>
    %c0_29 = arith.constant 0 : index
    %c0_30 = arith.constant 0 : index
    %87 = vector.load %arg9[%c0_29, %c0_30] : memref<1x64xf32, #tpu.memory_space<vmem>>, vector<1x64xf32>
    %cst_31 = arith.constant 0.000000e+00 : f32
    %88 = vector.broadcast %cst_31 : f32 to vector<32x64xf32>
    %89 = arith.cmpf oge, %85, %88 : vector<32x64xf32>
    %cst_32 = arith.constant 0.00999999977 : f32
    %90 = vector.broadcast %cst_32 : f32 to vector<32x64xf32>
    %91 = arith.mulf %90, %85 : vector<32x64xf32>
    %92 = arith.select %89, %85, %91 : vector<32x64xi1>, vector<32x64xf32>
    %cst_33 = arith.constant dense<0.000000e+00> : vector<64xf32>
    %93 = vector.multi_reduction <add>, %92, %cst_33 [0] : vector<32x64xf32> to vector<64xf32>
    %94 = vector.shape_cast %93 : vector<64xf32> to vector<1x64xf32>
    %cst_34 = arith.constant 3.125000e-02 : f32
    %95 = vector.broadcast %cst_34 : f32 to vector<1x64xf32>
    %96 = arith.mulf %94, %95 : vector<1x64xf32>
    %97 = arith.mulf %92, %92 : vector<32x64xf32>
    %cst_35 = arith.constant dense<0.000000e+00> : vector<64xf32>
    %98 = vector.multi_reduction <add>, %97, %cst_35 [0] : vector<32x64xf32> to vector<64xf32>
    %99 = vector.shape_cast %98 : vector<64xf32> to vector<1x64xf32>
    %cst_36 = arith.constant 3.125000e-02 : f32
    %100 = vector.broadcast %cst_36 : f32 to vector<1x64xf32>
    %101 = arith.mulf %99, %100 : vector<1x64xf32>
    %102 = arith.mulf %96, %96 : vector<1x64xf32>
    %103 = arith.subf %101, %102 : vector<1x64xf32>
    %cst_37 = arith.constant 0.000000e+00 : f32
    %104 = vector.broadcast %cst_37 : f32 to vector<1x64xf32>
    %105 = arith.maximumf %103, %104 : vector<1x64xf32>
    %cst_38 = arith.constant 9.99999974E-6 : f32
    %106 = vector.broadcast %cst_38 : f32 to vector<1x64xf32>
    %107 = arith.addf %105, %106 : vector<1x64xf32>
    %108 = math.rsqrt %107 : vector<1x64xf32>
    %109 = arith.mulf %108, %86 : vector<1x64xf32>
    %110 = vector.broadcast %96 : vector<1x64xf32> to vector<32x64xf32>
    %111 = arith.subf %92, %110 : vector<32x64xf32>
    %112 = vector.broadcast %109 : vector<1x64xf32> to vector<32x64xf32>
    %113 = arith.mulf %111, %112 : vector<32x64xf32>
    %114 = vector.broadcast %87 : vector<1x64xf32> to vector<32x64xf32>
    %115 = arith.addf %113, %114 : vector<32x64xf32>
    %c0_39 = arith.constant 0 : index
    %c0_40 = arith.constant 0 : index
    %116 = vector.load %arg10[%c0_39, %c0_40] : memref<64x16xbf16, #tpu.memory_space<vmem>>, vector<64x16xbf16>
    %c0_41 = arith.constant 0 : index
    %c0_42 = arith.constant 0 : index
    %117 = vector.load %arg11[%c0_41, %c0_42] : memref<1024x128xbf16, #tpu.memory_space<vmem>>, vector<1024x128xbf16>
    %118 = vector.extract_strided_slice %115 {offsets = [0, 0], sizes = [16, 64], strides = [1, 1]} : vector<32x64xf32> to vector<16x64xf32>
    %119 = arith.truncf %118 : vector<16x64xf32> to vector<16x64xbf16>
    %cst_43 = arith.constant dense<0.000000e+00> : vector<64x64xf32>
    %120 = tpu.matmul %116, %119, %cst_43 {dimension_numbers = #tpu.dot_dimension_numbers<[1], [0], [0], [1], [0, 0, 1, 1], [], []>} : vector<64x16xbf16>, vector<16x64xbf16>, vector<64x64xf32> -> vector<64x64xf32>
    %121 = vector.extract_strided_slice %120 {offsets = [0, 0], sizes = [4, 64], strides = [1, 1]} : vector<64x64xf32> to vector<4x64xf32>
    %122 = vector.extract_strided_slice %120 {offsets = [4, 0], sizes = [4, 64], strides = [1, 1]} : vector<64x64xf32> to vector<4x64xf32>
    %123 = vector.extract_strided_slice %120 {offsets = [8, 0], sizes = [4, 64], strides = [1, 1]} : vector<64x64xf32> to vector<4x64xf32>
    %124 = vector.extract_strided_slice %120 {offsets = [12, 0], sizes = [4, 64], strides = [1, 1]} : vector<64x64xf32> to vector<4x64xf32>
    %125 = vector.extract_strided_slice %120 {offsets = [16, 0], sizes = [4, 64], strides = [1, 1]} : vector<64x64xf32> to vector<4x64xf32>
    %126 = vector.extract_strided_slice %120 {offsets = [20, 0], sizes = [4, 64], strides = [1, 1]} : vector<64x64xf32> to vector<4x64xf32>
    %127 = vector.extract_strided_slice %120 {offsets = [24, 0], sizes = [4, 64], strides = [1, 1]} : vector<64x64xf32> to vector<4x64xf32>
    %128 = vector.extract_strided_slice %120 {offsets = [28, 0], sizes = [4, 64], strides = [1, 1]} : vector<64x64xf32> to vector<4x64xf32>
    %129 = vector.extract_strided_slice %120 {offsets = [32, 0], sizes = [4, 64], strides = [1, 1]} : vector<64x64xf32> to vector<4x64xf32>
    %130 = vector.extract_strided_slice %120 {offsets = [36, 0], sizes = [4, 64], strides = [1, 1]} : vector<64x64xf32> to vector<4x64xf32>
    %131 = vector.extract_strided_slice %120 {offsets = [40, 0], sizes = [4, 64], strides = [1, 1]} : vector<64x64xf32> to vector<4x64xf32>
    %132 = vector.extract_strided_slice %120 {offsets = [44, 0], sizes = [4, 64], strides = [1, 1]} : vector<64x64xf32> to vector<4x64xf32>
    %133 = vector.extract_strided_slice %120 {offsets = [48, 0], sizes = [4, 64], strides = [1, 1]} : vector<64x64xf32> to vector<4x64xf32>
    %134 = vector.extract_strided_slice %120 {offsets = [52, 0], sizes = [4, 64], strides = [1, 1]} : vector<64x64xf32> to vector<4x64xf32>
    %135 = vector.extract_strided_slice %120 {offsets = [56, 0], sizes = [4, 64], strides = [1, 1]} : vector<64x64xf32> to vector<4x64xf32>
    %136 = vector.extract_strided_slice %120 {offsets = [60, 0], sizes = [4, 64], strides = [1, 1]} : vector<64x64xf32> to vector<4x64xf32>
    %137 = tpu.concatenate %121, %122, %123, %124, %125, %126, %127, %128, %129, %130, %131, %132, %133, %134, %135, %136 in 1 : vector<4x64xf32>, vector<4x64xf32>, vector<4x64xf32>, vector<4x64xf32>, vector<4x64xf32>, vector<4x64xf32>, vector<4x64xf32>, vector<4x64xf32>, vector<4x64xf32>, vector<4x64xf32>, vector<4x64xf32>, vector<4x64xf32>, vector<4x64xf32>, vector<4x64xf32>, vector<4x64xf32>, vector<4x64xf32> -> vector<4x1024xf32>
    %138 = arith.truncf %137 : vector<4x1024xf32> to vector<4x1024xbf16>
    %cst_44 = arith.constant dense<0.000000e+00> : vector<4x128xf32>
    %139 = tpu.matmul %138, %117, %cst_44 {dimension_numbers = #tpu.dot_dimension_numbers<[1], [0], [0], [1], [0, 0, 1, 1], [], []>} : vector<4x1024xbf16>, vector<1024x128xbf16>, vector<4x128xf32> -> vector<4x128xf32>
    %140 = vector.extract_strided_slice %115 {offsets = [16, 0], sizes = [16, 64], strides = [1, 1]} : vector<32x64xf32> to vector<16x64xf32>
    %141 = arith.truncf %140 : vector<16x64xf32> to vector<16x64xbf16>
    %cst_45 = arith.constant dense<0.000000e+00> : vector<64x64xf32>
    %142 = tpu.matmul %116, %141, %cst_45 {dimension_numbers = #tpu.dot_dimension_numbers<[1], [0], [0], [1], [0, 0, 1, 1], [], []>} : vector<64x16xbf16>, vector<16x64xbf16>, vector<64x64xf32> -> vector<64x64xf32>
    %143 = vector.extract_strided_slice %142 {offsets = [0, 0], sizes = [4, 64], strides = [1, 1]} : vector<64x64xf32> to vector<4x64xf32>
    %144 = vector.extract_strided_slice %142 {offsets = [4, 0], sizes = [4, 64], strides = [1, 1]} : vector<64x64xf32> to vector<4x64xf32>
    %145 = vector.extract_strided_slice %142 {offsets = [8, 0], sizes = [4, 64], strides = [1, 1]} : vector<64x64xf32> to vector<4x64xf32>
    %146 = vector.extract_strided_slice %142 {offsets = [12, 0], sizes = [4, 64], strides = [1, 1]} : vector<64x64xf32> to vector<4x64xf32>
    %147 = vector.extract_strided_slice %142 {offsets = [16, 0], sizes = [4, 64], strides = [1, 1]} : vector<64x64xf32> to vector<4x64xf32>
    %148 = vector.extract_strided_slice %142 {offsets = [20, 0], sizes = [4, 64], strides = [1, 1]} : vector<64x64xf32> to vector<4x64xf32>
    %149 = vector.extract_strided_slice %142 {offsets = [24, 0], sizes = [4, 64], strides = [1, 1]} : vector<64x64xf32> to vector<4x64xf32>
    %150 = vector.extract_strided_slice %142 {offsets = [28, 0], sizes = [4, 64], strides = [1, 1]} : vector<64x64xf32> to vector<4x64xf32>
    %151 = vector.extract_strided_slice %142 {offsets = [32, 0], sizes = [4, 64], strides = [1, 1]} : vector<64x64xf32> to vector<4x64xf32>
    %152 = vector.extract_strided_slice %142 {offsets = [36, 0], sizes = [4, 64], strides = [1, 1]} : vector<64x64xf32> to vector<4x64xf32>
    %153 = vector.extract_strided_slice %142 {offsets = [40, 0], sizes = [4, 64], strides = [1, 1]} : vector<64x64xf32> to vector<4x64xf32>
    %154 = vector.extract_strided_slice %142 {offsets = [44, 0], sizes = [4, 64], strides = [1, 1]} : vector<64x64xf32> to vector<4x64xf32>
    %155 = vector.extract_strided_slice %142 {offsets = [48, 0], sizes = [4, 64], strides = [1, 1]} : vector<64x64xf32> to vector<4x64xf32>
    %156 = vector.extract_strided_slice %142 {offsets = [52, 0], sizes = [4, 64], strides = [1, 1]} : vector<64x64xf32> to vector<4x64xf32>
    %157 = vector.extract_strided_slice %142 {offsets = [56, 0], sizes = [4, 64], strides = [1, 1]} : vector<64x64xf32> to vector<4x64xf32>
    %158 = vector.extract_strided_slice %142 {offsets = [60, 0], sizes = [4, 64], strides = [1, 1]} : vector<64x64xf32> to vector<4x64xf32>
    %159 = tpu.concatenate %143, %144, %145, %146, %147, %148, %149, %150, %151, %152, %153, %154, %155, %156, %157, %158 in 1 : vector<4x64xf32>, vector<4x64xf32>, vector<4x64xf32>, vector<4x64xf32>, vector<4x64xf32>, vector<4x64xf32>, vector<4x64xf32>, vector<4x64xf32>, vector<4x64xf32>, vector<4x64xf32>, vector<4x64xf32>, vector<4x64xf32>, vector<4x64xf32>, vector<4x64xf32>, vector<4x64xf32>, vector<4x64xf32> -> vector<4x1024xf32>
    %160 = arith.truncf %159 : vector<4x1024xf32> to vector<4x1024xbf16>
    %cst_46 = arith.constant dense<0.000000e+00> : vector<4x128xf32>
    %161 = tpu.matmul %160, %117, %cst_46 {dimension_numbers = #tpu.dot_dimension_numbers<[1], [0], [0], [1], [0, 0, 1, 1], [], []>} : vector<4x1024xbf16>, vector<1024x128xbf16>, vector<4x128xf32> -> vector<4x128xf32>
    %162 = tpu.concatenate %139, %161 in 0 : vector<4x128xf32>, vector<4x128xf32> -> vector<8x128xf32>
    %c0_47 = arith.constant 0 : index
    %c0_48 = arith.constant 0 : index
    %163 = vector.load %arg12[%c0_47, %c0_48] : memref<1x128xf32, #tpu.memory_space<vmem>>, vector<1x128xf32>
    %164 = vector.broadcast %163 : vector<1x128xf32> to vector<8x128xf32>
    %165 = arith.addf %162, %164 : vector<8x128xf32>
    %c0_49 = arith.constant 0 : index
    %c0_50 = arith.constant 0 : index
    %166 = vector.load %arg13[%c0_49, %c0_50] : memref<1x128xf32, #tpu.memory_space<vmem>>, vector<1x128xf32>
    %c0_51 = arith.constant 0 : index
    %c0_52 = arith.constant 0 : index
    %167 = vector.load %arg14[%c0_51, %c0_52] : memref<1x128xf32, #tpu.memory_space<vmem>>, vector<1x128xf32>
    %cst_53 = arith.constant 0.000000e+00 : f32
    %168 = vector.broadcast %cst_53 : f32 to vector<8x128xf32>
    %169 = arith.cmpf oge, %165, %168 : vector<8x128xf32>
    %cst_54 = arith.constant 0.00999999977 : f32
    %170 = vector.broadcast %cst_54 : f32 to vector<8x128xf32>
    %171 = arith.mulf %170, %165 : vector<8x128xf32>
    %172 = arith.select %169, %165, %171 : vector<8x128xi1>, vector<8x128xf32>
    %cst_55 = arith.constant dense<0.000000e+00> : vector<128xf32>
    %173 = vector.multi_reduction <add>, %172, %cst_55 [0] : vector<8x128xf32> to vector<128xf32>
    %174 = vector.shape_cast %173 : vector<128xf32> to vector<1x128xf32>
    %cst_56 = arith.constant 1.250000e-01 : f32
    %175 = vector.broadcast %cst_56 : f32 to vector<1x128xf32>
    %176 = arith.mulf %174, %175 : vector<1x128xf32>
    %177 = arith.mulf %172, %172 : vector<8x128xf32>
    %cst_57 = arith.constant dense<0.000000e+00> : vector<128xf32>
    %178 = vector.multi_reduction <add>, %177, %cst_57 [0] : vector<8x128xf32> to vector<128xf32>
    %179 = vector.shape_cast %178 : vector<128xf32> to vector<1x128xf32>
    %cst_58 = arith.constant 1.250000e-01 : f32
    %180 = vector.broadcast %cst_58 : f32 to vector<1x128xf32>
    %181 = arith.mulf %179, %180 : vector<1x128xf32>
    %182 = arith.mulf %176, %176 : vector<1x128xf32>
    %183 = arith.subf %181, %182 : vector<1x128xf32>
    %cst_59 = arith.constant 0.000000e+00 : f32
    %184 = vector.broadcast %cst_59 : f32 to vector<1x128xf32>
    %185 = arith.maximumf %183, %184 : vector<1x128xf32>
    %cst_60 = arith.constant 9.99999974E-6 : f32
    %186 = vector.broadcast %cst_60 : f32 to vector<1x128xf32>
    %187 = arith.addf %185, %186 : vector<1x128xf32>
    %188 = math.rsqrt %187 : vector<1x128xf32>
    %189 = arith.mulf %188, %166 : vector<1x128xf32>
    %190 = vector.broadcast %176 : vector<1x128xf32> to vector<8x128xf32>
    %191 = arith.subf %172, %190 : vector<8x128xf32>
    %192 = vector.broadcast %189 : vector<1x128xf32> to vector<8x128xf32>
    %193 = arith.mulf %191, %192 : vector<8x128xf32>
    %194 = vector.broadcast %167 : vector<1x128xf32> to vector<8x128xf32>
    %195 = arith.addf %193, %194 : vector<8x128xf32>
    %196 = vector.extract_strided_slice %195 {offsets = [0, 0], sizes = [4, 128], strides = [1, 1]} : vector<8x128xf32> to vector<4x128xf32>
    %197 = vector.extract_strided_slice %196 {offsets = [0, 0], sizes = [1, 128], strides = [1, 1]} : vector<4x128xf32> to vector<1x128xf32>
    %198 = vector.extract_strided_slice %196 {offsets = [1, 0], sizes = [1, 128], strides = [1, 1]} : vector<4x128xf32> to vector<1x128xf32>
    %199 = vector.extract_strided_slice %196 {offsets = [2, 0], sizes = [1, 128], strides = [1, 1]} : vector<4x128xf32> to vector<1x128xf32>
    %200 = vector.extract_strided_slice %196 {offsets = [3, 0], sizes = [1, 128], strides = [1, 1]} : vector<4x128xf32> to vector<1x128xf32>
    %201 = tpu.concatenate %197, %198, %199, %200 in 1 : vector<1x128xf32>, vector<1x128xf32>, vector<1x128xf32>, vector<1x128xf32> -> vector<1x512xf32>
    %202 = vector.extract_strided_slice %195 {offsets = [4, 0], sizes = [4, 128], strides = [1, 1]} : vector<8x128xf32> to vector<4x128xf32>
    %203 = vector.extract_strided_slice %202 {offsets = [0, 0], sizes = [1, 128], strides = [1, 1]} : vector<4x128xf32> to vector<1x128xf32>
    %204 = vector.extract_strided_slice %202 {offsets = [1, 0], sizes = [1, 128], strides = [1, 1]} : vector<4x128xf32> to vector<1x128xf32>
    %205 = vector.extract_strided_slice %202 {offsets = [2, 0], sizes = [1, 128], strides = [1, 1]} : vector<4x128xf32> to vector<1x128xf32>
    %206 = vector.extract_strided_slice %202 {offsets = [3, 0], sizes = [1, 128], strides = [1, 1]} : vector<4x128xf32> to vector<1x128xf32>
    %207 = tpu.concatenate %203, %204, %205, %206 in 1 : vector<1x128xf32>, vector<1x128xf32>, vector<1x128xf32>, vector<1x128xf32> -> vector<1x512xf32>
    %208 = tpu.concatenate %201, %207 in 0 : vector<1x512xf32>, vector<1x512xf32> -> vector<2x512xf32>
    %209 = arith.truncf %208 : vector<2x512xf32> to vector<2x512xbf16>
    %c0_61 = arith.constant 0 : index
    %c0_62 = arith.constant 0 : index
    %210 = vector.load %arg15[%c0_61, %c0_62] : memref<512x768xbf16, #tpu.memory_space<vmem>>, vector<512x768xbf16>
    %cst_63 = arith.constant dense<0.000000e+00> : vector<2x768xf32>
    %211 = tpu.matmul %209, %210, %cst_63 {dimension_numbers = #tpu.dot_dimension_numbers<[1], [0], [0], [1], [0, 0, 1, 1], [], []>} : vector<2x512xbf16>, vector<512x768xbf16>, vector<2x768xf32> -> vector<2x768xf32>
    %c0_64 = arith.constant 0 : index
    %c0_65 = arith.constant 0 : index
    %212 = vector.load %arg16[%c0_64, %c0_65] : memref<1x768xf32, #tpu.memory_space<vmem>>, vector<1x768xf32>
    %213 = vector.broadcast %212 : vector<1x768xf32> to vector<2x768xf32>
    %214 = arith.addf %211, %213 : vector<2x768xf32>
    %c0_66 = arith.constant 0 : index
    %c0_67 = arith.constant 0 : index
    %215 = vector.load %arg17[%c0_66, %c0_67] : memref<1x768xf32, #tpu.memory_space<vmem>>, vector<1x768xf32>
    %c0_68 = arith.constant 0 : index
    %c0_69 = arith.constant 0 : index
    %216 = vector.load %arg18[%c0_68, %c0_69] : memref<1x768xf32, #tpu.memory_space<vmem>>, vector<1x768xf32>
    %cst_70 = arith.constant 0.000000e+00 : f32
    %217 = vector.broadcast %cst_70 : f32 to vector<2x768xf32>
    %218 = arith.cmpf oge, %214, %217 : vector<2x768xf32>
    %cst_71 = arith.constant 0.00999999977 : f32
    %219 = vector.broadcast %cst_71 : f32 to vector<2x768xf32>
    %220 = arith.mulf %219, %214 : vector<2x768xf32>
    %221 = arith.select %218, %214, %220 : vector<2x768xi1>, vector<2x768xf32>
    %cst_72 = arith.constant dense<0.000000e+00> : vector<768xf32>
    %222 = vector.multi_reduction <add>, %221, %cst_72 [0] : vector<2x768xf32> to vector<768xf32>
    %223 = vector.shape_cast %222 : vector<768xf32> to vector<1x768xf32>
    %cst_73 = arith.constant 5.000000e-01 : f32
    %224 = vector.broadcast %cst_73 : f32 to vector<1x768xf32>
    %225 = arith.mulf %223, %224 : vector<1x768xf32>
    %226 = arith.mulf %221, %221 : vector<2x768xf32>
    %cst_74 = arith.constant dense<0.000000e+00> : vector<768xf32>
    %227 = vector.multi_reduction <add>, %226, %cst_74 [0] : vector<2x768xf32> to vector<768xf32>
    %228 = vector.shape_cast %227 : vector<768xf32> to vector<1x768xf32>
    %cst_75 = arith.constant 5.000000e-01 : f32
    %229 = vector.broadcast %cst_75 : f32 to vector<1x768xf32>
    %230 = arith.mulf %228, %229 : vector<1x768xf32>
    %231 = arith.mulf %225, %225 : vector<1x768xf32>
    %232 = arith.subf %230, %231 : vector<1x768xf32>
    %cst_76 = arith.constant 0.000000e+00 : f32
    %233 = vector.broadcast %cst_76 : f32 to vector<1x768xf32>
    %234 = arith.maximumf %232, %233 : vector<1x768xf32>
    %cst_77 = arith.constant 9.99999974E-6 : f32
    %235 = vector.broadcast %cst_77 : f32 to vector<1x768xf32>
    %236 = arith.addf %234, %235 : vector<1x768xf32>
    %237 = math.rsqrt %236 : vector<1x768xf32>
    %238 = arith.mulf %237, %215 : vector<1x768xf32>
    %239 = vector.broadcast %225 : vector<1x768xf32> to vector<2x768xf32>
    %240 = arith.subf %221, %239 : vector<2x768xf32>
    %241 = vector.broadcast %238 : vector<1x768xf32> to vector<2x768xf32>
    %242 = arith.mulf %240, %241 : vector<2x768xf32>
    %243 = vector.broadcast %216 : vector<1x768xf32> to vector<2x768xf32>
    %244 = arith.addf %242, %243 : vector<2x768xf32>
    %c0_78 = arith.constant 0 : index
    %c0_79 = arith.constant 0 : index
    %245 = vector.load %arg19[%c0_78, %c0_79] : memref<2x768xf32, #tpu.memory_space<vmem>>, vector<2x768xf32>
    tpu.vector_store %arg19[%c0_78, %c0_79], %244 {strides = array<i32>} : memref<2x768xf32, #tpu.memory_space<vmem>>, vector<2x768xf32>,
    return
  }
}

</mosaic_0001>

<llo_original>
// kernel: cnn_arc_forward.1
$region0: #{cnn_arc_forward.1}
  #allocation0 [shape = 'u32[]', space=smem, size = 0x4, offset = 0x4, fixed_abs, tag = 'smem constant byte address 0x4 - core index']
  #allocation1 [shape = 'u32[144,128]{1,0:T(1,128)}', space=vmem, size = 0x12000, scoped, tag = 'internal scratch']
  %s0 = inlined_call_operand.vmem [shape: bf16[128,16], index: 0, kind: input, shape index: {}]
  %s1 = inlined_call_operand.vmem [shape: bf16[16,32], index: 1, kind: input, shape index: {}]
  %s2 = inlined_call_operand.vmem [shape: f32[1,32], index: 2, kind: input, shape index: {}]
  %s3 = inlined_call_operand.vmem [shape: f32[1,32], index: 3, kind: input, shape index: {}]
  %s4 = inlined_call_operand.vmem [shape: f32[1,32], index: 4, kind: input, shape index: {}]
  %s5 = inlined_call_operand.vmem [shape: bf16[256,64], index: 5, kind: input, shape index: {}]
  %s6 = inlined_call_operand.vmem [shape: bf16[512,64], index: 6, kind: input, shape index: {}]
  %s7 = inlined_call_operand.vmem [shape: f32[1,64], index: 7, kind: input, shape index: {}]
  %s8 = inlined_call_operand.vmem [shape: f32[1,64], index: 8, kind: input, shape index: {}]
  %s9 = inlined_call_operand.vmem [shape: f32[1,64], index: 9, kind: input, shape index: {}]
  %s10 = inlined_call_operand.vmem [shape: bf16[64,16], index: 10, kind: input, shape index: {}]
  %s11 = inlined_call_operand.vmem [shape: bf16[1024,128], index: 11, kind: input, shape index: {}]
  %s12 = inlined_call_operand.vmem [shape: f32[1,128], index: 12, kind: input, shape index: {}]
  %s13 = inlined_call_operand.vmem [shape: f32[1,128], index: 13, kind: input, shape index: {}]
  %s14 = inlined_call_operand.vmem [shape: f32[1,128], index: 14, kind: input, shape index: {}]
  %s15 = inlined_call_operand.hbm [shape: bf16[512,768], index: 15, kind: input, shape index: {}]
  %s16 = inlined_call_operand.vmem [shape: f32[1,768], index: 16, kind: input, shape index: {}]
  %s17 = inlined_call_operand.vmem [shape: f32[1,768], index: 17, kind: input, shape index: {}]
  %s18 = inlined_call_operand.vmem [shape: f32[1,768], index: 18, kind: input, shape index: {}]
  %s19 = inlined_call_operand.hbm [shape: f32[2,768], index: 19, kind: output, shape index: {}]
  %s20 = sld [smem:[#allocation0]]
  $region90: #{cnn_arc_forward.1} parent=0
    _
  %s22 = ssub.s32 1, %s20
  %s23 = scalar_select 0, %s22, %s20
  $region1: #{cnn_arc_forward.1} parent=0
    #allocation2 [shape = 'u8[786432]{0}', space=vmem, size = 0xc0000, scoped, tag = 'input window, operand 15, single buffered']
    #allocation3 [shape = 's32[1]{0}', space=sflag, size = 0x4, scoped, tag = 'scoped memory for cnn_arc_forward.1']
    #allocation4 [shape = 's32[1]{0}', space=sflag, size = 0x4, scoped, tag = 'scoped memory for cnn_arc_forward.1']
    #allocation5 [shape = 'u8[6144]{0}', space=vmem, size = 0x1800, scoped, tag = 'output window, operand 0, single buffered']
    %24 = vsyncpa [#allocation3], 0
    %25 = vsyncpa [#allocation4], 0
    // Predicated region
    $region2: #{cnn_arc_forward.1} parent=1 // pred_check
      _
    $region3: #{cnn_arc_forward.1} parent=1 // pred_check_branch
      %27 = sbr.rel (0) target = $region5
    $region4: #{cnn_arc_forward.1} parent=1 // pred_region
      _
    $region5: #{cnn_arc_forward.1} parent=1 // pred_fallthru
      _
    // Predicated region
    $region6: #{cnn_arc_forward.1} parent=1 // pred_check
      _
    $region7: #{cnn_arc_forward.1} parent=1 // pred_check_branch
      %29 = sbr.rel (0) target = $region9
    $region8: #{cnn_arc_forward.1} parent=1 // pred_region
      _
    $region9: #{cnn_arc_forward.1} parent=1 // pred_fallthru
      _
    // Predicated region
    $region10: #{cnn_arc_forward.1} parent=1 // pred_check
      _
    $region11: #{cnn_arc_forward.1} parent=1 // pred_check_branch
      %31 = sbr.rel (0) target = $region13
    $region12: #{cnn_arc_forward.1} parent=1 // pred_region
      _
    $region13: #{cnn_arc_forward.1} parent=1 // pred_fallthru
      _
    // Predicated region
    $region14: #{cnn_arc_forward.1} parent=1 // pred_check
      _
    $region15: #{cnn_arc_forward.1} parent=1 // pred_check_branch
      %33 = sbr.rel (0) target = $region17
    $region16: #{cnn_arc_forward.1} parent=1 // pred_region
      _
    $region17: #{cnn_arc_forward.1} parent=1 // pred_fallthru
      _
    // Predicated region
    $region18: #{cnn_arc_forward.1} parent=1 // pred_check
      _
    $region19: #{cnn_arc_forward.1} parent=1 // pred_check_branch
      %35 = sbr.rel (0) target = $region21
    $region20: #{cnn_arc_forward.1} parent=1 // pred_region
      _
    $region21: #{cnn_arc_forward.1} parent=1 // pred_fallthru
      _
    // Predicated region
    $region22: #{cnn_arc_forward.1} parent=1 // pred_check
      _
    $region23: #{cnn_arc_forward.1} parent=1 // pred_check_branch
      %37 = sbr.rel (0) target = $region25
    $region24: #{cnn_arc_forward.1} parent=1 // pred_region
      _
    $region25: #{cnn_arc_forward.1} parent=1 // pred_fallthru
      _
    // Predicated region
    $region26: #{cnn_arc_forward.1} parent=1 // pred_check
      _
    $region27: #{cnn_arc_forward.1} parent=1 // pred_check_branch
      %39 = sbr.rel (0) target = $region29
    $region28: #{cnn_arc_forward.1} parent=1 // pred_region
      _
    $region29: #{cnn_arc_forward.1} parent=1 // pred_fallthru
      _
    // Predicated region
    $region30: #{cnn_arc_forward.1} parent=1 // pred_check
      _
    $region31: #{cnn_arc_forward.1} parent=1 // pred_check_branch
      %41 = sbr.rel (0) target = $region33
    $region32: #{cnn_arc_forward.1} parent=1 // pred_region
      _
    $region33: #{cnn_arc_forward.1} parent=1 // pred_fallthru
      _
    // Predicated region
    $region34: #{cnn_arc_forward.1} parent=1 // pred_check
      _
    $region35: #{cnn_arc_forward.1} parent=1 // pred_check_branch
      %43 = sbr.rel (0) target = $region37
    $region36: #{cnn_arc_forward.1} parent=1 // pred_region
      _
    $region37: #{cnn_arc_forward.1} parent=1 // pred_fallthru
      _
    // Predicated region
    $region38: #{cnn_arc_forward.1} parent=1 // pred_check
      _
    $region39: #{cnn_arc_forward.1} parent=1 // pred_check_branch
      %45 = sbr.rel (0) target = $region41
    $region40: #{cnn_arc_forward.1} parent=1 // pred_region
      _
    $region41: #{cnn_arc_forward.1} parent=1 // pred_fallthru
      _
    // Predicated region
    $region42: #{cnn_arc_forward.1} parent=1 // pred_check
      _
    $region43: #{cnn_arc_forward.1} parent=1 // pred_check_branch
      %47 = sbr.rel (0) target = $region45
    $region44: #{cnn_arc_forward.1} parent=1 // pred_region
      _
    $region45: #{cnn_arc_forward.1} parent=1 // pred_fallthru
      _
    // Predicated region
    $region46: #{cnn_arc_forward.1} parent=1 // pred_check
      _
    $region47: #{cnn_arc_forward.1} parent=1 // pred_check_branch
      %49 = sbr.rel (0) target = $region49
    $region48: #{cnn_arc_forward.1} parent=1 // pred_region
      _
    $region49: #{cnn_arc_forward.1} parent=1 // pred_fallthru
      _
    // Predicated region
    $region50: #{cnn_arc_forward.1} parent=1 // pred_check
      _
    $region51: #{cnn_arc_forward.1} parent=1 // pred_check_branch
      %51 = sbr.rel (0) target = $region53
    $region52: #{cnn_arc_forward.1} parent=1 // pred_region
      _
    $region53: #{cnn_arc_forward.1} parent=1 // pred_fallthru
      _
    // Predicated region
    $region54: #{cnn_arc_forward.1} parent=1 // pred_check
      _
    $region55: #{cnn_arc_forward.1} parent=1 // pred_check_branch
      %53 = sbr.rel (0) target = $region57
    $region56: #{cnn_arc_forward.1} parent=1 // pred_region
      _
    $region57: #{cnn_arc_forward.1} parent=1 // pred_fallthru
      _
    // Predicated region
    $region58: #{cnn_arc_forward.1} parent=1 // pred_check
      _
    $region59: #{cnn_arc_forward.1} parent=1 // pred_check_branch
      %55 = sbr.rel (0) target = $region61
    $region60: #{cnn_arc_forward.1} parent=1 // pred_region
      _
    $region61: #{cnn_arc_forward.1} parent=1 // pred_fallthru
      _
    // Predicated region
    $region62: #{cnn_arc_forward.1} parent=1 // pred_check
      _
    $region63: #{cnn_arc_forward.1} parent=1 // pred_check_branch
      %57 = sbr.rel (0) target = $region65
    $region64: #{cnn_arc_forward.1} parent=1 // pred_region
      %s59 = ssub.s32 24576, 24576
      %60 = vsyncadd [#allocation3], %s59
      %s61 = sshll.u32 [#allocation2], 4
      %s62 = int_to_ptr.vmem [resolvable:$true] %s61
      %67 = dma.hbm_to_vmem [thread:$0]  %s15, 24576, %s62, [#allocation3], 384, 384, 24
    $region65: #{cnn_arc_forward.1} parent=1 // pred_fallthru
      _
    // Predicated region
    $region66: #{cnn_arc_forward.1} parent=1 // pred_check
      _
    $region67: #{cnn_arc_forward.1} parent=1 // pred_check_branch
      %69 = sbr.rel (0) target = $region69
    $region68: #{cnn_arc_forward.1} parent=1 // pred_region
      _
    $region69: #{cnn_arc_forward.1} parent=1 // pred_fallthru
      _
    // Predicated region
    $region70: #{cnn_arc_forward.1} parent=1 // pred_check
      _
    $region71: #{cnn_arc_forward.1} parent=1 // pred_check_branch
      %71 = sbr.rel (0) target = $region73
    $region72: #{cnn_arc_forward.1} parent=1 // pred_region
      _
    $region73: #{cnn_arc_forward.1} parent=1 // pred_fallthru
      _
    // Predicated region
    $region74: #{cnn_arc_forward.1} parent=1 // pred_check
      _
    $region75: #{cnn_arc_forward.1} parent=1 // pred_check_branch
      %73 = sbr.rel (0) target = $region77
    $region76: #{cnn_arc_forward.1} parent=1 // pred_region
      _
    $region77: #{cnn_arc_forward.1} parent=1 // pred_fallthru
      _
    // Predicated region
    $region78: #{cnn_arc_forward.1} parent=1 // pred_check
      _
    $region79: #{cnn_arc_forward.1} parent=1 // pred_check_branch
      %75 = sbr.rel (0) target = $region81
    $region80: #{cnn_arc_forward.1} parent=1 // pred_region
      %76 = dma.done [#allocation3], 24576
    $region81: #{cnn_arc_forward.1} parent=1 // pred_fallthru
      _
    %v78 = vld [vmem:[%s0] sm:$0xf]
    %v79 = vld [vmem:[%s0 + $0x4] sm:$0xf]
    %v80 = vld [vmem:[%s0 + $0x8] sm:$0xf]
    %v81 = vld [vmem:[%s0 + $0xc] sm:$0xf]
    %v82 = vld [vmem:[%s0 + $0x10] sm:$0xf]
    %v83 = vld [vmem:[%s0 + $0x14] sm:$0xf]
    %v84 = vld [vmem:[%s0 + $0x18] sm:$0xf]
    %v85 = vld [vmem:[%s0 + $0x1c] sm:$0xf]
    %v86 = vld [vmem:[%s0 + $0x20] sm:$0xf]
    %v87 = vld [vmem:[%s0 + $0x24] sm:$0xf]
    %v88 = vld [vmem:[%s0 + $0x28] sm:$0xf]
    %v89 = vld [vmem:[%s0 + $0x2c] sm:$0xf]
    %v90 = vld [vmem:[%s0 + $0x30] sm:$0xf]
    %v91 = vld [vmem:[%s0 + $0x34] sm:$0xf]
    %v92 = vld [vmem:[%s0 + $0x38] sm:$0xf]
    %v93 = vld [vmem:[%s0 + $0x3c] sm:$0xf]
    %v94 = vld [vmem:[%s1] sm:$0xf]
    %v95 = vld [vmem:[%s1 + $0x4] sm:$0xf]
    %v96 = vld [vmem:[%s2] sm:$0x1]
    %v98 = vlaneseq
    %v99 = vshrl.u32 %v98, 7
    %v100 = vsub.s32 0, %v99
    %v101 = vrot.slane %v96, %v100
    %v119 = vunpack.c.l.b16 %v78
    %v120 = vunpack.c.l.b16 %v79
    %v121 = vunpack.c.l.b16 %v80
    %v122 = vunpack.c.l.b16 %v81
    %v123 = vunpack.c.l.b16 %v82
    %v124 = vunpack.c.l.b16 %v83
    %v125 = vunpack.c.l.b16 %v84
    %v126 = vunpack.c.l.b16 %v85
    %v127 = vunpack.c.l.b16 %v86
    %v128 = vunpack.c.l.b16 %v87
    %v129 = vunpack.c.l.b16 %v88
    %v130 = vunpack.c.l.b16 %v89
    %v131 = vunpack.c.l.b16 %v90
    %v132 = vunpack.c.l.b16 %v91
    %v133 = vunpack.c.l.b16 %v92
    %v134 = vunpack.c.l.b16 %v93
    %v135 = vpack.c.b16 %v120, %v119
    %v136 = vpack.c.b16 %v122, %v121
    %v137 = vpack.c.b16 %v124, %v123
    %v138 = vpack.c.b16 %v126, %v125
    %v139 = vpack.c.b16 %v128, %v127
    %v140 = vpack.c.b16 %v130, %v129
    %v141 = vpack.c.b16 %v132, %v131
    %v142 = vpack.c.b16 %v134, %v133
    %v145 = vunpack.c.l.b16 %v94
    %v146 = vunpack.c.l.b16 %v95
    %v147 = vpack.c.b16 %v146, %v145
    %vm149 = vcmask 130048
    %v151 = vsel %vm149, %v135, 0
    %v154 = vsel %vm149, %v136, 0
    %v157 = vsel %vm149, %v137, 0
    %v160 = vsel %vm149, %v138, 0
    %v163 = vsel %vm149, %v139, 0
    %v166 = vsel %vm149, %v140, 0
    %v169 = vsel %vm149, %v141, 0
    %v172 = vsel %vm149, %v142, 0
    %174 = vmatprep.subr.bf16.mxu0 0
    %175 = vmatpush1.bf16.msra.mxu0 %v147
    %176 = vmatprep.subr.bf16.mxu0 0
    %177 = vmatpush1.bf16.msra.mxu0 0
    %178 = vmatprep.subr.bf16.mxu0 0
    %179 = vmatpush1.bf16.msra.mxu0 0
    %180 = vmatprep.subr.bf16.mxu0 0
    %181 = vmatpush1.bf16.msra.mxu0 0
    %182 = vmatprep.subr.bf16.mxu0 0
    %183 = vmatpush1.bf16.msra.mxu0 0
    %184 = vmatprep.subr.bf16.mxu0 0
    %185 = vmatpush1.bf16.msra.mxu0 0
    %186 = vmatprep.subr.bf16.mxu0 0
    %187 = vmatpush1.bf16.msra.mxu0 0
    %188 = vmatprep.subr.bf16.mxu0 0
    %189 = vmatpush1.bf16.msra.mxu0 0
    %190 = vmatprep.subr.bf16.mxu0 0
    %191 = vmatpush1.bf16.msra.mxu0 0
    %192 = vmatprep.subr.bf16.mxu0 0
    %193 = vmatpush1.bf16.msra.mxu0 0
    %194 = vmatprep.subr.bf16.mxu0 0
    %195 = vmatpush1.bf16.msra.mxu0 0
    %196 = vmatprep.subr.bf16.mxu0 0
    %197 = vmatpush1.bf16.msra.mxu0 0
    %198 = vmatprep.subr.bf16.mxu0 0
    %199 = vmatpush1.bf16.msra.mxu0 0
    %200 = vmatprep.subr.bf16.mxu0 0
    %201 = vmatpush1.bf16.msra.mxu0 0
    %202 = vmatprep.subr.bf16.mxu0 0
    %203 = vmatpush1.bf16.msra.mxu0 0
    %204 = vmatprep.subr.bf16.mxu0 0
    %205 = vmatpush1.bf16.msra.mxu0 0
    %206 = vmatprep.mubr.bf16.mxu0 0
    %207 = vmatmul.mubr.bf16.gmra.mrb[0].mxu0 %v151
    %v208 = vpop.f32.mrb[0].mxu0
    %v209 = vadd.f32 %v101, %v208
    %v210 = vpop.f32.mrb[0].mxu0
    %v211 = vpop.f32.mrb[0].mxu0
    %v212 = vadd.f32 %v101, %v211
    %v213 = vpop.f32.mrb[0].mxu0
    %214 = vmatprep.mubr.bf16.mxu0 0
    %215 = vmatmul.mubr.bf16.gmra.mrb[0].mxu0 %v154
    %v216 = vpop.f32.mrb[0].mxu0
    %v217 = vadd.f32 %v101, %v216
    %v218 = vpop.f32.mrb[0].mxu0
    %v219 = vpop.f32.mrb[0].mxu0
    %v220 = vadd.f32 %v101, %v219
    %v221 = vpop.f32.mrb[0].mxu0
    %222 = vmatprep.mubr.bf16.mxu0 0
    %223 = vmatmul.mubr.bf16.gmra.mrb[0].mxu0 %v157
    %v224 = vpop.f32.mrb[0].mxu0
    %v225 = vadd.f32 %v101, %v224
    %v226 = vpop.f32.mrb[0].mxu0
    %v227 = vpop.f32.mrb[0].mxu0
    %v228 = vadd.f32 %v101, %v227
    %v229 = vpop.f32.mrb[0].mxu0
    %230 = vmatprep.mubr.bf16.mxu0 0
    %231 = vmatmul.mubr.bf16.gmra.mrb[0].mxu0 %v160
    %v232 = vpop.f32.mrb[0].mxu0
    %v233 = vadd.f32 %v101, %v232
    %v234 = vpop.f32.mrb[0].mxu0
    %v235 = vpop.f32.mrb[0].mxu0
    %v236 = vadd.f32 %v101, %v235
    %v237 = vpop.f32.mrb[0].mxu0
    %238 = vmatprep.mubr.bf16.mxu0 0
    %239 = vmatmul.mubr.bf16.gmra.mrb[0].mxu0 %v163
    %v240 = vpop.f32.mrb[0].mxu0
    %v241 = vadd.f32 %v101, %v240
    %v242 = vpop.f32.mrb[0].mxu0
    %v243 = vpop.f32.mrb[0].mxu0
    %v244 = vadd.f32 %v101, %v243
    %v245 = vpop.f32.mrb[0].mxu0
    %246 = vmatprep.mubr.bf16.mxu0 0
    %247 = vmatmul.mubr.bf16.gmra.mrb[0].mxu0 %v166
    %v248 = vpop.f32.mrb[0].mxu0
    %v249 = vadd.f32 %v101, %v248
    %v250 = vpop.f32.mrb[0].mxu0
    %v251 = vpop.f32.mrb[0].mxu0
    %v252 = vadd.f32 %v101, %v251
    %v253 = vpop.f32.mrb[0].mxu0
    %254 = vmatprep.mubr.bf16.mxu0 0
    %255 = vmatmul.mubr.bf16.gmra.mrb[0].mxu0 %v169
    %v256 = vpop.f32.mrb[0].mxu0
    %v257 = vadd.f32 %v101, %v256
    %v258 = vpop.f32.mrb[0].mxu0
    %v259 = vpop.f32.mrb[0].mxu0
    %v260 = vadd.f32 %v101, %v259
    %v261 = vpop.f32.mrb[0].mxu0
    %262 = vmatprep.mubr.bf16.mxu0 0
    %263 = vmatmul.mubr.bf16.gmra.mrb[0].mxu0 %v172
    %v264 = vpop.f32.mrb[0].mxu0
    %v265 = vadd.f32 %v101, %v264
    %v266 = vpop.f32.mrb[0].mxu0
    %v267 = vpop.f32.mrb[0].mxu0
    %v268 = vadd.f32 %v101, %v267
    %v269 = vpop.f32.mrb[0].mxu0
    %270 = vdwg.mxu0
    %v271 = vld [vmem:[%s3] sm:$0x1]
    %v272 = vld [vmem:[%s4] sm:$0x1]
    %vm273 = vcmp.ge.f32.partialorder %v209, 0.0
    %vm274 = vcmp.ge.f32.partialorder %v212, 0.0
    %vm275 = vcmp.ge.f32.partialorder %v217, 0.0
    %vm276 = vcmp.ge.f32.partialorder %v220, 0.0
    %vm277 = vcmp.ge.f32.partialorder %v225, 0.0
    %vm278 = vcmp.ge.f32.partialorder %v228, 0.0
    %vm279 = vcmp.ge.f32.partialorder %v233, 0.0
    %vm280 = vcmp.ge.f32.partialorder %v236, 0.0
    %vm281 = vcmp.ge.f32.partialorder %v241, 0.0
    %vm282 = vcmp.ge.f32.partialorder %v244, 0.0
    %vm283 = vcmp.ge.f32.partialorder %v249, 0.0
    %vm284 = vcmp.ge.f32.partialorder %v252, 0.0
    %vm285 = vcmp.ge.f32.partialorder %v257, 0.0
    %vm286 = vcmp.ge.f32.partialorder %v260, 0.0
    %vm287 = vcmp.ge.f32.partialorder %v265, 0.0
    %vm288 = vcmp.ge.f32.partialorder %v268, 0.0
    %v289 = vmul.f32 %v209, 0.01
    %v290 = vmul.f32 %v212, 0.01
    %v291 = vmul.f32 %v217, 0.01
    %v292 = vmul.f32 %v220, 0.01
    %v293 = vmul.f32 %v225, 0.01
    %v294 = vmul.f32 %v228, 0.01
    %v295 = vmul.f32 %v233, 0.01
    %v296 = vmul.f32 %v236, 0.01
    %v297 = vmul.f32 %v241, 0.01
    %v298 = vmul.f32 %v244, 0.01
    %v299 = vmul.f32 %v249, 0.01
    %v300 = vmul.f32 %v252, 0.01
    %v301 = vmul.f32 %v257, 0.01
    %v302 = vmul.f32 %v260, 0.01
    %v303 = vmul.f32 %v265, 0.01
    %v304 = vmul.f32 %v268, 0.01
    %v305 = vsel %vm273, %v209, %v289
    %v306 = vsel %vm274, %v212, %v290
    %v307 = vsel %vm275, %v217, %v291
    %v308 = vsel %vm276, %v220, %v292
    %v309 = vsel %vm277, %v225, %v293
    %v310 = vsel %vm278, %v228, %v294
    %v311 = vsel %vm279, %v233, %v295
    %v312 = vsel %vm280, %v236, %v296
    %v313 = vsel %vm281, %v241, %v297
    %v314 = vsel %vm282, %v244, %v298
    %v315 = vsel %vm283, %v249, %v299
    %v316 = vsel %vm284, %v252, %v300
    %v317 = vsel %vm285, %v257, %v301
    %v318 = vsel %vm286, %v260, %v302
    %v319 = vsel %vm287, %v265, %v303
    %v320 = vsel %vm288, %v268, %v304
    %vm321 = vcmask 261120
    %v322 = vsel %vm321, %v305, 0.0
    %v323 = vsel %vm321, %v306, 0.0
    %v324 = vadd.f32 %v322, %v323
    %v325 = vsel %vm321, %v307, 0.0
    %v326 = vadd.f32 %v324, %v325
    %v327 = vsel %vm321, %v308, 0.0
    %v328 = vadd.f32 %v326, %v327
    %v329 = vsel %vm321, %v309, 0.0
    %v330 = vadd.f32 %v328, %v329
    %v331 = vsel %vm321, %v310, 0.0
    %v332 = vadd.f32 %v330, %v331
    %v333 = vsel %vm321, %v311, 0.0
    %v334 = vadd.f32 %v332, %v333
    %v335 = vsel %vm321, %v312, 0.0
    %v336 = vadd.f32 %v334, %v335
    %v337 = vsel %vm321, %v313, 0.0
    %v338 = vadd.f32 %v336, %v337
    %v339 = vsel %vm321, %v314, 0.0
    %v340 = vadd.f32 %v338, %v339
    %v341 = vsel %vm321, %v315, 0.0
    %v342 = vadd.f32 %v340, %v341
    %v343 = vsel %vm321, %v316, 0.0
    %v344 = vadd.f32 %v342, %v343
    %v345 = vsel %vm321, %v317, 0.0
    %v346 = vadd.f32 %v344, %v345
    %v347 = vsel %vm321, %v318, 0.0
    %v348 = vadd.f32 %v346, %v347
    %v349 = vsel %vm321, %v319, 0.0
    %v350 = vadd.f32 %v348, %v349
    %v351 = vsel %vm321, %v320, 0.0
    %v352 = vadd.f32 %v350, %v351
    %v353 = vrot.slane %v352, 4
    %v354 = vadd.f32 %v352, %v353
    %v355 = vrot.slane %v354, 2
    %v356 = vadd.f32 %v354, %v355
    %v357 = vrot.slane %v356, 1
    %v358 = vadd.f32 %v356, %v357
    %v359 = vmul.f32 %v358, 0.0078125
    %v360 = vmul.f32 %v305, %v305
    %v361 = vmul.f32 %v306, %v306
    %v362 = vmul.f32 %v307, %v307
    %v363 = vmul.f32 %v308, %v308
    %v364 = vmul.f32 %v309, %v309
    %v365 = vmul.f32 %v310, %v310
    %v366 = vmul.f32 %v311, %v311
    %v367 = vmul.f32 %v312, %v312
    %v368 = vmul.f32 %v313, %v313
    %v369 = vmul.f32 %v314, %v314
    %v370 = vmul.f32 %v315, %v315
    %v371 = vmul.f32 %v316, %v316
    %v372 = vmul.f32 %v317, %v317
    %v373 = vmul.f32 %v318, %v318
    %v374 = vmul.f32 %v319, %v319
    %v375 = vmul.f32 %v320, %v320
    %v376 = vsel %vm321, %v360, 0.0
    %v377 = vsel %vm321, %v361, 0.0
    %v378 = vadd.f32 %v376, %v377
    %v379 = vsel %vm321, %v362, 0.0
    %v380 = vadd.f32 %v378, %v379
    %v381 = vsel %vm321, %v363, 0.0
    %v382 = vadd.f32 %v380, %v381
    %v383 = vsel %vm321, %v364, 0.0
    %v384 = vadd.f32 %v382, %v383
    %v385 = vsel %vm321, %v365, 0.0
    %v386 = vadd.f32 %v384, %v385
    %v387 = vsel %vm321, %v366, 0.0
    %v388 = vadd.f32 %v386, %v387
    %v389 = vsel %vm321, %v367, 0.0
    %v390 = vadd.f32 %v388, %v389
    %v391 = vsel %vm321, %v368, 0.0
    %v392 = vadd.f32 %v390, %v391
    %v393 = vsel %vm321, %v369, 0.0
    %v394 = vadd.f32 %v392, %v393
    %v395 = vsel %vm321, %v370, 0.0
    %v396 = vadd.f32 %v394, %v395
    %v397 = vsel %vm321, %v371, 0.0
    %v398 = vadd.f32 %v396, %v397
    %v399 = vsel %vm321, %v372, 0.0
    %v400 = vadd.f32 %v398, %v399
    %v401 = vsel %vm321, %v373, 0.0
    %v402 = vadd.f32 %v400, %v401
    %v403 = vsel %vm321, %v374, 0.0
    %v404 = vadd.f32 %v402, %v403
    %v405 = vsel %vm321, %v375, 0.0
    %v406 = vadd.f32 %v404, %v405
    %v407 = vrot.slane %v406, 4
    %v408 = vadd.f32 %v406, %v407
    %v409 = vrot.slane %v408, 2
    %v410 = vadd.f32 %v408, %v409
    %v411 = vrot.slane %v410, 1
    %v412 = vadd.f32 %v410, %v411
    %v413 = vmul.f32 %v412, 0.0078125
    %v414 = vmul.f32 %v359, %v359
    %v415 = vsub.f32 %v413, %v414
    %v416 = vmax.f32 %v415, 0.0
    %v417 = vadd.f32 %v416, 1e-05
    %v418 = vrsqrt.pop %v417
    %v419 = vmul.f32 %v418, %v271
    %v420 = vsub.f32 %v305, %v359
    %v421 = vsub.f32 %v306, %v359
    %v422 = vsub.f32 %v307, %v359
    %v423 = vsub.f32 %v308, %v359
    %v424 = vsub.f32 %v309, %v359
    %v425 = vsub.f32 %v310, %v359
    %v426 = vsub.f32 %v311, %v359
    %v427 = vsub.f32 %v312, %v359
    %v428 = vsub.f32 %v313, %v359
    %v429 = vsub.f32 %v314, %v359
    %v430 = vsub.f32 %v315, %v359
    %v431 = vsub.f32 %v316, %v359
    %v432 = vsub.f32 %v317, %v359
    %v433 = vsub.f32 %v318, %v359
    %v434 = vsub.f32 %v319, %v359
    %v435 = vsub.f32 %v320, %v359
    %v436 = vlaneseq
    %v437 = vshrl.u32 %v436, 7
    %v438 = vsub.s32 0, %v437
    %v439 = vrot.slane %v419, %v438
    %v440 = vmul.f32 %v420, %v439
    %v441 = vmul.f32 %v421, %v439
    %v442 = vmul.f32 %v422, %v439
    %v443 = vmul.f32 %v423, %v439
    %v444 = vmul.f32 %v424, %v439
    %v445 = vmul.f32 %v425, %v439
    %v446 = vmul.f32 %v426, %v439
    %v447 = vmul.f32 %v427, %v439
    %v448 = vmul.f32 %v428, %v439
    %v449 = vmul.f32 %v429, %v439
    %v450 = vmul.f32 %v430, %v439
    %v451 = vmul.f32 %v431, %v439
    %v452 = vmul.f32 %v432, %v439
    %v453 = vmul.f32 %v433, %v439
    %v454 = vmul.f32 %v434, %v439
    %v455 = vmul.f32 %v435, %v439
    %v457 = vlaneseq
    %v458 = vshrl.u32 %v457, 7
    %v459 = vsub.s32 0, %v458
    %v460 = vrot.slane %v272, %v459
    %v462 = vadd.f32 %v440, %v460
    %v463 = vadd.f32 %v441, %v460
    %v464 = vadd.f32 %v442, %v460
    %v465 = vadd.f32 %v443, %v460
    %v466 = vadd.f32 %v444, %v460
    %v467 = vadd.f32 %v445, %v460
    %v468 = vadd.f32 %v446, %v460
    %v469 = vadd.f32 %v447, %v460
    %v470 = vadd.f32 %v448, %v460
    %v471 = vadd.f32 %v449, %v460
    %v472 = vadd.f32 %v450, %v460
    %v473 = vadd.f32 %v451, %v460
    %v474 = vadd.f32 %v452, %v460
    %v475 = vadd.f32 %v453, %v460
    %v476 = vadd.f32 %v454, %v460
    %v477 = vadd.f32 %v455, %v460
    %v478 = vld [vmem:[%s5] sm:$0xf]
    %v479 = vld [vmem:[%s5 + $0x4] sm:$0xf]
    %v480 = vld [vmem:[%s5 + $0x8] sm:$0xf]
    %v481 = vld [vmem:[%s5 + $0xc] sm:$0xf]
    %v482 = vld [vmem:[%s5 + $0x10] sm:$0xf]
    %v483 = vld [vmem:[%s5 + $0x14] sm:$0xf]
    %v484 = vld [vmem:[%s5 + $0x18] sm:$0xf]
    %v485 = vld [vmem:[%s5 + $0x1c] sm:$0xf]
    %v486 = vld [vmem:[%s5 + $0x20] sm:$0xf]
    %v487 = vld [vmem:[%s5 + $0x24] sm:$0xf]
    %v488 = vld [vmem:[%s5 + $0x28] sm:$0xf]
    %v489 = vld [vmem:[%s5 + $0x2c] sm:$0xf]
    %v490 = vld [vmem:[%s5 + $0x30] sm:$0xf]
    %v491 = vld [vmem:[%s5 + $0x34] sm:$0xf]
    %v492 = vld [vmem:[%s5 + $0x38] sm:$0xf]
    %v493 = vld [vmem:[%s5 + $0x3c] sm:$0xf]
    %v494 = vld [vmem:[%s5 + $0x40] sm:$0xf]
    %v495 = vld [vmem:[%s5 + $0x44] sm:$0xf]
    %v496 = vld [vmem:[%s5 + $0x48] sm:$0xf]
    %v497 = vld [vmem:[%s5 + $0x4c] sm:$0xf]
    %v498 = vld [vmem:[%s5 + $0x50] sm:$0xf]
    %v499 = vld [vmem:[%s5 + $0x54] sm:$0xf]
    %v500 = vld [vmem:[%s5 + $0x58] sm:$0xf]
    %v501 = vld [vmem:[%s5 + $0x5c] sm:$0xf]
    %v502 = vld [vmem:[%s5 + $0x60] sm:$0xf]
    %v503 = vld [vmem:[%s5 + $0x64] sm:$0xf]
    %v504 = vld [vmem:[%s5 + $0x68] sm:$0xf]
    %v505 = vld [vmem:[%s5 + $0x6c] sm:$0xf]
    %v506 = vld [vmem:[%s5 + $0x70] sm:$0xf]
    %v507 = vld [vmem:[%s5 + $0x74] sm:$0xf]
    %v508 = vld [vmem:[%s5 + $0x78] sm:$0xf]
    %v509 = vld [vmem:[%s5 + $0x7c] sm:$0xf]
    %v510 = vld [vmem:[%s6] sm:$0xf]
    %v511 = vld [vmem:[%s6 + $0x4] sm:$0xf]
    %v512 = vld [vmem:[%s6 + $0x8] sm:$0xf]
    %v513 = vld [vmem:[%s6 + $0xc] sm:$0xf]
    %v514 = vld [vmem:[%s6 + $0x10] sm:$0xf]
    %v515 = vld [vmem:[%s6 + $0x14] sm:$0xf]
    %v516 = vld [vmem:[%s6 + $0x18] sm:$0xf]
    %v517 = vld [vmem:[%s6 + $0x1c] sm:$0xf]
    %v518 = vld [vmem:[%s6 + $0x20] sm:$0xf]
    %v519 = vld [vmem:[%s6 + $0x24] sm:$0xf]
    %v520 = vld [vmem:[%s6 + $0x28] sm:$0xf]
    %v521 = vld [vmem:[%s6 + $0x2c] sm:$0xf]
    %v522 = vld [vmem:[%s6 + $0x30] sm:$0xf]
    %v523 = vld [vmem:[%s6 + $0x34] sm:$0xf]
    %v524 = vld [vmem:[%s6 + $0x38] sm:$0xf]
    %v525 = vld [vmem:[%s6 + $0x3c] sm:$0xf]
    %v526 = vld [vmem:[%s6 + $0x40] sm:$0xf]
    %v527 = vld [vmem:[%s6 + $0x44] sm:$0xf]
    %v528 = vld [vmem:[%s6 + $0x48] sm:$0xf]
    %v529 = vld [vmem:[%s6 + $0x4c] sm:$0xf]
    %v530 = vld [vmem:[%s6 + $0x50] sm:$0xf]
    %v531 = vld [vmem:[%s6 + $0x54] sm:$0xf]
    %v532 = vld [vmem:[%s6 + $0x58] sm:$0xf]
    %v533 = vld [vmem:[%s6 + $0x5c] sm:$0xf]
    %v534 = vld [vmem:[%s6 + $0x60] sm:$0xf]
    %v535 = vld [vmem:[%s6 + $0x64] sm:$0xf]
    %v536 = vld [vmem:[%s6 + $0x68] sm:$0xf]
    %v537 = vld [vmem:[%s6 + $0x6c] sm:$0xf]
    %v538 = vld [vmem:[%s6 + $0x70] sm:$0xf]
    %v539 = vld [vmem:[%s6 + $0x74] sm:$0xf]
    %v540 = vld [vmem:[%s6 + $0x78] sm:$0xf]
    %v541 = vld [vmem:[%s6 + $0x7c] sm:$0xf]
    %v542 = vld [vmem:[%s6 + $0x80] sm:$0xf]
    %v543 = vld [vmem:[%s6 + $0x84] sm:$0xf]
    %v544 = vld [vmem:[%s6 + $0x88] sm:$0xf]
    %v545 = vld [vmem:[%s6 + $0x8c] sm:$0xf]
    %v546 = vld [vmem:[%s6 + $0x90] sm:$0xf]
    %v547 = vld [vmem:[%s6 + $0x94] sm:$0xf]
    %v548 = vld [vmem:[%s6 + $0x98] sm:$0xf]
    %v549 = vld [vmem:[%s6 + $0x9c] sm:$0xf]
    %v550 = vld [vmem:[%s6 + $0xa0] sm:$0xf]
    %v551 = vld [vmem:[%s6 + $0xa4] sm:$0xf]
    %v552 = vld [vmem:[%s6 + $0xa8] sm:$0xf]
    %v553 = vld [vmem:[%s6 + $0xac] sm:$0xf]
    %v554 = vld [vmem:[%s6 + $0xb0] sm:$0xf]
    %v555 = vld [vmem:[%s6 + $0xb4] sm:$0xf]
    %v556 = vld [vmem:[%s6 + $0xb8] sm:$0xf]
    %v557 = vld [vmem:[%s6 + $0xbc] sm:$0xf]
    %v558 = vld [vmem:[%s6 + $0xc0] sm:$0xf]
    %v559 = vld [vmem:[%s6 + $0xc4] sm:$0xf]
    %v560 = vld [vmem:[%s6 + $0xc8] sm:$0xf]
    %v561 = vld [vmem:[%s6 + $0xcc] sm:$0xf]
    %v562 = vld [vmem:[%s6 + $0xd0] sm:$0xf]
    %v563 = vld [vmem:[%s6 + $0xd4] sm:$0xf]
    %v564 = vld [vmem:[%s6 + $0xd8] sm:$0xf]
    %v565 = vld [vmem:[%s6 + $0xdc] sm:$0xf]
    %v566 = vld [vmem:[%s6 + $0xe0] sm:$0xf]
    %v567 = vld [vmem:[%s6 + $0xe4] sm:$0xf]
    %v568 = vld [vmem:[%s6 + $0xe8] sm:$0xf]
    %v569 = vld [vmem:[%s6 + $0xec] sm:$0xf]
    %v570 = vld [vmem:[%s6 + $0xf0] sm:$0xf]
    %v571 = vld [vmem:[%s6 + $0xf4] sm:$0xf]
    %v572 = vld [vmem:[%s6 + $0xf8] sm:$0xf]
    %v573 = vld [vmem:[%s6 + $0xfc] sm:$0xf]
    %v574 = vpack.c.bf16 %v463, %v462
    %v575 = vpack.c.bf16 %v465, %v464
    %v576 = vpack.c.bf16 %v467, %v466
    %v577 = vpack.c.bf16 %v469, %v468
    %v610 = vunpack.c.l.b16 %v478
    %v611 = vunpack.c.l.b16 %v479
    %v612 = vunpack.c.l.b16 %v480
    %v613 = vunpack.c.l.b16 %v481
    %v614 = vunpack.c.l.b16 %v482
    %v615 = vunpack.c.l.b16 %v483
    %v616 = vunpack.c.l.b16 %v484
    %v617 = vunpack.c.l.b16 %v485
    %v618 = vunpack.c.l.b16 %v486
    %v619 = vunpack.c.l.b16 %v487
    %v620 = vunpack.c.l.b16 %v488
    %v621 = vunpack.c.l.b16 %v489
    %v622 = vunpack.c.l.b16 %v490
    %v623 = vunpack.c.l.b16 %v491
    %v624 = vunpack.c.l.b16 %v492
    %v625 = vunpack.c.l.b16 %v493
    %v626 = vunpack.c.l.b16 %v494
    %v627 = vunpack.c.l.b16 %v495
    %v628 = vunpack.c.l.b16 %v496
    %v629 = vunpack.c.l.b16 %v497
    %v630 = vunpack.c.l.b16 %v498
    %v631 = vunpack.c.l.b16 %v499
    %v632 = vunpack.c.l.b16 %v500
    %v633 = vunpack.c.l.b16 %v501
    %v634 = vunpack.c.l.b16 %v502
    %v635 = vunpack.c.l.b16 %v503
    %v636 = vunpack.c.l.b16 %v504
    %v637 = vunpack.c.l.b16 %v505
    %v638 = vunpack.c.l.b16 %v506
    %v639 = vunpack.c.l.b16 %v507
    %v640 = vunpack.c.l.b16 %v508
    %v641 = vunpack.c.l.b16 %v509
    %v642 = vpack.c.b16 %v611, %v610
    %v643 = vpack.c.b16 %v613, %v612
    %v644 = vpack.c.b16 %v615, %v614
    %v645 = vpack.c.b16 %v617, %v616
    %v646 = vpack.c.b16 %v619, %v618
    %v647 = vpack.c.b16 %v621, %v620
    %v648 = vpack.c.b16 %v623, %v622
    %v649 = vpack.c.b16 %v625, %v624
    %v650 = vpack.c.b16 %v627, %v626
    %v651 = vpack.c.b16 %v629, %v628
    %v652 = vpack.c.b16 %v631, %v630
    %v653 = vpack.c.b16 %v633, %v632
    %v654 = vpack.c.b16 %v635, %v634
    %v655 = vpack.c.b16 %v637, %v636
    %v656 = vpack.c.b16 %v639, %v638
    %v657 = vpack.c.b16 %v641, %v640
    %vm658 = vcmask 523264
    %v660 = vsel %vm658, %v642, 0
    %v663 = vsel %vm658, %v643, 0
    %v666 = vsel %vm658, %v644, 0
    %v669 = vsel %vm658, %v645, 0
    %v672 = vsel %vm658, %v646, 0
    %v675 = vsel %vm658, %v647, 0
    %v678 = vsel %vm658, %v648, 0
    %v681 = vsel %vm658, %v649, 0
    %v684 = vsel %vm658, %v650, 0
    %v687 = vsel %vm658, %v651, 0
    %v690 = vsel %vm658, %v652, 0
    %v693 = vsel %vm658, %v653, 0
    %v696 = vsel %vm658, %v654, 0
    %v699 = vsel %vm658, %v655, 0
    %v702 = vsel %vm658, %v656, 0
    %v705 = vsel %vm658, %v657, 0
    %707 = vmatprep.subr.bf16.mxu0 0
    %708 = vmatpush1.bf16.msra.mxu0 %v574
    %709 = vmatprep.subr.bf16.mxu0 0
    %710 = vmatpush1.bf16.msra.mxu0 %v575
    %711 = vmatprep.subr.bf16.mxu0 0
    %712 = vmatpush1.bf16.msra.mxu0 %v576
    %713 = vmatprep.subr.bf16.mxu0 0
    %714 = vmatpush1.bf16.msra.mxu0 %v577
    %715 = vmatprep.subr.bf16.mxu0 0
    %716 = vmatpush1.bf16.msra.mxu0 0
    %717 = vmatprep.subr.bf16.mxu0 0
    %718 = vmatpush1.bf16.msra.mxu0 0
    %719 = vmatprep.subr.bf16.mxu0 0
    %720 = vmatpush1.bf16.msra.mxu0 0
    %721 = vmatprep.subr.bf16.mxu0 0
    %722 = vmatpush1.bf16.msra.mxu0 0
    %723 = vmatprep.subr.bf16.mxu0 0
    %724 = vmatpush1.bf16.msra.mxu0 0
    %725 = vmatprep.subr.bf16.mxu0 0
    %726 = vmatpush1.bf16.msra.mxu0 0
    %727 = vmatprep.subr.bf16.mxu0 0
    %728 = vmatpush1.bf16.msra.mxu0 0
    %729 = vmatprep.subr.bf16.mxu0 0
    %730 = vmatpush1.bf16.msra.mxu0 0
    %731 = vmatprep.subr.bf16.mxu0 0
    %732 = vmatpush1.bf16.msra.mxu0 0
    %733 = vmatprep.subr.bf16.mxu0 0
    %734 = vmatpush1.bf16.msra.mxu0 0
    %735 = vmatprep.subr.bf16.mxu0 0
    %736 = vmatpush1.bf16.msra.mxu0 0
    %737 = vmatprep.subr.bf16.mxu0 0
    %738 = vmatpush1.bf16.msra.mxu0 0
    %739 = vmatprep.mubr.bf16.mxu0 0
    %740 = vmatmul.mubr.bf16.gmra.mrb[0].mxu0 %v660
    %v741 = vpop.f32.mrb[0].mxu0
    %v742 = vadd.f32 0.0, %v741
    %v743 = vpop.f32.mrb[0].mxu0
    %v744 = vpop.f32.mrb[0].mxu0
    %v745 = vadd.f32 0.0, %v744
    %v746 = vpop.f32.mrb[0].mxu0
    %747 = vmatprep.mubr.bf16.mxu0 0
    %748 = vmatmul.mubr.bf16.gmra.mrb[0].mxu0 %v663
    %v749 = vpop.f32.mrb[0].mxu0
    %v750 = vadd.f32 0.0, %v749
    %v751 = vpop.f32.mrb[0].mxu0
    %v752 = vpop.f32.mrb[0].mxu0
    %v753 = vadd.f32 0.0, %v752
    %v754 = vpop.f32.mrb[0].mxu0
    %755 = vmatprep.mubr.bf16.mxu0 0
    %756 = vmatmul.mubr.bf16.gmra.mrb[0].mxu0 %v666
    %v757 = vpop.f32.mrb[0].mxu0
    %v758 = vadd.f32 0.0, %v757
    %v759 = vpop.f32.mrb[0].mxu0
    %v760 = vpop.f32.mrb[0].mxu0
    %v761 = vadd.f32 0.0, %v760
    %v762 = vpop.f32.mrb[0].mxu0
    %763 = vmatprep.mubr.bf16.mxu0 0
    %764 = vmatmul.mubr.bf16.gmra.mrb[0].mxu0 %v669
    %v765 = vpop.f32.mrb[0].mxu0
    %v766 = vadd.f32 0.0, %v765
    %v767 = vpop.f32.mrb[0].mxu0
    %v768 = vpop.f32.mrb[0].mxu0
    %v769 = vadd.f32 0.0, %v768
    %v770 = vpop.f32.mrb[0].mxu0
    %771 = vmatprep.mubr.bf16.mxu0 0
    %772 = vmatmul.mubr.bf16.gmra.mrb[0].mxu0 %v672
    %v773 = vpop.f32.mrb[0].mxu0
    %v774 = vadd.f32 0.0, %v773
    %v775 = vpop.f32.mrb[0].mxu0
    %v776 = vpop.f32.mrb[0].mxu0
    %v777 = vadd.f32 0.0, %v776
    %v778 = vpop.f32.mrb[0].mxu0
    %779 = vmatprep.mubr.bf16.mxu0 0
    %780 = vmatmul.mubr.bf16.gmra.mrb[0].mxu0 %v675
    %v781 = vpop.f32.mrb[0].mxu0
    %v782 = vadd.f32 0.0, %v781
    %v783 = vpop.f32.mrb[0].mxu0
    %v784 = vpop.f32.mrb[0].mxu0
    %v785 = vadd.f32 0.0, %v784
    %v786 = vpop.f32.mrb[0].mxu0
    %787 = vmatprep.mubr.bf16.mxu0 0
    %788 = vmatmul.mubr.bf16.gmra.mrb[0].mxu0 %v678
    %v789 = vpop.f32.mrb[0].mxu0
    %v790 = vadd.f32 0.0, %v789
    %v791 = vpop.f32.mrb[0].mxu0
    %v792 = vpop.f32.mrb[0].mxu0
    %v793 = vadd.f32 0.0, %v792
    %v794 = vpop.f32.mrb[0].mxu0
    %795 = vmatprep.mubr.bf16.mxu0 0
    %796 = vmatmul.mubr.bf16.gmra.mrb[0].mxu0 %v681
    %v797 = vpop.f32.mrb[0].mxu0
    %v798 = vadd.f32 0.0, %v797
    %v799 = vpop.f32.mrb[0].mxu0
    %v800 = vpop.f32.mrb[0].mxu0
    %v801 = vadd.f32 0.0, %v800
    %v802 = vpop.f32.mrb[0].mxu0
    %803 = vmatprep.mubr.bf16.mxu0 0
    %804 = vmatmul.mubr.bf16.gmra.mrb[0].mxu0 %v684
    %v805 = vpop.f32.mrb[0].mxu0
    %v806 = vadd.f32 0.0, %v805
    %v807 = vpop.f32.mrb[0].mxu0
    %v808 = vpop.f32.mrb[0].mxu0
    %v809 = vadd.f32 0.0, %v808
    %v810 = vpop.f32.mrb[0].mxu0
    %811 = vmatprep.mubr.bf16.mxu0 0
    %812 = vmatmul.mubr.bf16.gmra.mrb[0].mxu0 %v687
    %v813 = vpop.f32.mrb[0].mxu0
    %v814 = vadd.f32 0.0, %v813
    %v815 = vpop.f32.mrb[0].mxu0
    %v816 = vpop.f32.mrb[0].mxu0
    %v817 = vadd.f32 0.0, %v816
    %v818 = vpop.f32.mrb[0].mxu0
    %819 = vmatprep.mubr.bf16.mxu0 0
    %820 = vmatmul.mubr.bf16.gmra.mrb[0].mxu0 %v690
    %v821 = vpop.f32.mrb[0].mxu0
    %v822 = vadd.f32 0.0, %v821
    %v823 = vpop.f32.mrb[0].mxu0
    %v824 = vpop.f32.mrb[0].mxu0
    %v825 = vadd.f32 0.0, %v824
    %v826 = vpop.f32.mrb[0].mxu0
    %827 = vmatprep.mubr.bf16.mxu0 0
    %828 = vmatmul.mubr.bf16.gmra.mrb[0].mxu0 %v693
    %v829 = vpop.f32.mrb[0].mxu0
    %v830 = vadd.f32 0.0, %v829
    %v831 = vpop.f32.mrb[0].mxu0
    %v832 = vpop.f32.mrb[0].mxu0
    %v833 = vadd.f32 0.0, %v832
    %v834 = vpop.f32.mrb[0].mxu0
    %835 = vmatprep.mubr.bf16.mxu0 0
    %836 = vmatmul.mubr.bf16.gmra.mrb[0].mxu0 %v696
    %v837 = vpop.f32.mrb[0].mxu0
    %v838 = vadd.f32 0.0, %v837
    %v839 = vpop.f32.mrb[0].mxu0
    %v840 = vpop.f32.mrb[0].mxu0
    %v841 = vadd.f32 0.0, %v840
    %v842 = vpop.f32.mrb[0].mxu0
    %843 = vmatprep.mubr.bf16.mxu0 0
    %844 = vmatmul.mubr.bf16.gmra.mrb[0].mxu0 %v699
    %v845 = vpop.f32.mrb[0].mxu0
    %v846 = vadd.f32 0.0, %v845
    %v847 = vpop.f32.mrb[0].mxu0
    %v848 = vpop.f32.mrb[0].mxu0
    %v849 = vadd.f32 0.0, %v848
    %v850 = vpop.f32.mrb[0].mxu0
    %851 = vmatprep.mubr.bf16.mxu0 0
    %852 = vmatmul.mubr.bf16.gmra.mrb[0].mxu0 %v702
    %v853 = vpop.f32.mrb[0].mxu0
    %v854 = vadd.f32 0.0, %v853
    %v855 = vpop.f32.mrb[0].mxu0
    %v856 = vpop.f32.mrb[0].mxu0
    %v857 = vadd.f32 0.0, %v856
    %v858 = vpop.f32.mrb[0].mxu0
    %859 = vmatprep.mubr.bf16.mxu0 0
    %860 = vmatmul.mubr.bf16.gmra.mrb[0].mxu0 %v705
    %v861 = vpop.f32.mrb[0].mxu0
    %v862 = vadd.f32 0.0, %v861
    %v863 = vpop.f32.mrb[0].mxu0
    %v864 = vpop.f32.mrb[0].mxu0
    %v865 = vadd.f32 0.0, %v864
    %v866 = vpop.f32.mrb[0].mxu0
    %867 = vdwg.mxu0
    %870 = vrot.lane.b32.xlu0 %v750, 32
    %v871 = vpop.permute.xlu0 %870
    %872 = vrot.lane.b32.xlu0 %v753, 32
    %v873 = vpop.permute.xlu0 %872
    %878 = vrot.lane.b32.xlu0 %v758, 64
    %v879 = vpop.permute.xlu0 %878
    %880 = vrot.lane.b32.xlu0 %v761, 64
    %v881 = vpop.permute.xlu0 %880
    %886 = vrot.lane.b32.xlu0 %v766, 96
    %v887 = vpop.permute.xlu0 %886
    %888 = vrot.lane.b32.xlu0 %v769, 96
    %v889 = vpop.permute.xlu0 %888
    %894 = vrot.lane.b32.xlu0 %v782, 32
    %v895 = vpop.permute.xlu0 %894
    %896 = vrot.lane.b32.xlu0 %v785, 32
    %v897 = vpop.permute.xlu0 %896
    %902 = vrot.lane.b32.xlu0 %v790, 64
    %v903 = vpop.permute.xlu0 %902
    %904 = vrot.lane.b32.xlu0 %v793, 64
    %v905 = vpop.permute.xlu0 %904
    %910 = vrot.lane.b32.xlu0 %v798, 96
    %v911 = vpop.permute.xlu0 %910
    %912 = vrot.lane.b32.xlu0 %v801, 96
    %v913 = vpop.permute.xlu0 %912
    %918 = vrot.lane.b32.xlu0 %v814, 32
    %v919 = vpop.permute.xlu0 %918
    %920 = vrot.lane.b32.xlu0 %v817, 32
    %v921 = vpop.permute.xlu0 %920
    %926 = vrot.lane.b32.xlu0 %v822, 64
    %v927 = vpop.permute.xlu0 %926
    %928 = vrot.lane.b32.xlu0 %v825, 64
    %v929 = vpop.permute.xlu0 %928
    %934 = vrot.lane.b32.xlu0 %v830, 96
    %v935 = vpop.permute.xlu0 %934
    %936 = vrot.lane.b32.xlu0 %v833, 96
    %v937 = vpop.permute.xlu0 %936
    %942 = vrot.lane.b32.xlu0 %v846, 32
    %v943 = vpop.permute.xlu0 %942
    %944 = vrot.lane.b32.xlu0 %v849, 32
    %v945 = vpop.permute.xlu0 %944
    %950 = vrot.lane.b32.xlu0 %v854, 64
    %v951 = vpop.permute.xlu0 %950
    %952 = vrot.lane.b32.xlu0 %v857, 64
    %v953 = vpop.permute.xlu0 %952
    %958 = vrot.lane.b32.xlu0 %v862, 96
    %v959 = vpop.permute.xlu0 %958
    %960 = vrot.lane.b32.xlu0 %v865, 96
    %v961 = vpop.permute.xlu0 %960
    %v964 = vsel %vm321, %v742, %v871
    %v965 = vsel %vm321, %v745, %v873
    %v966 = vsel %vm658, %v964, %v879
    %v967 = vsel %vm658, %v965, %v881
    %vm968 = vcmask 785408
    %v969 = vsel %vm968, %v966, %v887
    %v970 = vsel %vm968, %v967, %v889
    %v971 = vsel %vm321, %v774, %v895
    %v972 = vsel %vm321, %v777, %v897
    %v973 = vsel %vm658, %v971, %v903
    %v974 = vsel %vm658, %v972, %v905
    %v975 = vsel %vm968, %v973, %v911
    %v976 = vsel %vm968, %v974, %v913
    %v977 = vsel %vm321, %v806, %v919
    %v978 = vsel %vm321, %v809, %v921
    %v979 = vsel %vm658, %v977, %v927
    %v980 = vsel %vm658, %v978, %v929
    %v981 = vsel %vm968, %v979, %v935
    %v982 = vsel %vm968, %v980, %v937
    %v983 = vsel %vm321, %v838, %v943
    %v984 = vsel %vm321, %v841, %v945
    %v985 = vsel %vm658, %v983, %v951
    %v986 = vsel %vm658, %v984, %v953
    %v987 = vsel %vm968, %v985, %v959
    %v988 = vsel %vm968, %v986, %v961
    %v989 = vpack.c.bf16 %v970, %v969
    %v990 = vpack.c.bf16 %v976, %v975
    %v991 = vpack.c.bf16 %v982, %v981
    %v992 = vpack.c.bf16 %v988, %v987
    %v1057 = vunpack.c.l.b16 %v510
    %v1058 = vunpack.c.l.b16 %v511
    %v1059 = vunpack.c.l.b16 %v512
    %v1060 = vunpack.c.l.b16 %v513
    %v1061 = vunpack.c.l.b16 %v514
    %v1062 = vunpack.c.l.b16 %v515
    %v1063 = vunpack.c.l.b16 %v516
    %v1064 = vunpack.c.l.b16 %v517
    %v1065 = vunpack.c.l.b16 %v518
    %v1066 = vunpack.c.l.b16 %v519
    %v1067 = vunpack.c.l.b16 %v520
    %v1068 = vunpack.c.l.b16 %v521
    %v1069 = vunpack.c.l.b16 %v522
    %v1070 = vunpack.c.l.b16 %v523
    %v1071 = vunpack.c.l.b16 %v524
    %v1072 = vunpack.c.l.b16 %v525
    %v1073 = vunpack.c.l.b16 %v526
    %v1074 = vunpack.c.l.b16 %v527
    %v1075 = vunpack.c.l.b16 %v528
    %v1076 = vunpack.c.l.b16 %v529
    %v1077 = vunpack.c.l.b16 %v530
    %v1078 = vunpack.c.l.b16 %v531
    %v1079 = vunpack.c.l.b16 %v532
    %v1080 = vunpack.c.l.b16 %v533
    %v1081 = vunpack.c.l.b16 %v534
    %v1082 = vunpack.c.l.b16 %v535
    %v1083 = vunpack.c.l.b16 %v536
    %v1084 = vunpack.c.l.b16 %v537
    %v1085 = vunpack.c.l.b16 %v538
    %v1086 = vunpack.c.l.b16 %v539
    %v1087 = vunpack.c.l.b16 %v540
    %v1088 = vunpack.c.l.b16 %v541
    %v1089 = vunpack.c.l.b16 %v542
    %v1090 = vunpack.c.l.b16 %v543
    %v1091 = vunpack.c.l.b16 %v544
    %v1092 = vunpack.c.l.b16 %v545
    %v1093 = vunpack.c.l.b16 %v546
    %v1094 = vunpack.c.l.b16 %v547
    %v1095 = vunpack.c.l.b16 %v548
    %v1096 = vunpack.c.l.b16 %v549
    %v1097 = vunpack.c.l.b16 %v550
    %v1098 = vunpack.c.l.b16 %v551
    %v1099 = vunpack.c.l.b16 %v552
    %v1100 = vunpack.c.l.b16 %v553
    %v1101 = vunpack.c.l.b16 %v554
    %v1102 = vunpack.c.l.b16 %v555
    %v1103 = vunpack.c.l.b16 %v556
    %v1104 = vunpack.c.l.b16 %v557
    %v1105 = vunpack.c.l.b16 %v558
    %v1106 = vunpack.c.l.b16 %v559
    %v1107 = vunpack.c.l.b16 %v560
    %v1108 = vunpack.c.l.b16 %v561
    %v1109 = vunpack.c.l.b16 %v562
    %v1110 = vunpack.c.l.b16 %v563
    %v1111 = vunpack.c.l.b16 %v564
    %v1112 = vunpack.c.l.b16 %v565
    %v1113 = vunpack.c.l.b16 %v566
    %v1114 = vunpack.c.l.b16 %v567
    %v1115 = vunpack.c.l.b16 %v568
    %v1116 = vunpack.c.l.b16 %v569
    %v1117 = vunpack.c.l.b16 %v570
    %v1118 = vunpack.c.l.b16 %v571
    %v1119 = vunpack.c.l.b16 %v572
    %v1120 = vunpack.c.l.b16 %v573
    %v1121 = vpack.c.b16 %v1058, %v1057
    %v1122 = vpack.c.b16 %v1060, %v1059
    %v1123 = vpack.c.b16 %v1062, %v1061
    %v1124 = vpack.c.b16 %v1064, %v1063
    %v1125 = vpack.c.b16 %v1066, %v1065
    %v1126 = vpack.c.b16 %v1068, %v1067
    %v1127 = vpack.c.b16 %v1070, %v1069
    %v1128 = vpack.c.b16 %v1072, %v1071
    %v1129 = vpack.c.b16 %v1074, %v1073
    %v1130 = vpack.c.b16 %v1076, %v1075
    %v1131 = vpack.c.b16 %v1078, %v1077
    %v1132 = vpack.c.b16 %v1080, %v1079
    %v1133 = vpack.c.b16 %v1082, %v1081
    %v1134 = vpack.c.b16 %v1084, %v1083
    %v1135 = vpack.c.b16 %v1086, %v1085
    %v1136 = vpack.c.b16 %v1088, %v1087
    %v1137 = vpack.c.b16 %v1090, %v1089
    %v1138 = vpack.c.b16 %v1092, %v1091
    %v1139 = vpack.c.b16 %v1094, %v1093
    %v1140 = vpack.c.b16 %v1096, %v1095
    %v1141 = vpack.c.b16 %v1098, %v1097
    %v1142 = vpack.c.b16 %v1100, %v1099
    %v1143 = vpack.c.b16 %v1102, %v1101
    %v1144 = vpack.c.b16 %v1104, %v1103
    %v1145 = vpack.c.b16 %v1106, %v1105
    %v1146 = vpack.c.b16 %v1108, %v1107
    %v1147 = vpack.c.b16 %v1110, %v1109
    %v1148 = vpack.c.b16 %v1112, %v1111
    %v1149 = vpack.c.b16 %v1114, %v1113
    %v1150 = vpack.c.b16 %v1116, %v1115
    %v1151 = vpack.c.b16 %v1118, %v1117
    %v1152 = vpack.c.b16 %v1120, %v1119
    %1185 = vmatprep.subr.bf16.mxu0 0
    %1186 = vmatpush1.bf16.msra.mxu0 %v1121
    %1187 = vmatprep.subr.bf16.mxu0 0
    %1188 = vmatpush1.bf16.msra.mxu0 %v1122
    %1189 = vmatprep.subr.bf16.mxu0 0
    %1190 = vmatpush1.bf16.msra.mxu0 %v1123
    %1191 = vmatprep.subr.bf16.mxu0 0
    %1192 = vmatpush1.bf16.msra.mxu0 %v1124
    %1193 = vmatprep.subr.bf16.mxu0 0
    %1194 = vmatpush1.bf16.msra.mxu0 %v1125
    %1195 = vmatprep.subr.bf16.mxu0 0
    %1196 = vmatpush1.bf16.msra.mxu0 %v1126
    %1197 = vmatprep.subr.bf16.mxu0 0
    %1198 = vmatpush1.bf16.msra.mxu0 %v1127
    %1199 = vmatprep.subr.bf16.mxu0 0
    %1200 = vmatpush1.bf16.msra.mxu0 %v1128
    %1201 = vmatprep.subr.bf16.mxu0 0
    %1202 = vmatpush1.bf16.msra.mxu0 %v1129
    %1203 = vmatprep.subr.bf16.mxu0 0
    %1204 = vmatpush1.bf16.msra.mxu0 %v1130
    %1205 = vmatprep.subr.bf16.mxu0 0
    %1206 = vmatpush1.bf16.msra.mxu0 %v1131
    %1207 = vmatprep.subr.bf16.mxu0 0
    %1208 = vmatpush1.bf16.msra.mxu0 %v1132
    %1209 = vmatprep.subr.bf16.mxu0 0
    %1210 = vmatpush1.bf16.msra.mxu0 %v1133
    %1211 = vmatprep.subr.bf16.mxu0 0
    %1212 = vmatpush1.bf16.msra.mxu0 %v1134
    %1213 = vmatprep.subr.bf16.mxu0 0
    %1214 = vmatpush1.bf16.msra.mxu0 %v1135
    %1215 = vmatprep.subr.bf16.mxu0 0
    %1216 = vmatpush1.bf16.msra.mxu0 %v1136
    %1217 = vmatprep.mubr.bf16.mxu0 %v990
    %1218 = vmatmul.mubr.bf16.gmra.mrb[0].mxu0 %v989
    %v1219 = vpop.f32.mrb[0].mxu0
    %v1220 = vadd.f32 0.0, %v1219
    %v1221 = vpop.f32.mrb[0].mxu0
    %v1222 = vpop.f32.mrb[0].mxu0
    %v1223 = vadd.f32 0.0, %v1222
    %v1224 = vpop.f32.mrb[0].mxu0
    %1225 = vdwg.mxu0
    %1226 = vmatprep.subr.bf16.mxu0 0
    %1227 = vmatpush1.bf16.msra.mxu0 %v1137
    %1228 = vmatprep.subr.bf16.mxu0 0
    %1229 = vmatpush1.bf16.msra.mxu0 %v1138
    %1230 = vmatprep.subr.bf16.mxu0 0
    %1231 = vmatpush1.bf16.msra.mxu0 %v1139
    %1232 = vmatprep.subr.bf16.mxu0 0
    %1233 = vmatpush1.bf16.msra.mxu0 %v1140
    %1234 = vmatprep.subr.bf16.mxu0 0
    %1235 = vmatpush1.bf16.msra.mxu0 %v1141
    %1236 = vmatprep.subr.bf16.mxu0 0
    %1237 = vmatpush1.bf16.msra.mxu0 %v1142
    %1238 = vmatprep.subr.bf16.mxu0 0
    %1239 = vmatpush1.bf16.msra.mxu0 %v1143
    %1240 = vmatprep.subr.bf16.mxu0 0
    %1241 = vmatpush1.bf16.msra.mxu0 %v1144
    %1242 = vmatprep.subr.bf16.mxu0 0
    %1243 = vmatpush1.bf16.msra.mxu0 %v1145
    %1244 = vmatprep.subr.bf16.mxu0 0
    %1245 = vmatpush1.bf16.msra.mxu0 %v1146
    %1246 = vmatprep.subr.bf16.mxu0 0
    %1247 = vmatpush1.bf16.msra.mxu0 %v1147
    %1248 = vmatprep.subr.bf16.mxu0 0
    %1249 = vmatpush1.bf16.msra.mxu0 %v1148
    %1250 = vmatprep.subr.bf16.mxu0 0
    %1251 = vmatpush1.bf16.msra.mxu0 %v1149
    %1252 = vmatprep.subr.bf16.mxu0 0
    %1253 = vmatpush1.bf16.msra.mxu0 %v1150
    %1254 = vmatprep.subr.bf16.mxu0 0
    %1255 = vmatpush1.bf16.msra.mxu0 %v1151
    %1256 = vmatprep.subr.bf16.mxu0 0
    %1257 = vmatpush1.bf16.msra.mxu0 %v1152
    %1258 = vmatprep.mubr.bf16.mxu0 %v992
    %1259 = vmatmul.mubr.bf16.gmra.mrb[0].mxu0 %v991
    %v1260 = vpop.f32.mrb[0].mxu0
    %v1261 = vadd.f32 %v1220, %v1260
    %v1262 = vpop.f32.mrb[0].mxu0
    %v1263 = vpop.f32.mrb[0].mxu0
    %v1264 = vadd.f32 %v1223, %v1263
    %v1265 = vpop.f32.mrb[0].mxu0
    %1266 = vdwg.mxu0
    %v1267 = vpack.c.bf16 %v471, %v470
    %v1268 = vpack.c.bf16 %v473, %v472
    %v1269 = vpack.c.bf16 %v475, %v474
    %v1270 = vpack.c.bf16 %v477, %v476
    %1271 = vmatprep.subr.bf16.mxu0 0
    %1272 = vmatpush1.bf16.msra.mxu0 %v1267
    %1273 = vmatprep.subr.bf16.mxu0 0
    %1274 = vmatpush1.bf16.msra.mxu0 %v1268
    %1275 = vmatprep.subr.bf16.mxu0 0
    %1276 = vmatpush1.bf16.msra.mxu0 %v1269
    %1277 = vmatprep.subr.bf16.mxu0 0
    %1278 = vmatpush1.bf16.msra.mxu0 %v1270
    %1279 = vmatprep.subr.bf16.mxu0 0
    %1280 = vmatpush1.bf16.msra.mxu0 0
    %1281 = vmatprep.subr.bf16.mxu0 0
    %1282 = vmatpush1.bf16.msra.mxu0 0
    %1283 = vmatprep.subr.bf16.mxu0 0
    %1284 = vmatpush1.bf16.msra.mxu0 0
    %1285 = vmatprep.subr.bf16.mxu0 0
    %1286 = vmatpush1.bf16.msra.mxu0 0
    %1287 = vmatprep.subr.bf16.mxu0 0
    %1288 = vmatpush1.bf16.msra.mxu0 0
    %1289 = vmatprep.subr.bf16.mxu0 0
    %1290 = vmatpush1.bf16.msra.mxu0 0
    %1291 = vmatprep.subr.bf16.mxu0 0
    %1292 = vmatpush1.bf16.msra.mxu0 0
    %1293 = vmatprep.subr.bf16.mxu0 0
    %1294 = vmatpush1.bf16.msra.mxu0 0
    %1295 = vmatprep.subr.bf16.mxu0 0
    %1296 = vmatpush1.bf16.msra.mxu0 0
    %1297 = vmatprep.subr.bf16.mxu0 0
    %1298 = vmatpush1.bf16.msra.mxu0 0
    %1299 = vmatprep.subr.bf16.mxu0 0
    %1300 = vmatpush1.bf16.msra.mxu0 0
    %1301 = vmatprep.subr.bf16.mxu0 0
    %1302 = vmatpush1.bf16.msra.mxu0 0
    %1303 = vmatprep.mubr.bf16.mxu0 0
    %1304 = vmatmul.mubr.bf16.gmra.mrb[0].mxu0 %v660
    %v1305 = vpop.f32.mrb[0].mxu0
    %v1306 = vadd.f32 0.0, %v1305
    %v1307 = vpop.f32.mrb[0].mxu0
    %v1308 = vpop.f32.mrb[0].mxu0
    %v1309 = vadd.f32 0.0, %v1308
    %v1310 = vpop.f32.mrb[0].mxu0
    %1311 = vmatprep.mubr.bf16.mxu0 0
    %1312 = vmatmul.mubr.bf16.gmra.mrb[0].mxu0 %v663
    %v1313 = vpop.f32.mrb[0].mxu0
    %v1314 = vadd.f32 0.0, %v1313
    %v1315 = vpop.f32.mrb[0].mxu0
    %v1316 = vpop.f32.mrb[0].mxu0
    %v1317 = vadd.f32 0.0, %v1316
    %v1318 = vpop.f32.mrb[0].mxu0
    %1319 = vmatprep.mubr.bf16.mxu0 0
    %1320 = vmatmul.mubr.bf16.gmra.mrb[0].mxu0 %v666
    %v1321 = vpop.f32.mrb[0].mxu0
    %v1322 = vadd.f32 0.0, %v1321
    %v1323 = vpop.f32.mrb[0].mxu0
    %v1324 = vpop.f32.mrb[0].mxu0
    %v1325 = vadd.f32 0.0, %v1324
    %v1326 = vpop.f32.mrb[0].mxu0
    %1327 = vmatprep.mubr.bf16.mxu0 0
    %1328 = vmatmul.mubr.bf16.gmra.mrb[0].mxu0 %v669
    %v1329 = vpop.f32.mrb[0].mxu0
    %v1330 = vadd.f32 0.0, %v1329
    %v1331 = vpop.f32.mrb[0].mxu0
    %v1332 = vpop.f32.mrb[0].mxu0
    %v1333 = vadd.f32 0.0, %v1332
    %v1334 = vpop.f32.mrb[0].mxu0
    %1335 = vmatprep.mubr.bf16.mxu0 0
    %1336 = vmatmul.mubr.bf16.gmra.mrb[0].mxu0 %v672
    %v1337 = vpop.f32.mrb[0].mxu0
    %v1338 = vadd.f32 0.0, %v1337
    %v1339 = vpop.f32.mrb[0].mxu0
    %v1340 = vpop.f32.mrb[0].mxu0
    %v1341 = vadd.f32 0.0, %v1340
    %v1342 = vpop.f32.mrb[0].mxu0
    %1343 = vmatprep.mubr.bf16.mxu0 0
    %1344 = vmatmul.mubr.bf16.gmra.mrb[0].mxu0 %v675
    %v1345 = vpop.f32.mrb[0].mxu0
    %v1346 = vadd.f32 0.0, %v1345
    %v1347 = vpop.f32.mrb[0].mxu0
    %v1348 = vpop.f32.mrb[0].mxu0
    %v1349 = vadd.f32 0.0, %v1348
    %v1350 = vpop.f32.mrb[0].mxu0
    %1351 = vmatprep.mubr.bf16.mxu0 0
    %1352 = vmatmul.mubr.bf16.gmra.mrb[0].mxu0 %v678
    %v1353 = vpop.f32.mrb[0].mxu0
    %v1354 = vadd.f32 0.0, %v1353
    %v1355 = vpop.f32.mrb[0].mxu0
    %v1356 = vpop.f32.mrb[0].mxu0
    %v1357 = vadd.f32 0.0, %v1356
    %v1358 = vpop.f32.mrb[0].mxu0
    %1359 = vmatprep.mubr.bf16.mxu0 0
    %1360 = vmatmul.mubr.bf16.gmra.mrb[0].mxu0 %v681
    %v1361 = vpop.f32.mrb[0].mxu0
    %v1362 = vadd.f32 0.0, %v1361
    %v1363 = vpop.f32.mrb[0].mxu0
    %v1364 = vpop.f32.mrb[0].mxu0
    %v1365 = vadd.f32 0.0, %v1364
    %v1366 = vpop.f32.mrb[0].mxu0
    %1367 = vmatprep.mubr.bf16.mxu0 0
    %1368 = vmatmul.mubr.bf16.gmra.mrb[0].mxu0 %v684
    %v1369 = vpop.f32.mrb[0].mxu0
    %v1370 = vadd.f32 0.0, %v1369
    %v1371 = vpop.f32.mrb[0].mxu0
    %v1372 = vpop.f32.mrb[0].mxu0
    %v1373 = vadd.f32 0.0, %v1372
    %v1374 = vpop.f32.mrb[0].mxu0
    %1375 = vmatprep.mubr.bf16.mxu0 0
    %1376 = vmatmul.mubr.bf16.gmra.mrb[0].mxu0 %v687
    %v1377 = vpop.f32.mrb[0].mxu0
    %v1378 = vadd.f32 0.0, %v1377
    %v1379 = vpop.f32.mrb[0].mxu0
    %v1380 = vpop.f32.mrb[0].mxu0
    %v1381 = vadd.f32 0.0, %v1380
    %v1382 = vpop.f32.mrb[0].mxu0
    %1383 = vmatprep.mubr.bf16.mxu0 0
    %1384 = vmatmul.mubr.bf16.gmra.mrb[0].mxu0 %v690
    %v1385 = vpop.f32.mrb[0].mxu0
    %v1386 = vadd.f32 0.0, %v1385
    %v1387 = vpop.f32.mrb[0].mxu0
    %v1388 = vpop.f32.mrb[0].mxu0
    %v1389 = vadd.f32 0.0, %v1388
    %v1390 = vpop.f32.mrb[0].mxu0
    %1391 = vmatprep.mubr.bf16.mxu0 0
    %1392 = vmatmul.mubr.bf16.gmra.mrb[0].mxu0 %v693
    %v1393 = vpop.f32.mrb[0].mxu0
    %v1394 = vadd.f32 0.0, %v1393
    %v1395 = vpop.f32.mrb[0].mxu0
    %v1396 = vpop.f32.mrb[0].mxu0
    %v1397 = vadd.f32 0.0, %v1396
    %v1398 = vpop.f32.mrb[0].mxu0
    %1399 = vmatprep.mubr.bf16.mxu0 0
    %1400 = vmatmul.mubr.bf16.gmra.mrb[0].mxu0 %v696
    %v1401 = vpop.f32.mrb[0].mxu0
    %v1402 = vadd.f32 0.0, %v1401
    %v1403 = vpop.f32.mrb[0].mxu0
    %v1404 = vpop.f32.mrb[0].mxu0
    %v1405 = vadd.f32 0.0, %v1404
    %v1406 = vpop.f32.mrb[0].mxu0
    %1407 = vmatprep.mubr.bf16.mxu0 0
    %1408 = vmatmul.mubr.bf16.gmra.mrb[0].mxu0 %v699
    %v1409 = vpop.f32.mrb[0].mxu0
    %v1410 = vadd.f32 0.0, %v1409
    %v1411 = vpop.f32.mrb[0].mxu0
    %v1412 = vpop.f32.mrb[0].mxu0
    %v1413 = vadd.f32 0.0, %v1412
    %v1414 = vpop.f32.mrb[0].mxu0
    %1415 = vmatprep.mubr.bf16.mxu0 0
    %1416 = vmatmul.mubr.bf16.gmra.mrb[0].mxu0 %v702
    %v1417 = vpop.f32.mrb[0].mxu0
    %v1418 = vadd.f32 0.0, %v1417
    %v1419 = vpop.f32.mrb[0].mxu0
    %v1420 = vpop.f32.mrb[0].mxu0
    %v1421 = vadd.f32 0.0, %v1420
    %v1422 = vpop.f32.mrb[0].mxu0
    %1423 = vmatprep.mubr.bf16.mxu0 0
    %1424 = vmatmul.mubr.bf16.gmra.mrb[0].mxu0 %v705
    %v1425 = vpop.f32.mrb[0].mxu0
    %v1426 = vadd.f32 0.0, %v1425
    %v1427 = vpop.f32.mrb[0].mxu0
    %v1428 = vpop.f32.mrb[0].mxu0
    %v1429 = vadd.f32 0.0, %v1428
    %v1430 = vpop.f32.mrb[0].mxu0
    %1431 = vdwg.mxu0
    %1434 = vrot.lane.b32.xlu0 %v1314, 32
    %v1435 = vpop.permute.xlu0 %1434
    %1436 = vrot.lane.b32.xlu0 %v1317, 32
    %v1437 = vpop.permute.xlu0 %1436
    %1442 = vrot.lane.b32.xlu0 %v1322, 64
    %v1443 = vpop.permute.xlu0 %1442
    %1444 = vrot.lane.b32.xlu0 %v1325, 64
    %v1445 = vpop.permute.xlu0 %1444
    %1450 = vrot.lane.b32.xlu0 %v1330, 96
    %v1451 = vpop.permute.xlu0 %1450
    %1452 = vrot.lane.b32.xlu0 %v1333, 96
    %v1453 = vpop.permute.xlu0 %1452
    %1458 = vrot.lane.b32.xlu0 %v1346, 32
    %v1459 = vpop.permute.xlu0 %1458
    %1460 = vrot.lane.b32.xlu0 %v1349, 32
    %v1461 = vpop.permute.xlu0 %1460
    %1466 = vrot.lane.b32.xlu0 %v1354, 64
    %v1467 = vpop.permute.xlu0 %1466
    %1468 = vrot.lane.b32.xlu0 %v1357, 64
    %v1469 = vpop.permute.xlu0 %1468
    %1474 = vrot.lane.b32.xlu0 %v1362, 96
    %v1475 = vpop.permute.xlu0 %1474
    %1476 = vrot.lane.b32.xlu0 %v1365, 96
    %v1477 = vpop.permute.xlu0 %1476
    %1482 = vrot.lane.b32.xlu0 %v1378, 32
    %v1483 = vpop.permute.xlu0 %1482
    %1484 = vrot.lane.b32.xlu0 %v1381, 32
    %v1485 = vpop.permute.xlu0 %1484
    %1490 = vrot.lane.b32.xlu0 %v1386, 64
    %v1491 = vpop.permute.xlu0 %1490
    %1492 = vrot.lane.b32.xlu0 %v1389, 64
    %v1493 = vpop.permute.xlu0 %1492
    %1498 = vrot.lane.b32.xlu0 %v1394, 96
    %v1499 = vpop.permute.xlu0 %1498
    %1500 = vrot.lane.b32.xlu0 %v1397, 96
    %v1501 = vpop.permute.xlu0 %1500
    %1506 = vrot.lane.b32.xlu0 %v1410, 32
    %v1507 = vpop.permute.xlu0 %1506
    %1508 = vrot.lane.b32.xlu0 %v1413, 32
    %v1509 = vpop.permute.xlu0 %1508
    %1514 = vrot.lane.b32.xlu0 %v1418, 64
    %v1515 = vpop.permute.xlu0 %1514
    %1516 = vrot.lane.b32.xlu0 %v1421, 64
    %v1517 = vpop.permute.xlu0 %1516
    %1522 = vrot.lane.b32.xlu0 %v1426, 96
    %v1523 = vpop.permute.xlu0 %1522
    %1524 = vrot.lane.b32.xlu0 %v1429, 96
    %v1525 = vpop.permute.xlu0 %1524
    %v1528 = vsel %vm321, %v1306, %v1435
    %v1529 = vsel %vm321, %v1309, %v1437
    %v1530 = vsel %vm658, %v1528, %v1443
    %v1531 = vsel %vm658, %v1529, %v1445
    %v1532 = vsel %vm968, %v1530, %v1451
    %v1533 = vsel %vm968, %v1531, %v1453
    %v1534 = vsel %vm321, %v1338, %v1459
    %v1535 = vsel %vm321, %v1341, %v1461
    %v1536 = vsel %vm658, %v1534, %v1467
    %v1537 = vsel %vm658, %v1535, %v1469
    %v1538 = vsel %vm968, %v1536, %v1475
    %v1539 = vsel %vm968, %v1537, %v1477
    %v1540 = vsel %vm321, %v1370, %v1483
    %v1541 = vsel %vm321, %v1373, %v1485
    %v1542 = vsel %vm658, %v1540, %v1491
    %v1543 = vsel %vm658, %v1541, %v1493
    %v1544 = vsel %vm968, %v1542, %v1499
    %v1545 = vsel %vm968, %v1543, %v1501
    %v1546 = vsel %vm321, %v1402, %v1507
    %v1547 = vsel %vm321, %v1405, %v1509
    %v1548 = vsel %vm658, %v1546, %v1515
    %v1549 = vsel %vm658, %v1547, %v1517
    %v1550 = vsel %vm968, %v1548, %v1523
    %v1551 = vsel %vm968, %v1549, %v1525
    %v1552 = vpack.c.bf16 %v1533, %v1532
    %v1553 = vpack.c.bf16 %v1539, %v1538
    %v1554 = vpack.c.bf16 %v1545, %v1544
    %v1555 = vpack.c.bf16 %v1551, %v1550
    %1556 = vmatprep.subr.bf16.mxu0 0
    %1557 = vmatpush1.bf16.msra.mxu0 %v1121
    %1558 = vmatprep.subr.bf16.mxu0 0
    %1559 = vmatpush1.bf16.msra.mxu0 %v1122
    %1560 = vmatprep.subr.bf16.mxu0 0
    %1561 = vmatpush1.bf16.msra.mxu0 %v1123
    %1562 = vmatprep.subr.bf16.mxu0 0
    %1563 = vmatpush1.bf16.msra.mxu0 %v1124
    %1564 = vmatprep.subr.bf16.mxu0 0
    %1565 = vmatpush1.bf16.msra.mxu0 %v1125
    %1566 = vmatprep.subr.bf16.mxu0 0
    %1567 = vmatpush1.bf16.msra.mxu0 %v1126
    %1568 = vmatprep.subr.bf16.mxu0 0
    %1569 = vmatpush1.bf16.msra.mxu0 %v1127
    %1570 = vmatprep.subr.bf16.mxu0 0
    %1571 = vmatpush1.bf16.msra.mxu0 %v1128
    %1572 = vmatprep.subr.bf16.mxu0 0
    %1573 = vmatpush1.bf16.msra.mxu0 %v1129
    %1574 = vmatprep.subr.bf16.mxu0 0
    %1575 = vmatpush1.bf16.msra.mxu0 %v1130
    %1576 = vmatprep.subr.bf16.mxu0 0
    %1577 = vmatpush1.bf16.msra.mxu0 %v1131
    %1578 = vmatprep.subr.bf16.mxu0 0
    %1579 = vmatpush1.bf16.msra.mxu0 %v1132
    %1580 = vmatprep.subr.bf16.mxu0 0
    %1581 = vmatpush1.bf16.msra.mxu0 %v1133
    %1582 = vmatprep.subr.bf16.mxu0 0
    %1583 = vmatpush1.bf16.msra.mxu0 %v1134
    %1584 = vmatprep.subr.bf16.mxu0 0
    %1585 = vmatpush1.bf16.msra.mxu0 %v1135
    %1586 = vmatprep.subr.bf16.mxu0 0
    %1587 = vmatpush1.bf16.msra.mxu0 %v1136
    %1588 = vmatprep.mubr.bf16.mxu0 %v1553
    %1589 = vmatmul.mubr.bf16.gmra.mrb[0].mxu0 %v1552
    %v1590 = vpop.f32.mrb[0].mxu0
    %v1591 = vadd.f32 0.0, %v1590
    %v1592 = vpop.f32.mrb[0].mxu0
    %v1593 = vpop.f32.mrb[0].mxu0
    %v1594 = vadd.f32 0.0, %v1593
    %v1595 = vpop.f32.mrb[0].mxu0
    %1596 = vdwg.mxu0
    %1597 = vmatprep.subr.bf16.mxu0 0
    %1598 = vmatpush1.bf16.msra.mxu0 %v1137
    %1599 = vmatprep.subr.bf16.mxu0 0
    %1600 = vmatpush1.bf16.msra.mxu0 %v1138
    %1601 = vmatprep.subr.bf16.mxu0 0
    %1602 = vmatpush1.bf16.msra.mxu0 %v1139
    %1603 = vmatprep.subr.bf16.mxu0 0
    %1604 = vmatpush1.bf16.msra.mxu0 %v1140
    %1605 = vmatprep.subr.bf16.mxu0 0
    %1606 = vmatpush1.bf16.msra.mxu0 %v1141
    %1607 = vmatprep.subr.bf16.mxu0 0
    %1608 = vmatpush1.bf16.msra.mxu0 %v1142
    %1609 = vmatprep.subr.bf16.mxu0 0
    %1610 = vmatpush1.bf16.msra.mxu0 %v1143
    %1611 = vmatprep.subr.bf16.mxu0 0
    %1612 = vmatpush1.bf16.msra.mxu0 %v1144
    %1613 = vmatprep.subr.bf16.mxu0 0
    %1614 = vmatpush1.bf16.msra.mxu0 %v1145
    %1615 = vmatprep.subr.bf16.mxu0 0
    %1616 = vmatpush1.bf16.msra.mxu0 %v1146
    %1617 = vmatprep.subr.bf16.mxu0 0
    %1618 = vmatpush1.bf16.msra.mxu0 %v1147
    %1619 = vmatprep.subr.bf16.mxu0 0
    %1620 = vmatpush1.bf16.msra.mxu0 %v1148
    %1621 = vmatprep.subr.bf16.mxu0 0
    %1622 = vmatpush1.bf16.msra.mxu0 %v1149
    %1623 = vmatprep.subr.bf16.mxu0 0
    %1624 = vmatpush1.bf16.msra.mxu0 %v1150
    %1625 = vmatprep.subr.bf16.mxu0 0
    %1626 = vmatpush1.bf16.msra.mxu0 %v1151
    %1627 = vmatprep.subr.bf16.mxu0 0
    %1628 = vmatpush1.bf16.msra.mxu0 %v1152
    %1629 = vmatprep.mubr.bf16.mxu0 %v1555
    %1630 = vmatmul.mubr.bf16.gmra.mrb[0].mxu0 %v1554
    %v1631 = vpop.f32.mrb[0].mxu0
    %v1632 = vadd.f32 %v1591, %v1631
    %v1633 = vpop.f32.mrb[0].mxu0
    %v1634 = vpop.f32.mrb[0].mxu0
    %v1635 = vadd.f32 %v1594, %v1634
    %v1636 = vpop.f32.mrb[0].mxu0
    %1637 = vdwg.mxu0
    %v1638 = vld [vmem:[%s7] sm:$0x1]
    %v1640 = vlaneseq
    %v1641 = vshrl.u32 %v1640, 7
    %v1642 = vsub.s32 0, %v1641
    %v1643 = vrot.slane %v1638, %v1642
    %v1645 = vadd.f32 %v1261, %v1643
    %v1646 = vadd.f32 %v1264, %v1643
    %v1647 = vadd.f32 %v1632, %v1643
    %v1648 = vadd.f32 %v1635, %v1643
    %v1649 = vld [vmem:[%s8] sm:$0x1]
    %v1650 = vld [vmem:[%s9] sm:$0x1]
    %vm1651 = vcmp.ge.f32.partialorder %v1645, 0.0
    %vm1652 = vcmp.ge.f32.partialorder %v1646, 0.0
    %vm1653 = vcmp.ge.f32.partialorder %v1647, 0.0
    %vm1654 = vcmp.ge.f32.partialorder %v1648, 0.0
    %v1655 = vmul.f32 %v1645, 0.01
    %v1656 = vmul.f32 %v1646, 0.01
    %v1657 = vmul.f32 %v1647, 0.01
    %v1658 = vmul.f32 %v1648, 0.01
    %v1659 = vsel %vm1651, %v1645, %v1655
    %v1660 = vsel %vm1652, %v1646, %v1656
    %v1661 = vsel %vm1653, %v1647, %v1657
    %v1662 = vsel %vm1654, %v1648, %v1658
    %v1663 = vsel %vm658, %v1659, 0.0
    %v1664 = vsel %vm658, %v1660, 0.0
    %v1665 = vadd.f32 %v1663, %v1664
    %v1666 = vsel %vm658, %v1661, 0.0
    %v1667 = vadd.f32 %v1665, %v1666
    %v1668 = vsel %vm658, %v1662, 0.0
    %v1669 = vadd.f32 %v1667, %v1668
    %v1670 = vrot.slane %v1669, 4
    %v1671 = vadd.f32 %v1669, %v1670
    %v1672 = vrot.slane %v1671, 2
    %v1673 = vadd.f32 %v1671, %v1672
    %v1674 = vrot.slane %v1673, 1
    %v1675 = vadd.f32 %v1673, %v1674
    %v1676 = vmul.f32 %v1675, 0.03125
    %v1677 = vmul.f32 %v1659, %v1659
    %v1678 = vmul.f32 %v1660, %v1660
    %v1679 = vmul.f32 %v1661, %v1661
    %v1680 = vmul.f32 %v1662, %v1662
    %v1681 = vsel %vm658, %v1677, 0.0
    %v1682 = vsel %vm658, %v1678, 0.0
    %v1683 = vadd.f32 %v1681, %v1682
    %v1684 = vsel %vm658, %v1679, 0.0
    %v1685 = vadd.f32 %v1683, %v1684
    %v1686 = vsel %vm658, %v1680, 0.0
    %v1687 = vadd.f32 %v1685, %v1686
    %v1688 = vrot.slane %v1687, 4
    %v1689 = vadd.f32 %v1687, %v1688
    %v1690 = vrot.slane %v1689, 2
    %v1691 = vadd.f32 %v1689, %v1690
    %v1692 = vrot.slane %v1691, 1
    %v1693 = vadd.f32 %v1691, %v1692
    %v1694 = vmul.f32 %v1693, 0.03125
    %v1695 = vmul.f32 %v1676, %v1676
    %v1696 = vsub.f32 %v1694, %v1695
    %v1697 = vmax.f32 %v1696, 0.0
    %v1698 = vadd.f32 %v1697, 1e-05
    %v1699 = vrsqrt.pop %v1698
    %v1700 = vmul.f32 %v1699, %v1649
    %v1701 = vsub.f32 %v1659, %v1676
    %v1702 = vsub.f32 %v1660, %v1676
    %v1703 = vsub.f32 %v1661, %v1676
    %v1704 = vsub.f32 %v1662, %v1676
    %v1705 = vlaneseq
    %v1706 = vshrl.u32 %v1705, 7
    %v1707 = vsub.s32 0, %v1706
    %v1708 = vrot.slane %v1700, %v1707
    %v1709 = vmul.f32 %v1701, %v1708
    %v1710 = vmul.f32 %v1702, %v1708
    %v1711 = vmul.f32 %v1703, %v1708
    %v1712 = vmul.f32 %v1704, %v1708
    %v1714 = vlaneseq
    %v1715 = vshrl.u32 %v1714, 7
    %v1716 = vsub.s32 0, %v1715
    %v1717 = vrot.slane %v1650, %v1716
    %v1719 = vadd.f32 %v1709, %v1717
    %v1720 = vadd.f32 %v1710, %v1717
    %v1721 = vadd.f32 %v1711, %v1717
    %v1722 = vadd.f32 %v1712, %v1717
    %v1723 = vld [vmem:[%s10] sm:$0xf]
    %v1724 = vld [vmem:[%s10 + $0x4] sm:$0xf]
    %v1725 = vld [vmem:[%s10 + $0x8] sm:$0xf]
    %v1726 = vld [vmem:[%s10 + $0xc] sm:$0xf]
    %v1727 = vld [vmem:[%s10 + $0x10] sm:$0xf]
    %v1728 = vld [vmem:[%s10 + $0x14] sm:$0xf]
    %v1729 = vld [vmem:[%s10 + $0x18] sm:$0xf]
    %v1730 = vld [vmem:[%s10 + $0x1c] sm:$0xf]
    %v1731 = vld [vmem:[%s11] sm:$0xf]
    %v1732 = vld [vmem:[%s11 + $0x4] sm:$0xf]
    %v1733 = vld [vmem:[%s11 + $0x8] sm:$0xf]
    %v1734 = vld [vmem:[%s11 + $0xc] sm:$0xf]
    %v1735 = vld [vmem:[%s11 + $0x10] sm:$0xf]
    %v1736 = vld [vmem:[%s11 + $0x14] sm:$0xf]
    %v1737 = vld [vmem:[%s11 + $0x18] sm:$0xf]
    %v1738 = vld [vmem:[%s11 + $0x1c] sm:$0xf]
    %v1739 = vld [vmem:[%s11 + $0x20] sm:$0xf]
    %v1740 = vld [vmem:[%s11 + $0x24] sm:$0xf]
    %v1741 = vld [vmem:[%s11 + $0x28] sm:$0xf]
    %v1742 = vld [vmem:[%s11 + $0x2c] sm:$0xf]
    %v1743 = vld [vmem:[%s11 + $0x30] sm:$0xf]
    %v1744 = vld [vmem:[%s11 + $0x34] sm:$0xf]
    %v1745 = vld [vmem:[%s11 + $0x38] sm:$0xf]
    %v1746 = vld [vmem:[%s11 + $0x3c] sm:$0xf]
    %v1747 = vld [vmem:[%s11 + $0x40] sm:$0xf]
    %v1748 = vld [vmem:[%s11 + $0x44] sm:$0xf]
    %v1749 = vld [vmem:[%s11 + $0x48] sm:$0xf]
    %v1750 = vld [vmem:[%s11 + $0x4c] sm:$0xf]
    %v1751 = vld [vmem:[%s11 + $0x50] sm:$0xf]
    %v1752 = vld [vmem:[%s11 + $0x54] sm:$0xf]
    %v1753 = vld [vmem:[%s11 + $0x58] sm:$0xf]
    %v1754 = vld [vmem:[%s11 + $0x5c] sm:$0xf]
    %v1755 = vld [vmem:[%s11 + $0x60] sm:$0xf]
    %v1756 = vld [vmem:[%s11 + $0x64] sm:$0xf]
    %v1757 = vld [vmem:[%s11 + $0x68] sm:$0xf]
    %v1758 = vld [vmem:[%s11 + $0x6c] sm:$0xf]
    %v1759 = vld [vmem:[%s11 + $0x70] sm:$0xf]
    %v1760 = vld [vmem:[%s11 + $0x74] sm:$0xf]
    %v1761 = vld [vmem:[%s11 + $0x78] sm:$0xf]
    %v1762 = vld [vmem:[%s11 + $0x7c] sm:$0xf]
    %v1763 = vld [vmem:[%s11 + $0x80] sm:$0xf]
    %v1764 = vld [vmem:[%s11 + $0x84] sm:$0xf]
    %v1765 = vld [vmem:[%s11 + $0x88] sm:$0xf]
    %v1766 = vld [vmem:[%s11 + $0x8c] sm:$0xf]
    %v1767 = vld [vmem:[%s11 + $0x90] sm:$0xf]
    %v1768 = vld [vmem:[%s11 + $0x94] sm:$0xf]
    %v1769 = vld [vmem:[%s11 + $0x98] sm:$0xf]
    %v1770 = vld [vmem:[%s11 + $0x9c] sm:$0xf]
    %v1771 = vld [vmem:[%s11 + $0xa0] sm:$0xf]
    %v1772 = vld [vmem:[%s11 + $0xa4] sm:$0xf]
    %v1773 = vld [vmem:[%s11 + $0xa8] sm:$0xf]
    %v1774 = vld [vmem:[%s11 + $0xac] sm:$0xf]
    %v1775 = vld [vmem:[%s11 + $0xb0] sm:$0xf]
    %v1776 = vld [vmem:[%s11 + $0xb4] sm:$0xf]
    %v1777 = vld [vmem:[%s11 + $0xb8] sm:$0xf]
    %v1778 = vld [vmem:[%s11 + $0xbc] sm:$0xf]
    %v1779 = vld [vmem:[%s11 + $0xc0] sm:$0xf]
    %v1780 = vld [vmem:[%s11 + $0xc4] sm:$0xf]
    %v1781 = vld [vmem:[%s11 + $0xc8] sm:$0xf]
    %v1782 = vld [vmem:[%s11 + $0xcc] sm:$0xf]
    %v1783 = vld [vmem:[%s11 + $0xd0] sm:$0xf]
    %v1784 = vld [vmem:[%s11 + $0xd4] sm:$0xf]
    %v1785 = vld [vmem:[%s11 + $0xd8] sm:$0xf]
    %v1786 = vld [vmem:[%s11 + $0xdc] sm:$0xf]
    %v1787 = vld [vmem:[%s11 + $0xe0] sm:$0xf]
    %v1788 = vld [vmem:[%s11 + $0xe4] sm:$0xf]
    %v1789 = vld [vmem:[%s11 + $0xe8] sm:$0xf]
    %v1790 = vld [vmem:[%s11 + $0xec] sm:$0xf]
    %v1791 = vld [vmem:[%s11 + $0xf0] sm:$0xf]
    %v1792 = vld [vmem:[%s11 + $0xf4] sm:$0xf]
    %v1793 = vld [vmem:[%s11 + $0xf8] sm:$0xf]
    %v1794 = vld [vmem:[%s11 + $0xfc] sm:$0xf]
    %v1795 = vld [vmem:[%s11 + $0x100] sm:$0xf]
    %v1796 = vld [vmem:[%s11 + $0x104] sm:$0xf]
    %v1797 = vld [vmem:[%s11 + $0x108] sm:$0xf]
    %v1798 = vld [vmem:[%s11 + $0x10c] sm:$0xf]
    %v1799 = vld [vmem:[%s11 + $0x110] sm:$0xf]
    %v1800 = vld [vmem:[%s11 + $0x114] sm:$0xf]
    %v1801 = vld [vmem:[%s11 + $0x118] sm:$0xf]
    %v1802 = vld [vmem:[%s11 + $0x11c] sm:$0xf]
    %v1803 = vld [vmem:[%s11 + $0x120] sm:$0xf]
    %v1804 = vld [vmem:[%s11 + $0x124] sm:$0xf]
    %v1805 = vld [vmem:[%s11 + $0x128] sm:$0xf]
    %v1806 = vld [vmem:[%s11 + $0x12c] sm:$0xf]
    %v1807 = vld [vmem:[%s11 + $0x130] sm:$0xf]
    %v1808 = vld [vmem:[%s11 + $0x134] sm:$0xf]
    %v1809 = vld [vmem:[%s11 + $0x138] sm:$0xf]
    %v1810 = vld [vmem:[%s11 + $0x13c] sm:$0xf]
    %v1811 = vld [vmem:[%s11 + $0x140] sm:$0xf]
    %v1812 = vld [vmem:[%s11 + $0x144] sm:$0xf]
    %v1813 = vld [vmem:[%s11 + $0x148] sm:$0xf]
    %v1814 = vld [vmem:[%s11 + $0x14c] sm:$0xf]
    %v1815 = vld [vmem:[%s11 + $0x150] sm:$0xf]
    %v1816 = vld [vmem:[%s11 + $0x154] sm:$0xf]
    %v1817 = vld [vmem:[%s11 + $0x158] sm:$0xf]
    %v1818 = vld [vmem:[%s11 + $0x15c] sm:$0xf]
    %v1819 = vld [vmem:[%s11 + $0x160] sm:$0xf]
    %v1820 = vld [vmem:[%s11 + $0x164] sm:$0xf]
    %v1821 = vld [vmem:[%s11 + $0x168] sm:$0xf]
    %v1822 = vld [vmem:[%s11 + $0x16c] sm:$0xf]
    %v1823 = vld [vmem:[%s11 + $0x170] sm:$0xf]
    %v1824 = vld [vmem:[%s11 + $0x174] sm:$0xf]
    %v1825 = vld [vmem:[%s11 + $0x178] sm:$0xf]
    %v1826 = vld [vmem:[%s11 + $0x17c] sm:$0xf]
    %v1827 = vld [vmem:[%s11 + $0x180] sm:$0xf]
    %v1828 = vld [vmem:[%s11 + $0x184] sm:$0xf]
    %v1829 = vld [vmem:[%s11 + $0x188] sm:$0xf]
    %v1830 = vld [vmem:[%s11 + $0x18c] sm:$0xf]
    %v1831 = vld [vmem:[%s11 + $0x190] sm:$0xf]
    %v1832 = vld [vmem:[%s11 + $0x194] sm:$0xf]
    %v1833 = vld [vmem:[%s11 + $0x198] sm:$0xf]
    %v1834 = vld [vmem:[%s11 + $0x19c] sm:$0xf]
    %v1835 = vld [vmem:[%s11 + $0x1a0] sm:$0xf]
    %v1836 = vld [vmem:[%s11 + $0x1a4] sm:$0xf]
    %v1837 = vld [vmem:[%s11 + $0x1a8] sm:$0xf]
    %v1838 = vld [vmem:[%s11 + $0x1ac] sm:$0xf]
    %v1839 = vld [vmem:[%s11 + $0x1b0] sm:$0xf]
    %v1840 = vld [vmem:[%s11 + $0x1b4] sm:$0xf]
    %v1841 = vld [vmem:[%s11 + $0x1b8] sm:$0xf]
    %v1842 = vld [vmem:[%s11 + $0x1bc] sm:$0xf]
    %v1843 = vld [vmem:[%s11 + $0x1c0] sm:$0xf]
    %v1844 = vld [vmem:[%s11 + $0x1c4] sm:$0xf]
    %v1845 = vld [vmem:[%s11 + $0x1c8] sm:$0xf]
    %v1846 = vld [vmem:[%s11 + $0x1cc] sm:$0xf]
    %v1847 = vld [vmem:[%s11 + $0x1d0] sm:$0xf]
    %v1848 = vld [vmem:[%s11 + $0x1d4] sm:$0xf]
    %v1849 = vld [vmem:[%s11 + $0x1d8] sm:$0xf]
    %v1850 = vld [vmem:[%s11 + $0x1dc] sm:$0xf]
    %v1851 = vld [vmem:[%s11 + $0x1e0] sm:$0xf]
    %v1852 = vld [vmem:[%s11 + $0x1e4] sm:$0xf]
    %v1853 = vld [vmem:[%s11 + $0x1e8] sm:$0xf]
    %v1854 = vld [vmem:[%s11 + $0x1ec] sm:$0xf]
    %v1855 = vld [vmem:[%s11 + $0x1f0] sm:$0xf]
    %v1856 = vld [vmem:[%s11 + $0x1f4] sm:$0xf]
    %v1857 = vld [vmem:[%s11 + $0x1f8] sm:$0xf]
    %v1858 = vld [vmem:[%s11 + $0x1fc] sm:$0xf]
    %v1859 = vpack.c.bf16 %v1720, %v1719
    %v1868 = vunpack.c.l.b16 %v1723
    %v1869 = vunpack.c.l.b16 %v1724
    %v1870 = vunpack.c.l.b16 %v1725
    %v1871 = vunpack.c.l.b16 %v1726
    %v1872 = vunpack.c.l.b16 %v1727
    %v1873 = vunpack.c.l.b16 %v1728
    %v1874 = vunpack.c.l.b16 %v1729
    %v1875 = vunpack.c.l.b16 %v1730
    %v1876 = vpack.c.b16 %v1869, %v1868
    %v1877 = vpack.c.b16 %v1871, %v1870
    %v1878 = vpack.c.b16 %v1873, %v1872
    %v1879 = vpack.c.b16 %v1875, %v1874
    %v1881 = vsel %vm149, %v1876, 0
    %v1884 = vsel %vm149, %v1877, 0
    %v1887 = vsel %vm149, %v1878, 0
    %v1890 = vsel %vm149, %v1879, 0
    %1892 = vmatprep.subr.bf16.mxu0 0
    %1893 = vmatpush1.bf16.msra.mxu0 %v1859
    %1894 = vmatprep.subr.bf16.mxu0 0
    %1895 = vmatpush1.bf16.msra.mxu0 0
    %1896 = vmatprep.subr.bf16.mxu0 0
    %1897 = vmatpush1.bf16.msra.mxu0 0
    %1898 = vmatprep.subr.bf16.mxu0 0
    %1899 = vmatpush1.bf16.msra.mxu0 0
    %1900 = vmatprep.subr.bf16.mxu0 0
    %1901 = vmatpush1.bf16.msra.mxu0 0
    %1902 = vmatprep.subr.bf16.mxu0 0
    %1903 = vmatpush1.bf16.msra.mxu0 0
    %1904 = vmatprep.subr.bf16.mxu0 0
    %1905 = vmatpush1.bf16.msra.mxu0 0
    %1906 = vmatprep.subr.bf16.mxu0 0
    %1907 = vmatpush1.bf16.msra.mxu0 0
    %1908 = vmatprep.subr.bf16.mxu0 0
    %1909 = vmatpush1.bf16.msra.mxu0 0
    %1910 = vmatprep.subr.bf16.mxu0 0
    %1911 = vmatpush1.bf16.msra.mxu0 0
    %1912 = vmatprep.subr.bf16.mxu0 0
    %1913 = vmatpush1.bf16.msra.mxu0 0
    %1914 = vmatprep.subr.bf16.mxu0 0
    %1915 = vmatpush1.bf16.msra.mxu0 0
    %1916 = vmatprep.subr.bf16.mxu0 0
    %1917 = vmatpush1.bf16.msra.mxu0 0
    %1918 = vmatprep.subr.bf16.mxu0 0
    %1919 = vmatpush1.bf16.msra.mxu0 0
    %1920 = vmatprep.subr.bf16.mxu0 0
    %1921 = vmatpush1.bf16.msra.mxu0 0
    %1922 = vmatprep.subr.bf16.mxu0 0
    %1923 = vmatpush1.bf16.msra.mxu0 0
    %1924 = vmatprep.mubr.bf16.mxu0 0
    %1925 = vmatmul.mubr.bf16.gmra.mrb[0].mxu0 %v1881
    %v1926 = vpop.f32.mrb[0].mxu0
    %v1927 = vadd.f32 0.0, %v1926
    %v1928 = vpop.f32.mrb[0].mxu0
    %v1929 = vpop.f32.mrb[0].mxu0
    %v1930 = vadd.f32 0.0, %v1929
    %v1931 = vpop.f32.mrb[0].mxu0
    %1932 = vmatprep.mubr.bf16.mxu0 0
    %1933 = vmatmul.mubr.bf16.gmra.mrb[0].mxu0 %v1884
    %v1934 = vpop.f32.mrb[0].mxu0
    %v1935 = vadd.f32 0.0, %v1934
    %v1936 = vpop.f32.mrb[0].mxu0
    %v1937 = vpop.f32.mrb[0].mxu0
    %v1938 = vadd.f32 0.0, %v1937
    %v1939 = vpop.f32.mrb[0].mxu0
    %1940 = vmatprep.mubr.bf16.mxu0 0
    %1941 = vmatmul.mubr.bf16.gmra.mrb[0].mxu0 %v1887
    %v1942 = vpop.f32.mrb[0].mxu0
    %v1943 = vadd.f32 0.0, %v1942
    %v1944 = vpop.f32.mrb[0].mxu0
    %v1945 = vpop.f32.mrb[0].mxu0
    %v1946 = vadd.f32 0.0, %v1945
    %v1947 = vpop.f32.mrb[0].mxu0
    %1948 = vmatprep.mubr.bf16.mxu0 0
    %1949 = vmatmul.mubr.bf16.gmra.mrb[0].mxu0 %v1890
    %v1950 = vpop.f32.mrb[0].mxu0
    %v1951 = vadd.f32 0.0, %v1950
    %v1952 = vpop.f32.mrb[0].mxu0
    %v1953 = vpop.f32.mrb[0].mxu0
    %v1954 = vadd.f32 0.0, %v1953
    %v1955 = vpop.f32.mrb[0].mxu0
    %1956 = vdwg.mxu0
    %v1958 = vrot.slane %v1927, 4
    %1959 = vrot.lane.b32.xlu0 %v1958, 64
    %v1960 = vpop.permute.xlu0 %1959
    %v1963 = vrot.slane %v1930, 4
    %1964 = vrot.lane.b32.xlu0 %v1963, 64
    %v1965 = vpop.permute.xlu0 %1964
    %v1968 = vrot.slane %v1935, 4
    %1969 = vrot.lane.b32.xlu0 %v1968, 64
    %v1970 = vpop.permute.xlu0 %1969
    %v1973 = vrot.slane %v1938, 4
    %1974 = vrot.lane.b32.xlu0 %v1973, 64
    %v1975 = vpop.permute.xlu0 %1974
    %v1978 = vrot.slane %v1943, 4
    %1979 = vrot.lane.b32.xlu0 %v1978, 64
    %v1980 = vpop.permute.xlu0 %1979
    %v1983 = vrot.slane %v1946, 4
    %1984 = vrot.lane.b32.xlu0 %v1983, 64
    %v1985 = vpop.permute.xlu0 %1984
    %v1988 = vrot.slane %v1951, 4
    %1989 = vrot.lane.b32.xlu0 %v1988, 64
    %v1990 = vpop.permute.xlu0 %1989
    %v1993 = vrot.slane %v1954, 4
    %1994 = vrot.lane.b32.xlu0 %v1993, 64
    %v1995 = vpop.permute.xlu0 %1994
    %v1997 = vsel %vm658, %v1927, %v1960
    %v1998 = vsel %vm658, %v1930, %v1965
    %v1999 = vsel %vm658, %v1935, %v1970
    %v2000 = vsel %vm658, %v1938, %v1975
    %v2001 = vsel %vm658, %v1943, %v1980
    %v2002 = vsel %vm658, %v1946, %v1985
    %v2003 = vsel %vm658, %v1951, %v1990
    %v2004 = vsel %vm658, %v1954, %v1995
    %v2005 = vpack.c.bf16 %v1997, %v1997
    %v2006 = vpack.c.bf16 %v1998, %v1998
    %v2007 = vpack.c.bf16 %v1999, %v1999
    %v2008 = vpack.c.bf16 %v2000, %v2000
    %v2009 = vpack.c.bf16 %v2001, %v2001
    %v2010 = vpack.c.bf16 %v2002, %v2002
    %v2011 = vpack.c.bf16 %v2003, %v2003
    %v2012 = vpack.c.bf16 %v2004, %v2004
    %v2141 = vunpack.c.l.b16 %v1731
    %v2142 = vunpack.c.l.b16 %v1732
    %v2143 = vunpack.c.l.b16 %v1733
    %v2144 = vunpack.c.l.b16 %v1734
    %v2145 = vunpack.c.l.b16 %v1735
    %v2146 = vunpack.c.l.b16 %v1736
    %v2147 = vunpack.c.l.b16 %v1737
    %v2148 = vunpack.c.l.b16 %v1738
    %v2149 = vunpack.c.l.b16 %v1739
    %v2150 = vunpack.c.l.b16 %v1740
    %v2151 = vunpack.c.l.b16 %v1741
    %v2152 = vunpack.c.l.b16 %v1742
    %v2153 = vunpack.c.l.b16 %v1743
    %v2154 = vunpack.c.l.b16 %v1744
    %v2155 = vunpack.c.l.b16 %v1745
    %v2156 = vunpack.c.l.b16 %v1746
    %v2157 = vunpack.c.l.b16 %v1747
    %v2158 = vunpack.c.l.b16 %v1748
    %v2159 = vunpack.c.l.b16 %v1749
    %v2160 = vunpack.c.l.b16 %v1750
    %v2161 = vunpack.c.l.b16 %v1751
    %v2162 = vunpack.c.l.b16 %v1752
    %v2163 = vunpack.c.l.b16 %v1753
    %v2164 = vunpack.c.l.b16 %v1754
    %v2165 = vunpack.c.l.b16 %v1755
    %v2166 = vunpack.c.l.b16 %v1756
    %v2167 = vunpack.c.l.b16 %v1757
    %v2168 = vunpack.c.l.b16 %v1758
    %v2169 = vunpack.c.l.b16 %v1759
    %v2170 = vunpack.c.l.b16 %v1760
    %v2171 = vunpack.c.l.b16 %v1761
    %v2172 = vunpack.c.l.b16 %v1762
    %v2173 = vunpack.c.l.b16 %v1763
    %v2174 = vunpack.c.l.b16 %v1764
    %v2175 = vunpack.c.l.b16 %v1765
    %v2176 = vunpack.c.l.b16 %v1766
    %v2177 = vunpack.c.l.b16 %v1767
    %v2178 = vunpack.c.l.b16 %v1768
    %v2179 = vunpack.c.l.b16 %v1769
    %v2180 = vunpack.c.l.b16 %v1770
    %v2181 = vunpack.c.l.b16 %v1771
    %v2182 = vunpack.c.l.b16 %v1772
    %v2183 = vunpack.c.l.b16 %v1773
    %v2184 = vunpack.c.l.b16 %v1774
    %v2185 = vunpack.c.l.b16 %v1775
    %v2186 = vunpack.c.l.b16 %v1776
    %v2187 = vunpack.c.l.b16 %v1777
    %v2188 = vunpack.c.l.b16 %v1778
    %v2189 = vunpack.c.l.b16 %v1779
    %v2190 = vunpack.c.l.b16 %v1780
    %v2191 = vunpack.c.l.b16 %v1781
    %v2192 = vunpack.c.l.b16 %v1782
    %v2193 = vunpack.c.l.b16 %v1783
    %v2194 = vunpack.c.l.b16 %v1784
    %v2195 = vunpack.c.l.b16 %v1785
    %v2196 = vunpack.c.l.b16 %v1786
    %v2197 = vunpack.c.l.b16 %v1787
    %v2198 = vunpack.c.l.b16 %v1788
    %v2199 = vunpack.c.l.b16 %v1789
    %v2200 = vunpack.c.l.b16 %v1790
    %v2201 = vunpack.c.l.b16 %v1791
    %v2202 = vunpack.c.l.b16 %v1792
    %v2203 = vunpack.c.l.b16 %v1793
    %v2204 = vunpack.c.l.b16 %v1794
    %v2205 = vunpack.c.l.b16 %v1795
    %v2206 = vunpack.c.l.b16 %v1796
    %v2207 = vunpack.c.l.b16 %v1797
    %v2208 = vunpack.c.l.b16 %v1798
    %v2209 = vunpack.c.l.b16 %v1799
    %v2210 = vunpack.c.l.b16 %v1800
    %v2211 = vunpack.c.l.b16 %v1801
    %v2212 = vunpack.c.l.b16 %v1802
    %v2213 = vunpack.c.l.b16 %v1803
    %v2214 = vunpack.c.l.b16 %v1804
    %v2215 = vunpack.c.l.b16 %v1805
    %v2216 = vunpack.c.l.b16 %v1806
    %v2217 = vunpack.c.l.b16 %v1807
    %v2218 = vunpack.c.l.b16 %v1808
    %v2219 = vunpack.c.l.b16 %v1809
    %v2220 = vunpack.c.l.b16 %v1810
    %v2221 = vunpack.c.l.b16 %v1811
    %v2222 = vunpack.c.l.b16 %v1812
    %v2223 = vunpack.c.l.b16 %v1813
    %v2224 = vunpack.c.l.b16 %v1814
    %v2225 = vunpack.c.l.b16 %v1815
    %v2226 = vunpack.c.l.b16 %v1816
    %v2227 = vunpack.c.l.b16 %v1817
    %v2228 = vunpack.c.l.b16 %v1818
    %v2229 = vunpack.c.l.b16 %v1819
    %v2230 = vunpack.c.l.b16 %v1820
    %v2231 = vunpack.c.l.b16 %v1821
    %v2232 = vunpack.c.l.b16 %v1822
    %v2233 = vunpack.c.l.b16 %v1823
    %v2234 = vunpack.c.l.b16 %v1824
    %v2235 = vunpack.c.l.b16 %v1825
    %v2236 = vunpack.c.l.b16 %v1826
    %v2237 = vunpack.c.l.b16 %v1827
    %v2238 = vunpack.c.l.b16 %v1828
    %v2239 = vunpack.c.l.b16 %v1829
    %v2240 = vunpack.c.l.b16 %v1830
    %v2241 = vunpack.c.l.b16 %v1831
    %v2242 = vunpack.c.l.b16 %v1832
    %v2243 = vunpack.c.l.b16 %v1833
    %v2244 = vunpack.c.l.b16 %v1834
    %v2245 = vunpack.c.l.b16 %v1835
    %v2246 = vunpack.c.l.b16 %v1836
    %v2247 = vunpack.c.l.b16 %v1837
    %v2248 = vunpack.c.l.b16 %v1838
    %v2249 = vunpack.c.l.b16 %v1839
    %v2250 = vunpack.c.l.b16 %v1840
    %v2251 = vunpack.c.l.b16 %v1841
    %v2252 = vunpack.c.l.b16 %v1842
    %v2253 = vunpack.c.l.b16 %v1843
    %v2254 = vunpack.c.l.b16 %v1844
    %v2255 = vunpack.c.l.b16 %v1845
    %v2256 = vunpack.c.l.b16 %v1846
    %v2257 = vunpack.c.l.b16 %v1847
    %v2258 = vunpack.c.l.b16 %v1848
    %v2259 = vunpack.c.l.b16 %v1849
    %v2260 = vunpack.c.l.b16 %v1850
    %v2261 = vunpack.c.l.b16 %v1851
    %v2262 = vunpack.c.l.b16 %v1852
    %v2263 = vunpack.c.l.b16 %v1853
    %v2264 = vunpack.c.l.b16 %v1854
    %v2265 = vunpack.c.l.b16 %v1855
    %v2266 = vunpack.c.l.b16 %v1856
    %v2267 = vunpack.c.l.b16 %v1857
    %v2268 = vunpack.c.l.b16 %v1858
    %v2269 = vpack.c.b16 %v2142, %v2141
    %v2270 = vpack.c.b16 %v2144, %v2143
    %v2271 = vpack.c.b16 %v2146, %v2145
    %v2272 = vpack.c.b16 %v2148, %v2147
    %v2273 = vpack.c.b16 %v2150, %v2149
    %v2274 = vpack.c.b16 %v2152, %v2151
    %v2275 = vpack.c.b16 %v2154, %v2153
    %v2276 = vpack.c.b16 %v2156, %v2155
    %v2277 = vpack.c.b16 %v2158, %v2157
    %v2278 = vpack.c.b16 %v2160, %v2159
    %v2279 = vpack.c.b16 %v2162, %v2161
    %v2280 = vpack.c.b16 %v2164, %v2163
    %v2281 = vpack.c.b16 %v2166, %v2165
    %v2282 = vpack.c.b16 %v2168, %v2167
    %v2283 = vpack.c.b16 %v2170, %v2169
    %v2284 = vpack.c.b16 %v2172, %v2171
    %v2285 = vpack.c.b16 %v2174, %v2173
    %v2286 = vpack.c.b16 %v2176, %v2175
    %v2287 = vpack.c.b16 %v2178, %v2177
    %v2288 = vpack.c.b16 %v2180, %v2179
    %v2289 = vpack.c.b16 %v2182, %v2181
    %v2290 = vpack.c.b16 %v2184, %v2183
    %v2291 = vpack.c.b16 %v2186, %v2185
    %v2292 = vpack.c.b16 %v2188, %v2187
    %v2293 = vpack.c.b16 %v2190, %v2189
    %v2294 = vpack.c.b16 %v2192, %v2191
    %v2295 = vpack.c.b16 %v2194, %v2193
    %v2296 = vpack.c.b16 %v2196, %v2195
    %v2297 = vpack.c.b16 %v2198, %v2197
    %v2298 = vpack.c.b16 %v2200, %v2199
    %v2299 = vpack.c.b16 %v2202, %v2201
    %v2300 = vpack.c.b16 %v2204, %v2203
    %v2301 = vpack.c.b16 %v2206, %v2205
    %v2302 = vpack.c.b16 %v2208, %v2207
    %v2303 = vpack.c.b16 %v2210, %v2209
    %v2304 = vpack.c.b16 %v2212, %v2211
    %v2305 = vpack.c.b16 %v2214, %v2213
    %v2306 = vpack.c.b16 %v2216, %v2215
    %v2307 = vpack.c.b16 %v2218, %v2217
    %v2308 = vpack.c.b16 %v2220, %v2219
    %v2309 = vpack.c.b16 %v2222, %v2221
    %v2310 = vpack.c.b16 %v2224, %v2223
    %v2311 = vpack.c.b16 %v2226, %v2225
    %v2312 = vpack.c.b16 %v2228, %v2227
    %v2313 = vpack.c.b16 %v2230, %v2229
    %v2314 = vpack.c.b16 %v2232, %v2231
    %v2315 = vpack.c.b16 %v2234, %v2233
    %v2316 = vpack.c.b16 %v2236, %v2235
    %v2317 = vpack.c.b16 %v2238, %v2237
    %v2318 = vpack.c.b16 %v2240, %v2239
    %v2319 = vpack.c.b16 %v2242, %v2241
    %v2320 = vpack.c.b16 %v2244, %v2243
    %v2321 = vpack.c.b16 %v2246, %v2245
    %v2322 = vpack.c.b16 %v2248, %v2247
    %v2323 = vpack.c.b16 %v2250, %v2249
    %v2324 = vpack.c.b16 %v2252, %v2251
    %v2325 = vpack.c.b16 %v2254, %v2253
    %v2326 = vpack.c.b16 %v2256, %v2255
    %v2327 = vpack.c.b16 %v2258, %v2257
    %v2328 = vpack.c.b16 %v2260, %v2259
    %v2329 = vpack.c.b16 %v2262, %v2261
    %v2330 = vpack.c.b16 %v2264, %v2263
    %v2331 = vpack.c.b16 %v2266, %v2265
    %v2332 = vpack.c.b16 %v2268, %v2267
    %2397 = vmatprep.subr.bf16.mxu0 0
    %2398 = vmatpush1.bf16.msra.mxu0 %v2269
    %2399 = vmatprep.subr.bf16.mxu0 0
    %2400 = vmatpush1.bf16.msra.mxu0 %v2270
    %2401 = vmatprep.subr.bf16.mxu0 0
    %2402 = vmatpush1.bf16.msra.mxu0 %v2271
    %2403 = vmatprep.subr.bf16.mxu0 0
    %2404 = vmatpush1.bf16.msra.mxu0 %v2272
    %2405 = vmatprep.subr.bf16.mxu0 0
    %2406 = vmatpush1.bf16.msra.mxu0 %v2273
    %2407 = vmatprep.subr.bf16.mxu0 0
    %2408 = vmatpush1.bf16.msra.mxu0 %v2274
    %2409 = vmatprep.subr.bf16.mxu0 0
    %2410 = vmatpush1.bf16.msra.mxu0 %v2275
    %2411 = vmatprep.subr.bf16.mxu0 0
    %2412 = vmatpush1.bf16.msra.mxu0 %v2276
    %2413 = vmatprep.subr.bf16.mxu0 0
    %2414 = vmatpush1.bf16.msra.mxu0 %v2277
    %2415 = vmatprep.subr.bf16.mxu0 0
    %2416 = vmatpush1.bf16.msra.mxu0 %v2278
    %2417 = vmatprep.subr.bf16.mxu0 0
    %2418 = vmatpush1.bf16.msra.mxu0 %v2279
    %2419 = vmatprep.subr.bf16.mxu0 0
    %2420 = vmatpush1.bf16.msra.mxu0 %v2280
    %2421 = vmatprep.subr.bf16.mxu0 0
    %2422 = vmatpush1.bf16.msra.mxu0 %v2281
    %2423 = vmatprep.subr.bf16.mxu0 0
    %2424 = vmatpush1.bf16.msra.mxu0 %v2282
    %2425 = vmatprep.subr.bf16.mxu0 0
    %2426 = vmatpush1.bf16.msra.mxu0 %v2283
    %2427 = vmatprep.subr.bf16.mxu0 0
    %2428 = vmatpush1.bf16.msra.mxu0 %v2284
    %2429 = vmatprep.mubr.bf16.mxu0 %v2006
    %2430 = vmatmul.mubr.bf16.gmra.mrb[0].mxu0 %v2005
    %v2431 = vpop.f32.mrb[0].mxu0
    %v2432 = vadd.f32 0.0, %v2431
    %v2433 = vpop.f32.mrb[0].mxu0
    %v2434 = vpop.f32.mrb[0].mxu0
    %v2435 = vpop.f32.mrb[0].mxu0
    %2436 = vdwg.mxu0
    %2437 = vmatprep.subr.bf16.mxu0 0
    %2438 = vmatpush1.bf16.msra.mxu0 %v2285
    %2439 = vmatprep.subr.bf16.mxu0 0
    %2440 = vmatpush1.bf16.msra.mxu0 %v2286
    %2441 = vmatprep.subr.bf16.mxu0 0
    %2442 = vmatpush1.bf16.msra.mxu0 %v2287
    %2443 = vmatprep.subr.bf16.mxu0 0
    %2444 = vmatpush1.bf16.msra.mxu0 %v2288
    %2445 = vmatprep.subr.bf16.mxu0 0
    %2446 = vmatpush1.bf16.msra.mxu0 %v2289
    %2447 = vmatprep.subr.bf16.mxu0 0
    %2448 = vmatpush1.bf16.msra.mxu0 %v2290
    %2449 = vmatprep.subr.bf16.mxu0 0
    %2450 = vmatpush1.bf16.msra.mxu0 %v2291
    %2451 = vmatprep.subr.bf16.mxu0 0
    %2452 = vmatpush1.bf16.msra.mxu0 %v2292
    %2453 = vmatprep.subr.bf16.mxu0 0
    %2454 = vmatpush1.bf16.msra.mxu0 %v2293
    %2455 = vmatprep.subr.bf16.mxu0 0
    %2456 = vmatpush1.bf16.msra.mxu0 %v2294
    %2457 = vmatprep.subr.bf16.mxu0 0
    %2458 = vmatpush1.bf16.msra.mxu0 %v2295
    %2459 = vmatprep.subr.bf16.mxu0 0
    %2460 = vmatpush1.bf16.msra.mxu0 %v2296
    %2461 = vmatprep.subr.bf16.mxu0 0
    %2462 = vmatpush1.bf16.msra.mxu0 %v2297
    %2463 = vmatprep.subr.bf16.mxu0 0
    %2464 = vmatpush1.bf16.msra.mxu0 %v2298
    %2465 = vmatprep.subr.bf16.mxu0 0
    %2466 = vmatpush1.bf16.msra.mxu0 %v2299
    %2467 = vmatprep.subr.bf16.mxu0 0
    %2468 = vmatpush1.bf16.msra.mxu0 %v2300
    %2469 = vmatprep.mubr.bf16.mxu0 %v2008
    %2470 = vmatmul.mubr.bf16.gmra.mrb[0].mxu0 %v2007
    %v2471 = vpop.f32.mrb[0].mxu0
    %v2472 = vadd.f32 %v2432, %v2471
    %v2473 = vpop.f32.mrb[0].mxu0
    %v2474 = vpop.f32.mrb[0].mxu0
    %v2475 = vpop.f32.mrb[0].mxu0
    %2476 = vdwg.mxu0
    %2477 = vmatprep.subr.bf16.mxu0 0
    %2478 = vmatpush1.bf16.msra.mxu0 %v2301
    %2479 = vmatprep.subr.bf16.mxu0 0
    %2480 = vmatpush1.bf16.msra.mxu0 %v2302
    %2481 = vmatprep.subr.bf16.mxu0 0
    %2482 = vmatpush1.bf16.msra.mxu0 %v2303
    %2483 = vmatprep.subr.bf16.mxu0 0
    %2484 = vmatpush1.bf16.msra.mxu0 %v2304
    %2485 = vmatprep.subr.bf16.mxu0 0
    %2486 = vmatpush1.bf16.msra.mxu0 %v2305
    %2487 = vmatprep.subr.bf16.mxu0 0
    %2488 = vmatpush1.bf16.msra.mxu0 %v2306
    %2489 = vmatprep.subr.bf16.mxu0 0
    %2490 = vmatpush1.bf16.msra.mxu0 %v2307
    %2491 = vmatprep.subr.bf16.mxu0 0
    %2492 = vmatpush1.bf16.msra.mxu0 %v2308
    %2493 = vmatprep.subr.bf16.mxu0 0
    %2494 = vmatpush1.bf16.msra.mxu0 %v2309
    %2495 = vmatprep.subr.bf16.mxu0 0
    %2496 = vmatpush1.bf16.msra.mxu0 %v2310
    %2497 = vmatprep.subr.bf16.mxu0 0
    %2498 = vmatpush1.bf16.msra.mxu0 %v2311
    %2499 = vmatprep.subr.bf16.mxu0 0
    %2500 = vmatpush1.bf16.msra.mxu0 %v2312
    %2501 = vmatprep.subr.bf16.mxu0 0
    %2502 = vmatpush1.bf16.msra.mxu0 %v2313
    %2503 = vmatprep.subr.bf16.mxu0 0
    %2504 = vmatpush1.bf16.msra.mxu0 %v2314
    %2505 = vmatprep.subr.bf16.mxu0 0
    %2506 = vmatpush1.bf16.msra.mxu0 %v2315
    %2507 = vmatprep.subr.bf16.mxu0 0
    %2508 = vmatpush1.bf16.msra.mxu0 %v2316
    %2509 = vmatprep.mubr.bf16.mxu0 %v2010
    %2510 = vmatmul.mubr.bf16.gmra.mrb[0].mxu0 %v2009
    %v2511 = vpop.f32.mrb[0].mxu0
    %v2512 = vadd.f32 %v2472, %v2511
    %v2513 = vpop.f32.mrb[0].mxu0
    %v2514 = vpop.f32.mrb[0].mxu0
    %v2515 = vpop.f32.mrb[0].mxu0
    %2516 = vdwg.mxu0
    %2517 = vmatprep.subr.bf16.mxu0 0
    %2518 = vmatpush1.bf16.msra.mxu0 %v2317
    %2519 = vmatprep.subr.bf16.mxu0 0
    %2520 = vmatpush1.bf16.msra.mxu0 %v2318
    %2521 = vmatprep.subr.bf16.mxu0 0
    %2522 = vmatpush1.bf16.msra.mxu0 %v2319
    %2523 = vmatprep.subr.bf16.mxu0 0
    %2524 = vmatpush1.bf16.msra.mxu0 %v2320
    %2525 = vmatprep.subr.bf16.mxu0 0
    %2526 = vmatpush1.bf16.msra.mxu0 %v2321
    %2527 = vmatprep.subr.bf16.mxu0 0
    %2528 = vmatpush1.bf16.msra.mxu0 %v2322
    %2529 = vmatprep.subr.bf16.mxu0 0
    %2530 = vmatpush1.bf16.msra.mxu0 %v2323
    %2531 = vmatprep.subr.bf16.mxu0 0
    %2532 = vmatpush1.bf16.msra.mxu0 %v2324
    %2533 = vmatprep.subr.bf16.mxu0 0
    %2534 = vmatpush1.bf16.msra.mxu0 %v2325
    %2535 = vmatprep.subr.bf16.mxu0 0
    %2536 = vmatpush1.bf16.msra.mxu0 %v2326
    %2537 = vmatprep.subr.bf16.mxu0 0
    %2538 = vmatpush1.bf16.msra.mxu0 %v2327
    %2539 = vmatprep.subr.bf16.mxu0 0
    %2540 = vmatpush1.bf16.msra.mxu0 %v2328
    %2541 = vmatprep.subr.bf16.mxu0 0
    %2542 = vmatpush1.bf16.msra.mxu0 %v2329
    %2543 = vmatprep.subr.bf16.mxu0 0
    %2544 = vmatpush1.bf16.msra.mxu0 %v2330
    %2545 = vmatprep.subr.bf16.mxu0 0
    %2546 = vmatpush1.bf16.msra.mxu0 %v2331
    %2547 = vmatprep.subr.bf16.mxu0 0
    %2548 = vmatpush1.bf16.msra.mxu0 %v2332
    %2549 = vmatprep.mubr.bf16.mxu0 %v2012
    %2550 = vmatmul.mubr.bf16.gmra.mrb[0].mxu0 %v2011
    %v2551 = vpop.f32.mrb[0].mxu0
    %v2552 = vadd.f32 %v2512, %v2551
    %v2553 = vpop.f32.mrb[0].mxu0
    %v2554 = vpop.f32.mrb[0].mxu0
    %v2555 = vpop.f32.mrb[0].mxu0
    %2556 = vdwg.mxu0
    %v2557 = vpack.c.bf16 %v1722, %v1721
    %2558 = vmatprep.subr.bf16.mxu0 0
    %2559 = vmatpush1.bf16.msra.mxu0 %v2557
    %2560 = vmatprep.subr.bf16.mxu0 0
    %2561 = vmatpush1.bf16.msra.mxu0 0
    %2562 = vmatprep.subr.bf16.mxu0 0
    %2563 = vmatpush1.bf16.msra.mxu0 0
    %2564 = vmatprep.subr.bf16.mxu0 0
    %2565 = vmatpush1.bf16.msra.mxu0 0
    %2566 = vmatprep.subr.bf16.mxu0 0
    %2567 = vmatpush1.bf16.msra.mxu0 0
    %2568 = vmatprep.subr.bf16.mxu0 0
    %2569 = vmatpush1.bf16.msra.mxu0 0
    %2570 = vmatprep.subr.bf16.mxu0 0
    %2571 = vmatpush1.bf16.msra.mxu0 0
    %2572 = vmatprep.subr.bf16.mxu0 0
    %2573 = vmatpush1.bf16.msra.mxu0 0
    %2574 = vmatprep.subr.bf16.mxu0 0
    %2575 = vmatpush1.bf16.msra.mxu0 0
    %2576 = vmatprep.subr.bf16.mxu0 0
    %2577 = vmatpush1.bf16.msra.mxu0 0
    %2578 = vmatprep.subr.bf16.mxu0 0
    %2579 = vmatpush1.bf16.msra.mxu0 0
    %2580 = vmatprep.subr.bf16.mxu0 0
    %2581 = vmatpush1.bf16.msra.mxu0 0
    %2582 = vmatprep.subr.bf16.mxu0 0
    %2583 = vmatpush1.bf16.msra.mxu0 0
    %2584 = vmatprep.subr.bf16.mxu0 0
    %2585 = vmatpush1.bf16.msra.mxu0 0
    %2586 = vmatprep.subr.bf16.mxu0 0
    %2587 = vmatpush1.bf16.msra.mxu0 0
    %2588 = vmatprep.subr.bf16.mxu0 0
    %2589 = vmatpush1.bf16.msra.mxu0 0
    %2590 = vmatprep.mubr.bf16.mxu0 0
    %2591 = vmatmul.mubr.bf16.gmra.mrb[0].mxu0 %v1881
    %v2592 = vpop.f32.mrb[0].mxu0
    %v2593 = vadd.f32 0.0, %v2592
    %v2594 = vpop.f32.mrb[0].mxu0
    %v2595 = vpop.f32.mrb[0].mxu0
    %v2596 = vadd.f32 0.0, %v2595
    %v2597 = vpop.f32.mrb[0].mxu0
    %2598 = vmatprep.mubr.bf16.mxu0 0
    %2599 = vmatmul.mubr.bf16.gmra.mrb[0].mxu0 %v1884
    %v2600 = vpop.f32.mrb[0].mxu0
    %v2601 = vadd.f32 0.0, %v2600
    %v2602 = vpop.f32.mrb[0].mxu0
    %v2603 = vpop.f32.mrb[0].mxu0
    %v2604 = vadd.f32 0.0, %v2603
    %v2605 = vpop.f32.mrb[0].mxu0
    %2606 = vmatprep.mubr.bf16.mxu0 0
    %2607 = vmatmul.mubr.bf16.gmra.mrb[0].mxu0 %v1887
    %v2608 = vpop.f32.mrb[0].mxu0
    %v2609 = vadd.f32 0.0, %v2608
    %v2610 = vpop.f32.mrb[0].mxu0
    %v2611 = vpop.f32.mrb[0].mxu0
    %v2612 = vadd.f32 0.0, %v2611
    %v2613 = vpop.f32.mrb[0].mxu0
    %2614 = vmatprep.mubr.bf16.mxu0 0
    %2615 = vmatmul.mubr.bf16.gmra.mrb[0].mxu0 %v1890
    %v2616 = vpop.f32.mrb[0].mxu0
    %v2617 = vadd.f32 0.0, %v2616
    %v2618 = vpop.f32.mrb[0].mxu0
    %v2619 = vpop.f32.mrb[0].mxu0
    %v2620 = vadd.f32 0.0, %v2619
    %v2621 = vpop.f32.mrb[0].mxu0
    %2622 = vdwg.mxu0
    %v2624 = vrot.slane %v2593, 4
    %2625 = vrot.lane.b32.xlu0 %v2624, 64
    %v2626 = vpop.permute.xlu0 %2625
    %v2629 = vrot.slane %v2596, 4
    %2630 = vrot.lane.b32.xlu0 %v2629, 64
    %v2631 = vpop.permute.xlu0 %2630
    %v2634 = vrot.slane %v2601, 4
    %2635 = vrot.lane.b32.xlu0 %v2634, 64
    %v2636 = vpop.permute.xlu0 %2635
    %v2639 = vrot.slane %v2604, 4
    %2640 = vrot.lane.b32.xlu0 %v2639, 64
    %v2641 = vpop.permute.xlu0 %2640
    %v2644 = vrot.slane %v2609, 4
    %2645 = vrot.lane.b32.xlu0 %v2644, 64
    %v2646 = vpop.permute.xlu0 %2645
    %v2649 = vrot.slane %v2612, 4
    %2650 = vrot.lane.b32.xlu0 %v2649, 64
    %v2651 = vpop.permute.xlu0 %2650
    %v2654 = vrot.slane %v2617, 4
    %2655 = vrot.lane.b32.xlu0 %v2654, 64
    %v2656 = vpop.permute.xlu0 %2655
    %v2659 = vrot.slane %v2620, 4
    %2660 = vrot.lane.b32.xlu0 %v2659, 64
    %v2661 = vpop.permute.xlu0 %2660
    %v2663 = vsel %vm658, %v2593, %v2626
    %v2664 = vsel %vm658, %v2596, %v2631
    %v2665 = vsel %vm658, %v2601, %v2636
    %v2666 = vsel %vm658, %v2604, %v2641
    %v2667 = vsel %vm658, %v2609, %v2646
    %v2668 = vsel %vm658, %v2612, %v2651
    %v2669 = vsel %vm658, %v2617, %v2656
    %v2670 = vsel %vm658, %v2620, %v2661
    %v2671 = vpack.c.bf16 %v2663, %v2663
    %v2672 = vpack.c.bf16 %v2664, %v2664
    %v2673 = vpack.c.bf16 %v2665, %v2665
    %v2674 = vpack.c.bf16 %v2666, %v2666
    %v2675 = vpack.c.bf16 %v2667, %v2667
    %v2676 = vpack.c.bf16 %v2668, %v2668
    %v2677 = vpack.c.bf16 %v2669, %v2669
    %v2678 = vpack.c.bf16 %v2670, %v2670
    %2679 = vmatprep.subr.bf16.mxu0 0
    %2680 = vmatpush1.bf16.msra.mxu0 %v2269
    %2681 = vmatprep.subr.bf16.mxu0 0
    %2682 = vmatpush1.bf16.msra.mxu0 %v2270
    %2683 = vmatprep.subr.bf16.mxu0 0
    %2684 = vmatpush1.bf16.msra.mxu0 %v2271
    %2685 = vmatprep.subr.bf16.mxu0 0
    %2686 = vmatpush1.bf16.msra.mxu0 %v2272
    %2687 = vmatprep.subr.bf16.mxu0 0
    %2688 = vmatpush1.bf16.msra.mxu0 %v2273
    %2689 = vmatprep.subr.bf16.mxu0 0
    %2690 = vmatpush1.bf16.msra.mxu0 %v2274
    %2691 = vmatprep.subr.bf16.mxu0 0
    %2692 = vmatpush1.bf16.msra.mxu0 %v2275
    %2693 = vmatprep.subr.bf16.mxu0 0
    %2694 = vmatpush1.bf16.msra.mxu0 %v2276
    %2695 = vmatprep.subr.bf16.mxu0 0
    %2696 = vmatpush1.bf16.msra.mxu0 %v2277
    %2697 = vmatprep.subr.bf16.mxu0 0
    %2698 = vmatpush1.bf16.msra.mxu0 %v2278
    %2699 = vmatprep.subr.bf16.mxu0 0
    %2700 = vmatpush1.bf16.msra.mxu0 %v2279
    %2701 = vmatprep.subr.bf16.mxu0 0
    %2702 = vmatpush1.bf16.msra.mxu0 %v2280
    %2703 = vmatprep.subr.bf16.mxu0 0
    %2704 = vmatpush1.bf16.msra.mxu0 %v2281
    %2705 = vmatprep.subr.bf16.mxu0 0
    %2706 = vmatpush1.bf16.msra.mxu0 %v2282
    %2707 = vmatprep.subr.bf16.mxu0 0
    %2708 = vmatpush1.bf16.msra.mxu0 %v2283
    %2709 = vmatprep.subr.bf16.mxu0 0
    %2710 = vmatpush1.bf16.msra.mxu0 %v2284
    %2711 = vmatprep.mubr.bf16.mxu0 %v2672
    %2712 = vmatmul.mubr.bf16.gmra.mrb[0].mxu0 %v2671
    %v2713 = vpop.f32.mrb[0].mxu0
    %v2714 = vadd.f32 0.0, %v2713
    %v2715 = vpop.f32.mrb[0].mxu0
    %v2716 = vpop.f32.mrb[0].mxu0
    %v2717 = vpop.f32.mrb[0].mxu0
    %2718 = vdwg.mxu0
    %2719 = vmatprep.subr.bf16.mxu0 0
    %2720 = vmatpush1.bf16.msra.mxu0 %v2285
    %2721 = vmatprep.subr.bf16.mxu0 0
    %2722 = vmatpush1.bf16.msra.mxu0 %v2286
    %2723 = vmatprep.subr.bf16.mxu0 0
    %2724 = vmatpush1.bf16.msra.mxu0 %v2287
    %2725 = vmatprep.subr.bf16.mxu0 0
    %2726 = vmatpush1.bf16.msra.mxu0 %v2288
    %2727 = vmatprep.subr.bf16.mxu0 0
    %2728 = vmatpush1.bf16.msra.mxu0 %v2289
    %2729 = vmatprep.subr.bf16.mxu0 0
    %2730 = vmatpush1.bf16.msra.mxu0 %v2290
    %2731 = vmatprep.subr.bf16.mxu0 0
    %2732 = vmatpush1.bf16.msra.mxu0 %v2291
    %2733 = vmatprep.subr.bf16.mxu0 0
    %2734 = vmatpush1.bf16.msra.mxu0 %v2292
    %2735 = vmatprep.subr.bf16.mxu0 0
    %2736 = vmatpush1.bf16.msra.mxu0 %v2293
    %2737 = vmatprep.subr.bf16.mxu0 0
    %2738 = vmatpush1.bf16.msra.mxu0 %v2294
    %2739 = vmatprep.subr.bf16.mxu0 0
    %2740 = vmatpush1.bf16.msra.mxu0 %v2295
    %2741 = vmatprep.subr.bf16.mxu0 0
    %2742 = vmatpush1.bf16.msra.mxu0 %v2296
    %2743 = vmatprep.subr.bf16.mxu0 0
    %2744 = vmatpush1.bf16.msra.mxu0 %v2297
    %2745 = vmatprep.subr.bf16.mxu0 0
    %2746 = vmatpush1.bf16.msra.mxu0 %v2298
    %2747 = vmatprep.subr.bf16.mxu0 0
    %2748 = vmatpush1.bf16.msra.mxu0 %v2299
    %2749 = vmatprep.subr.bf16.mxu0 0
    %2750 = vmatpush1.bf16.msra.mxu0 %v2300
    %2751 = vmatprep.mubr.bf16.mxu0 %v2674
    %2752 = vmatmul.mubr.bf16.gmra.mrb[0].mxu0 %v2673
    %v2753 = vpop.f32.mrb[0].mxu0
    %v2754 = vadd.f32 %v2714, %v2753
    %v2755 = vpop.f32.mrb[0].mxu0
    %v2756 = vpop.f32.mrb[0].mxu0
    %v2757 = vpop.f32.mrb[0].mxu0
    %2758 = vdwg.mxu0
    %2759 = vmatprep.subr.bf16.mxu0 0
    %2760 = vmatpush1.bf16.msra.mxu0 %v2301
    %2761 = vmatprep.subr.bf16.mxu0 0
    %2762 = vmatpush1.bf16.msra.mxu0 %v2302
    %2763 = vmatprep.subr.bf16.mxu0 0
    %2764 = vmatpush1.bf16.msra.mxu0 %v2303
    %2765 = vmatprep.subr.bf16.mxu0 0
    %2766 = vmatpush1.bf16.msra.mxu0 %v2304
    %2767 = vmatprep.subr.bf16.mxu0 0
    %2768 = vmatpush1.bf16.msra.mxu0 %v2305
    %2769 = vmatprep.subr.bf16.mxu0 0
    %2770 = vmatpush1.bf16.msra.mxu0 %v2306
    %2771 = vmatprep.subr.bf16.mxu0 0
    %2772 = vmatpush1.bf16.msra.mxu0 %v2307
    %2773 = vmatprep.subr.bf16.mxu0 0
    %2774 = vmatpush1.bf16.msra.mxu0 %v2308
    %2775 = vmatprep.subr.bf16.mxu0 0
    %2776 = vmatpush1.bf16.msra.mxu0 %v2309
    %2777 = vmatprep.subr.bf16.mxu0 0
    %2778 = vmatpush1.bf16.msra.mxu0 %v2310
    %2779 = vmatprep.subr.bf16.mxu0 0
    %2780 = vmatpush1.bf16.msra.mxu0 %v2311
    %2781 = vmatprep.subr.bf16.mxu0 0
    %2782 = vmatpush1.bf16.msra.mxu0 %v2312
    %2783 = vmatprep.subr.bf16.mxu0 0
    %2784 = vmatpush1.bf16.msra.mxu0 %v2313
    %2785 = vmatprep.subr.bf16.mxu0 0
    %2786 = vmatpush1.bf16.msra.mxu0 %v2314
    %2787 = vmatprep.subr.bf16.mxu0 0
    %2788 = vmatpush1.bf16.msra.mxu0 %v2315
    %2789 = vmatprep.subr.bf16.mxu0 0
    %2790 = vmatpush1.bf16.msra.mxu0 %v2316
    %2791 = vmatprep.mubr.bf16.mxu0 %v2676
    %2792 = vmatmul.mubr.bf16.gmra.mrb[0].mxu0 %v2675
    %v2793 = vpop.f32.mrb[0].mxu0
    %v2794 = vadd.f32 %v2754, %v2793
    %v2795 = vpop.f32.mrb[0].mxu0
    %v2796 = vpop.f32.mrb[0].mxu0
    %v2797 = vpop.f32.mrb[0].mxu0
    %2798 = vdwg.mxu0
    %2799 = vmatprep.subr.bf16.mxu0 0
    %2800 = vmatpush1.bf16.msra.mxu0 %v2317
    %2801 = vmatprep.subr.bf16.mxu0 0
    %2802 = vmatpush1.bf16.msra.mxu0 %v2318
    %2803 = vmatprep.subr.bf16.mxu0 0
    %2804 = vmatpush1.bf16.msra.mxu0 %v2319
    %2805 = vmatprep.subr.bf16.mxu0 0
    %2806 = vmatpush1.bf16.msra.mxu0 %v2320
    %2807 = vmatprep.subr.bf16.mxu0 0
    %2808 = vmatpush1.bf16.msra.mxu0 %v2321
    %2809 = vmatprep.subr.bf16.mxu0 0
    %2810 = vmatpush1.bf16.msra.mxu0 %v2322
    %2811 = vmatprep.subr.bf16.mxu0 0
    %2812 = vmatpush1.bf16.msra.mxu0 %v2323
    %2813 = vmatprep.subr.bf16.mxu0 0
    %2814 = vmatpush1.bf16.msra.mxu0 %v2324
    %2815 = vmatprep.subr.bf16.mxu0 0
    %2816 = vmatpush1.bf16.msra.mxu0 %v2325
    %2817 = vmatprep.subr.bf16.mxu0 0
    %2818 = vmatpush1.bf16.msra.mxu0 %v2326
    %2819 = vmatprep.subr.bf16.mxu0 0
    %2820 = vmatpush1.bf16.msra.mxu0 %v2327
    %2821 = vmatprep.subr.bf16.mxu0 0
    %2822 = vmatpush1.bf16.msra.mxu0 %v2328
    %2823 = vmatprep.subr.bf16.mxu0 0
    %2824 = vmatpush1.bf16.msra.mxu0 %v2329
    %2825 = vmatprep.subr.bf16.mxu0 0
    %2826 = vmatpush1.bf16.msra.mxu0 %v2330
    %2827 = vmatprep.subr.bf16.mxu0 0
    %2828 = vmatpush1.bf16.msra.mxu0 %v2331
    %2829 = vmatprep.subr.bf16.mxu0 0
    %2830 = vmatpush1.bf16.msra.mxu0 %v2332
    %2831 = vmatprep.mubr.bf16.mxu0 %v2678
    %2832 = vmatmul.mubr.bf16.gmra.mrb[0].mxu0 %v2677
    %v2833 = vpop.f32.mrb[0].mxu0
    %v2834 = vadd.f32 %v2794, %v2833
    %v2835 = vpop.f32.mrb[0].mxu0
    %v2836 = vpop.f32.mrb[0].mxu0
    %v2837 = vpop.f32.mrb[0].mxu0
    %2838 = vdwg.mxu0
    %v2840 = vrot.slane %v2834, 4
    %vm2842 = vcmask 1043456
    %v2843 = vsel %vm2842, %v2552, %v2840
    %v2844 = vld [vmem:[%s12] sm:$0x1]
    %v2846 = vlaneseq
    %v2847 = vshrl.u32 %v2846, 7
    %v2848 = vsub.s32 0, %v2847
    %v2849 = vrot.slane %v2844, %v2848
    %v2851 = vadd.f32 %v2843, %v2849
    %v2852 = vld [vmem:[%s13] sm:$0x1]
    %v2853 = vld [vmem:[%s14] sm:$0x1]
    %vm2854 = vcmp.ge.f32.partialorder %v2851, 0.0
    %v2855 = vmul.f32 %v2851, 0.01
    %v2856 = vsel %vm2854, %v2851, %v2855
    %v2857 = vrot.slane %v2856, 4
    %v2858 = vadd.f32 %v2856, %v2857
    %v2859 = vrot.slane %v2858, 2
    %v2860 = vadd.f32 %v2858, %v2859
    %v2861 = vrot.slane %v2860, 1
    %v2862 = vadd.f32 %v2860, %v2861
    %v2863 = vmul.f32 %v2862, 0.125
    %v2864 = vmul.f32 %v2856, %v2856
    %v2865 = vrot.slane %v2864, 4
    %v2866 = vadd.f32 %v2864, %v2865
    %v2867 = vrot.slane %v2866, 2
    %v2868 = vadd.f32 %v2866, %v2867
    %v2869 = vrot.slane %v2868, 1
    %v2870 = vadd.f32 %v2868, %v2869
    %v2871 = vmul.f32 %v2870, 0.125
    %v2872 = vmul.f32 %v2863, %v2863
    %v2873 = vsub.f32 %v2871, %v2872
    %v2874 = vmax.f32 %v2873, 0.0
    %v2875 = vadd.f32 %v2874, 1e-05
    %v2876 = vrsqrt.pop %v2875
    %v2877 = vmul.f32 %v2876, %v2852
    %v2878 = vsub.f32 %v2856, %v2863
    %v2879 = vlaneseq
    %v2880 = vshrl.u32 %v2879, 7
    %v2881 = vsub.s32 0, %v2880
    %v2882 = vrot.slane %v2877, %v2881
    %v2883 = vmul.f32 %v2878, %v2882
    %v2885 = vlaneseq
    %v2886 = vshrl.u32 %v2885, 7
    %v2887 = vsub.s32 0, %v2886
    %v2888 = vrot.slane %v2853, %v2887
    %v2890 = vadd.f32 %v2883, %v2888
    %v2892 = vrot.slane %v2890, 1
    %v2894 = vrot.slane %v2890, 2
    %v2896 = vrot.slane %v2890, 3
    %v2898 = vrot.slane %v2892, 3
    %v2899 = vrot.slane %v2894, 3
    %v2900 = vrot.slane %v2896, 3
    %vm2904 = vcmask 1040384
    %v2905 = vsel %vm2904, %v2890, %v2896
    %v2906 = vsel %vm2904, %v2892, %v2898
    %v2907 = vsel %vm2904, %v2894, %v2899
    %v2908 = vsel %vm2904, %v2896, %v2900
    %v2909 = vpack.c.bf16 %v2905, %v2905
    %v2910 = vpack.c.bf16 %v2906, %v2906
    %v2911 = vpack.c.bf16 %v2907, %v2907
    %v2912 = vpack.c.bf16 %v2908, %v2908
    %v2913 = vld [vmem:[#allocation2] sm:$0xff]
    %v2914 = vld [vmem:[#allocation2 + $0x8] sm:$0xff]
    %v2915 = vld [vmem:[#allocation2 + $0x10] sm:$0xff]
    %v2916 = vld [vmem:[#allocation2 + $0x18] sm:$0xff]
    %v2917 = vld [vmem:[#allocation2 + $0x20] sm:$0xff]
    %v2918 = vld [vmem:[#allocation2 + $0x28] sm:$0xff]
    %v2919 = vld [vmem:[#allocation2 + $0x30] sm:$0xff]
    %v2920 = vld [vmem:[#allocation2 + $0x38] sm:$0xff]
    %v2921 = vld [vmem:[#allocation2 + $0x40] sm:$0xff]
    %v2922 = vld [vmem:[#allocation2 + $0x48] sm:$0xff]
    %v2923 = vld [vmem:[#allocation2 + $0x50] sm:$0xff]
    %v2924 = vld [vmem:[#allocation2 + $0x58] sm:$0xff]
    %v2925 = vld [vmem:[#allocation2 + $0x60] sm:$0xff]
    %v2926 = vld [vmem:[#allocation2 + $0x68] sm:$0xff]
    %v2927 = vld [vmem:[#allocation2 + $0x70] sm:$0xff]
    %v2928 = vld [vmem:[#allocation2 + $0x78] sm:$0xff]
    %v2929 = vld [vmem:[#allocation2 + $0x80] sm:$0xff]
    %v2930 = vld [vmem:[#allocation2 + $0x88] sm:$0xff]
    %v2931 = vld [vmem:[#allocation2 + $0x90] sm:$0xff]
    %v2932 = vld [vmem:[#allocation2 + $0x98] sm:$0xff]
    %v2933 = vld [vmem:[#allocation2 + $0xa0] sm:$0xff]
    %v2934 = vld [vmem:[#allocation2 + $0xa8] sm:$0xff]
    %v2935 = vld [vmem:[#allocation2 + $0xb0] sm:$0xff]
    %v2936 = vld [vmem:[#allocation2 + $0xb8] sm:$0xff]
    %v2937 = vld [vmem:[#allocation2 + $0xc0] sm:$0xff]
    %v2938 = vld [vmem:[#allocation2 + $0xc8] sm:$0xff]
    %v2939 = vld [vmem:[#allocation2 + $0xd0] sm:$0xff]
    %v2940 = vld [vmem:[#allocation2 + $0xd8] sm:$0xff]
    %v2941 = vld [vmem:[#allocation2 + $0xe0] sm:$0xff]
    %v2942 = vld [vmem:[#allocation2 + $0xe8] sm:$0xff]
    %v2943 = vld [vmem:[#allocation2 + $0xf0] sm:$0xff]
    %v2944 = vld [vmem:[#allocation2 + $0xf8] sm:$0xff]
    %v2945 = vld [vmem:[#allocation2 + $0x100] sm:$0xff]
    %v2946 = vld [vmem:[#allocation2 + $0x108] sm:$0xff]
    %v2947 = vld [vmem:[#allocation2 + $0x110] sm:$0xff]
    %v2948 = vld [vmem:[#allocation2 + $0x118] sm:$0xff]
    %v2949 = vld [vmem:[#allocation2 + $0x120] sm:$0xff]
    %v2950 = vld [vmem:[#allocation2 + $0x128] sm:$0xff]
    %v2951 = vld [vmem:[#allocation2 + $0x130] sm:$0xff]
    %v2952 = vld [vmem:[#allocation2 + $0x138] sm:$0xff]
    %v2953 = vld [vmem:[#allocation2 + $0x140] sm:$0xff]
    %v2954 = vld [vmem:[#allocation2 + $0x148] sm:$0xff]
    %v2955 = vld [vmem:[#allocation2 + $0x150] sm:$0xff]
    %v2956 = vld [vmem:[#allocation2 + $0x158] sm:$0xff]
    %v2957 = vld [vmem:[#allocation2 + $0x160] sm:$0xff]
    %v2958 = vld [vmem:[#allocation2 + $0x168] sm:$0xff]
    %v2959 = vld [vmem:[#allocation2 + $0x170] sm:$0xff]
    %v2960 = vld [vmem:[#allocation2 + $0x178] sm:$0xff]
    %v2961 = vld [vmem:[#allocation2 + $0x180] sm:$0xff]
    %v2962 = vld [vmem:[#allocation2 + $0x188] sm:$0xff]
    %v2963 = vld [vmem:[#allocation2 + $0x190] sm:$0xff]
    %v2964 = vld [vmem:[#allocation2 + $0x198] sm:$0xff]
    %v2965 = vld [vmem:[#allocation2 + $0x1a0] sm:$0xff]
    %v2966 = vld [vmem:[#allocation2 + $0x1a8] sm:$0xff]
    %v2967 = vld [vmem:[#allocation2 + $0x1b0] sm:$0xff]
    %v2968 = vld [vmem:[#allocation2 + $0x1b8] sm:$0xff]
    %v2969 = vld [vmem:[#allocation2 + $0x1c0] sm:$0xff]
    %v2970 = vld [vmem:[#allocation2 + $0x1c8] sm:$0xff]
    %v2971 = vld [vmem:[#allocation2 + $0x1d0] sm:$0xff]
    %v2972 = vld [vmem:[#allocation2 + $0x1d8] sm:$0xff]
    %v2973 = vld [vmem:[#allocation2 + $0x1e0] sm:$0xff]
    %v2974 = vld [vmem:[#allocation2 + $0x1e8] sm:$0xff]
    %v2975 = vld [vmem:[#allocation2 + $0x1f0] sm:$0xff]
    %v2976 = vld [vmem:[#allocation2 + $0x1f8] sm:$0xff]
    %v2977 = vld [vmem:[#allocation2 + $0x200] sm:$0xff]
    %v2978 = vld [vmem:[#allocation2 + $0x208] sm:$0xff]
    %v2979 = vld [vmem:[#allocation2 + $0x210] sm:$0xff]
    %v2980 = vld [vmem:[#allocation2 + $0x218] sm:$0xff]
    %v2981 = vld [vmem:[#allocation2 + $0x220] sm:$0xff]
    %v2982 = vld [vmem:[#allocation2 + $0x228] sm:$0xff]
    %v2983 = vld [vmem:[#allocation2 + $0x230] sm:$0xff]
    %v2984 = vld [vmem:[#allocation2 + $0x238] sm:$0xff]
    %v2985 = vld [vmem:[#allocation2 + $0x240] sm:$0xff]
    %v2986 = vld [vmem:[#allocation2 + $0x248] sm:$0xff]
    %v2987 = vld [vmem:[#allocation2 + $0x250] sm:$0xff]
    %v2988 = vld [vmem:[#allocation2 + $0x258] sm:$0xff]
    %v2989 = vld [vmem:[#allocation2 + $0x260] sm:$0xff]
    %v2990 = vld [vmem:[#allocation2 + $0x268] sm:$0xff]
    %v2991 = vld [vmem:[#allocation2 + $0x270] sm:$0xff]
    %v2992 = vld [vmem:[#allocation2 + $0x278] sm:$0xff]
    %v2993 = vld [vmem:[#allocation2 + $0x280] sm:$0xff]
    %v2994 = vld [vmem:[#allocation2 + $0x288] sm:$0xff]
    %v2995 = vld [vmem:[#allocation2 + $0x290] sm:$0xff]
    %v2996 = vld [vmem:[#allocation2 + $0x298] sm:$0xff]
    %v2997 = vld [vmem:[#allocation2 + $0x2a0] sm:$0xff]
    %v2998 = vld [vmem:[#allocation2 + $0x2a8] sm:$0xff]
    %v2999 = vld [vmem:[#allocation2 + $0x2b0] sm:$0xff]
    %v3000 = vld [vmem:[#allocation2 + $0x2b8] sm:$0xff]
    %v3001 = vld [vmem:[#allocation2 + $0x2c0] sm:$0xff]
    %v3002 = vld [vmem:[#allocation2 + $0x2c8] sm:$0xff]
    %v3003 = vld [vmem:[#allocation2 + $0x2d0] sm:$0xff]
    %v3004 = vld [vmem:[#allocation2 + $0x2d8] sm:$0xff]
    %v3005 = vld [vmem:[#allocation2 + $0x2e0] sm:$0xff]
    %v3006 = vld [vmem:[#allocation2 + $0x2e8] sm:$0xff]
    %v3007 = vld [vmem:[#allocation2 + $0x2f0] sm:$0xff]
    %v3008 = vld [vmem:[#allocation2 + $0x2f8] sm:$0xff]
    %v3009 = vld [vmem:[#allocation2 + $0x300] sm:$0xff]
    %v3010 = vld [vmem:[#allocation2 + $0x308] sm:$0xff]
    %v3011 = vld [vmem:[#allocation2 + $0x310] sm:$0xff]
    %v3012 = vld [vmem:[#allocation2 + $0x318] sm:$0xff]
    %v3013 = vld [vmem:[#allocation2 + $0x320] sm:$0xff]
    %v3014 = vld [vmem:[#allocation2 + $0x328] sm:$0xff]
    %v3015 = vld [vmem:[#allocation2 + $0x330] sm:$0xff]
    %v3016 = vld [vmem:[#allocation2 + $0x338] sm:$0xff]
    %v3017 = vld [vmem:[#allocation2 + $0x340] sm:$0xff]
    %v3018 = vld [vmem:[#allocation2 + $0x348] sm:$0xff]
    %v3019 = vld [vmem:[#allocation2 + $0x350] sm:$0xff]
    %v3020 = vld [vmem:[#allocation2 + $0x358] sm:$0xff]
    %v3021 = vld [vmem:[#allocation2 + $0x360] sm:$0xff]
    %v3022 = vld [vmem:[#allocation2 + $0x368] sm:$0xff]
    %v3023 = vld [vmem:[#allocation2 + $0x370] sm:$0xff]
    %v3024 = vld [vmem:[#allocation2 + $0x378] sm:$0xff]
    %v3025 = vld [vmem:[#allocation2 + $0x380] sm:$0xff]
    %v3026 = vld [vmem:[#allocation2 + $0x388] sm:$0xff]
    %v3027 = vld [vmem:[#allocation2 + $0x390] sm:$0xff]
    %v3028 = vld [vmem:[#allocation2 + $0x398] sm:$0xff]
    %v3029 = vld [vmem:[#allocation2 + $0x3a0] sm:$0xff]
    %v3030 = vld [vmem:[#allocation2 + $0x3a8] sm:$0xff]
    %v3031 = vld [vmem:[#allocation2 + $0x3b0] sm:$0xff]
    %v3032 = vld [vmem:[#allocation2 + $0x3b8] sm:$0xff]
    %v3033 = vld [vmem:[#allocation2 + $0x3c0] sm:$0xff]
    %v3034 = vld [vmem:[#allocation2 + $0x3c8] sm:$0xff]
    %v3035 = vld [vmem:[#allocation2 + $0x3d0] sm:$0xff]
    %v3036 = vld [vmem:[#allocation2 + $0x3d8] sm:$0xff]
    %v3037 = vld [vmem:[#allocation2 + $0x3e0] sm:$0xff]
    %v3038 = vld [vmem:[#allocation2 + $0x3e8] sm:$0xff]
    %v3039 = vld [vmem:[#allocation2 + $0x3f0] sm:$0xff]
    %v3040 = vld [vmem:[#allocation2 + $0x3f8] sm:$0xff]
    %v3041 = vld [vmem:[#allocation2 + $0x400] sm:$0xff]
    %v3042 = vld [vmem:[#allocation2 + $0x408] sm:$0xff]
    %v3043 = vld [vmem:[#allocation2 + $0x410] sm:$0xff]
    %v3044 = vld [vmem:[#allocation2 + $0x418] sm:$0xff]
    %v3045 = vld [vmem:[#allocation2 + $0x420] sm:$0xff]
    %v3046 = vld [vmem:[#allocation2 + $0x428] sm:$0xff]
    %v3047 = vld [vmem:[#allocation2 + $0x430] sm:$0xff]
    %v3048 = vld [vmem:[#allocation2 + $0x438] sm:$0xff]
    %v3049 = vld [vmem:[#allocation2 + $0x440] sm:$0xff]
    %v3050 = vld [vmem:[#allocation2 + $0x448] sm:$0xff]
    %v3051 = vld [vmem:[#allocation2 + $0x450] sm:$0xff]
    %v3052 = vld [vmem:[#allocation2 + $0x458] sm:$0xff]
    %v3053 = vld [vmem:[#allocation2 + $0x460] sm:$0xff]
    %v3054 = vld [vmem:[#allocation2 + $0x468] sm:$0xff]
    %v3055 = vld [vmem:[#allocation2 + $0x470] sm:$0xff]
    %v3056 = vld [vmem:[#allocation2 + $0x478] sm:$0xff]
    %v3057 = vld [vmem:[#allocation2 + $0x480] sm:$0xff]
    %v3058 = vld [vmem:[#allocation2 + $0x488] sm:$0xff]
    %v3059 = vld [vmem:[#allocation2 + $0x490] sm:$0xff]
    %v3060 = vld [vmem:[#allocation2 + $0x498] sm:$0xff]
    %v3061 = vld [vmem:[#allocation2 + $0x4a0] sm:$0xff]
    %v3062 = vld [vmem:[#allocation2 + $0x4a8] sm:$0xff]
    %v3063 = vld [vmem:[#allocation2 + $0x4b0] sm:$0xff]
    %v3064 = vld [vmem:[#allocation2 + $0x4b8] sm:$0xff]
    %v3065 = vld [vmem:[#allocation2 + $0x4c0] sm:$0xff]
    %v3066 = vld [vmem:[#allocation2 + $0x4c8] sm:$0xff]
    %v3067 = vld [vmem:[#allocation2 + $0x4d0] sm:$0xff]
    %v3068 = vld [vmem:[#allocation2 + $0x4d8] sm:$0xff]
    %v3069 = vld [vmem:[#allocation2 + $0x4e0] sm:$0xff]
    %v3070 = vld [vmem:[#allocation2 + $0x4e8] sm:$0xff]
    %v3071 = vld [vmem:[#allocation2 + $0x4f0] sm:$0xff]
    %v3072 = vld [vmem:[#allocation2 + $0x4f8] sm:$0xff]
    %v3073 = vld [vmem:[#allocation2 + $0x500] sm:$0xff]
    %v3074 = vld [vmem:[#allocation2 + $0x508] sm:$0xff]
    %v3075 = vld [vmem:[#allocation2 + $0x510] sm:$0xff]
    %v3076 = vld [vmem:[#allocation2 + $0x518] sm:$0xff]
    %v3077 = vld [vmem:[#allocation2 + $0x520] sm:$0xff]
    %v3078 = vld [vmem:[#allocation2 + $0x528] sm:$0xff]
    %v3079 = vld [vmem:[#allocation2 + $0x530] sm:$0xff]
    %v3080 = vld [vmem:[#allocation2 + $0x538] sm:$0xff]
    %v3081 = vld [vmem:[#allocation2 + $0x540] sm:$0xff]
    %v3082 = vld [vmem:[#allocation2 + $0x548] sm:$0xff]
    %v3083 = vld [vmem:[#allocation2 + $0x550] sm:$0xff]
    %v3084 = vld [vmem:[#allocation2 + $0x558] sm:$0xff]
    %v3085 = vld [vmem:[#allocation2 + $0x560] sm:$0xff]
    %v3086 = vld [vmem:[#allocation2 + $0x568] sm:$0xff]
    %v3087 = vld [vmem:[#allocation2 + $0x570] sm:$0xff]
    %v3088 = vld [vmem:[#allocation2 + $0x578] sm:$0xff]
    %v3089 = vld [vmem:[#allocation2 + $0x580] sm:$0xff]
    %v3090 = vld [vmem:[#allocation2 + $0x588] sm:$0xff]
    %v3091 = vld [vmem:[#allocation2 + $0x590] sm:$0xff]
    %v3092 = vld [vmem:[#allocation2 + $0x598] sm:$0xff]
    %v3093 = vld [vmem:[#allocation2 + $0x5a0] sm:$0xff]
    %v3094 = vld [vmem:[#allocation2 + $0x5a8] sm:$0xff]
    %v3095 = vld [vmem:[#allocation2 + $0x5b0] sm:$0xff]
    %v3096 = vld [vmem:[#allocation2 + $0x5b8] sm:$0xff]
    %v3097 = vld [vmem:[#allocation2 + $0x5c0] sm:$0xff]
    %v3098 = vld [vmem:[#allocation2 + $0x5c8] sm:$0xff]
    %v3099 = vld [vmem:[#allocation2 + $0x5d0] sm:$0xff]
    %v3100 = vld [vmem:[#allocation2 + $0x5d8] sm:$0xff]
    %v3101 = vld [vmem:[#allocation2 + $0x5e0] sm:$0xff]
    %v3102 = vld [vmem:[#allocation2 + $0x5e8] sm:$0xff]
    %v3103 = vld [vmem:[#allocation2 + $0x5f0] sm:$0xff]
    %v3104 = vld [vmem:[#allocation2 + $0x5f8] sm:$0xff]
    %v3105 = vld [vmem:[%s16] sm:$0x3f]
    %v3107 = vlaneseq
    %v3108 = vshrl.u32 %v3107, 7
    %v3109 = vsub.s32 0, %v3108
    %v3110 = vrot.slane %v3105, %v3109
    %v3111 = vlaneseq
    %v3112 = vshrl.u32 %v3111, 7
    %v3113 = vsub.s32 1, %v3112
    %v3114 = vrot.slane %v3105, %v3113
    %v3115 = vlaneseq
    %v3116 = vshrl.u32 %v3115, 7
    %v3117 = vsub.s32 2, %v3116
    %v3118 = vrot.slane %v3105, %v3117
    %v3119 = vlaneseq
    %v3120 = vshrl.u32 %v3119, 7
    %v3121 = vsub.s32 3, %v3120
    %v3122 = vrot.slane %v3105, %v3121
    %v3123 = vlaneseq
    %v3124 = vshrl.u32 %v3123, 7
    %v3125 = vsub.s32 4, %v3124
    %v3126 = vrot.slane %v3105, %v3125
    %v3127 = vlaneseq
    %v3128 = vshrl.u32 %v3127, 7
    %v3129 = vsub.s32 5, %v3128
    %v3130 = vrot.slane %v3105, %v3129
    %v3329 = vunpack.c.l.b16 %v2913
    %v3330 = vunpack.c.h.b16 %v2913
    %v3331 = vunpack.c.l.b16 %v2914
    %v3332 = vunpack.c.h.b16 %v2914
    %v3333 = vunpack.c.l.b16 %v2915
    %v3334 = vunpack.c.h.b16 %v2915
    %v3335 = vunpack.c.l.b16 %v2916
    %v3336 = vunpack.c.h.b16 %v2916
    %v3337 = vunpack.c.l.b16 %v2917
    %v3338 = vunpack.c.h.b16 %v2917
    %v3339 = vunpack.c.l.b16 %v2918
    %v3340 = vunpack.c.h.b16 %v2918
    %v3341 = vunpack.c.l.b16 %v2919
    %v3342 = vunpack.c.h.b16 %v2919
    %v3343 = vunpack.c.l.b16 %v2920
    %v3344 = vunpack.c.h.b16 %v2920
    %v3345 = vunpack.c.l.b16 %v2921
    %v3346 = vunpack.c.h.b16 %v2921
    %v3347 = vunpack.c.l.b16 %v2922
    %v3348 = vunpack.c.h.b16 %v2922
    %v3349 = vunpack.c.l.b16 %v2923
    %v3350 = vunpack.c.h.b16 %v2923
    %v3351 = vunpack.c.l.b16 %v2924
    %v3352 = vunpack.c.h.b16 %v2924
    %v3353 = vunpack.c.l.b16 %v2925
    %v3354 = vunpack.c.h.b16 %v2925
    %v3355 = vunpack.c.l.b16 %v2926
    %v3356 = vunpack.c.h.b16 %v2926
    %v3357 = vunpack.c.l.b16 %v2927
    %v3358 = vunpack.c.h.b16 %v2927
    %v3359 = vunpack.c.l.b16 %v2928
    %v3360 = vunpack.c.h.b16 %v2928
    %v3361 = vunpack.c.l.b16 %v2929
    %v3362 = vunpack.c.h.b16 %v2929
    %v3363 = vunpack.c.l.b16 %v2930
    %v3364 = vunpack.c.h.b16 %v2930
    %v3365 = vunpack.c.l.b16 %v2931
    %v3366 = vunpack.c.h.b16 %v2931
    %v3367 = vunpack.c.l.b16 %v2932
    %v3368 = vunpack.c.h.b16 %v2932
    %v3369 = vunpack.c.l.b16 %v2933
    %v3370 = vunpack.c.h.b16 %v2933
    %v3371 = vunpack.c.l.b16 %v2934
    %v3372 = vunpack.c.h.b16 %v2934
    %v3373 = vunpack.c.l.b16 %v2935
    %v3374 = vunpack.c.h.b16 %v2935
    %v3375 = vunpack.c.l.b16 %v2936
    %v3376 = vunpack.c.h.b16 %v2936
    %v3377 = vunpack.c.l.b16 %v2937
    %v3378 = vunpack.c.h.b16 %v2937
    %v3379 = vunpack.c.l.b16 %v2938
    %v3380 = vunpack.c.h.b16 %v2938
    %v3381 = vunpack.c.l.b16 %v2939
    %v3382 = vunpack.c.h.b16 %v2939
    %v3383 = vunpack.c.l.b16 %v2940
    %v3384 = vunpack.c.h.b16 %v2940
    %v3385 = vunpack.c.l.b16 %v2941
    %v3386 = vunpack.c.h.b16 %v2941
    %v3387 = vunpack.c.l.b16 %v2942
    %v3388 = vunpack.c.h.b16 %v2942
    %v3389 = vunpack.c.l.b16 %v2943
    %v3390 = vunpack.c.h.b16 %v2943
    %v3391 = vunpack.c.l.b16 %v2944
    %v3392 = vunpack.c.h.b16 %v2944
    %v3393 = vunpack.c.l.b16 %v2945
    %v3394 = vunpack.c.h.b16 %v2945
    %v3395 = vunpack.c.l.b16 %v2946
    %v3396 = vunpack.c.h.b16 %v2946
    %v3397 = vunpack.c.l.b16 %v2947
    %v3398 = vunpack.c.h.b16 %v2947
    %v3399 = vunpack.c.l.b16 %v2948
    %v3400 = vunpack.c.h.b16 %v2948
    %v3401 = vunpack.c.l.b16 %v2949
    %v3402 = vunpack.c.h.b16 %v2949
    %v3403 = vunpack.c.l.b16 %v2950
    %v3404 = vunpack.c.h.b16 %v2950
    %v3405 = vunpack.c.l.b16 %v2951
    %v3406 = vunpack.c.h.b16 %v2951
    %v3407 = vunpack.c.l.b16 %v2952
    %v3408 = vunpack.c.h.b16 %v2952
    %v3409 = vunpack.c.l.b16 %v2953
    %v3410 = vunpack.c.h.b16 %v2953
    %v3411 = vunpack.c.l.b16 %v2954
    %v3412 = vunpack.c.h.b16 %v2954
    %v3413 = vunpack.c.l.b16 %v2955
    %v3414 = vunpack.c.h.b16 %v2955
    %v3415 = vunpack.c.l.b16 %v2956
    %v3416 = vunpack.c.h.b16 %v2956
    %v3417 = vunpack.c.l.b16 %v2957
    %v3418 = vunpack.c.h.b16 %v2957
    %v3419 = vunpack.c.l.b16 %v2958
    %v3420 = vunpack.c.h.b16 %v2958
    %v3421 = vunpack.c.l.b16 %v2959
    %v3422 = vunpack.c.h.b16 %v2959
    %v3423 = vunpack.c.l.b16 %v2960
    %v3424 = vunpack.c.h.b16 %v2960
    %v3425 = vunpack.c.l.b16 %v2961
    %v3426 = vunpack.c.h.b16 %v2961
    %v3427 = vunpack.c.l.b16 %v2962
    %v3428 = vunpack.c.h.b16 %v2962
    %v3429 = vunpack.c.l.b16 %v2963
    %v3430 = vunpack.c.h.b16 %v2963
    %v3431 = vunpack.c.l.b16 %v2964
    %v3432 = vunpack.c.h.b16 %v2964
    %v3433 = vunpack.c.l.b16 %v2965
    %v3434 = vunpack.c.h.b16 %v2965
    %v3435 = vunpack.c.l.b16 %v2966
    %v3436 = vunpack.c.h.b16 %v2966
    %v3437 = vunpack.c.l.b16 %v2967
    %v3438 = vunpack.c.h.b16 %v2967
    %v3439 = vunpack.c.l.b16 %v2968
    %v3440 = vunpack.c.h.b16 %v2968
    %v3441 = vunpack.c.l.b16 %v2969
    %v3442 = vunpack.c.h.b16 %v2969
    %v3443 = vunpack.c.l.b16 %v2970
    %v3444 = vunpack.c.h.b16 %v2970
    %v3445 = vunpack.c.l.b16 %v2971
    %v3446 = vunpack.c.h.b16 %v2971
    %v3447 = vunpack.c.l.b16 %v2972
    %v3448 = vunpack.c.h.b16 %v2972
    %v3449 = vunpack.c.l.b16 %v2973
    %v3450 = vunpack.c.h.b16 %v2973
    %v3451 = vunpack.c.l.b16 %v2974
    %v3452 = vunpack.c.h.b16 %v2974
    %v3453 = vunpack.c.l.b16 %v2975
    %v3454 = vunpack.c.h.b16 %v2975
    %v3455 = vunpack.c.l.b16 %v2976
    %v3456 = vunpack.c.h.b16 %v2976
    %v3457 = vunpack.c.l.b16 %v2977
    %v3458 = vunpack.c.h.b16 %v2977
    %v3459 = vunpack.c.l.b16 %v2978
    %v3460 = vunpack.c.h.b16 %v2978
    %v3461 = vunpack.c.l.b16 %v2979
    %v3462 = vunpack.c.h.b16 %v2979
    %v3463 = vunpack.c.l.b16 %v2980
    %v3464 = vunpack.c.h.b16 %v2980
    %v3465 = vunpack.c.l.b16 %v2981
    %v3466 = vunpack.c.h.b16 %v2981
    %v3467 = vunpack.c.l.b16 %v2982
    %v3468 = vunpack.c.h.b16 %v2982
    %v3469 = vunpack.c.l.b16 %v2983
    %v3470 = vunpack.c.h.b16 %v2983
    %v3471 = vunpack.c.l.b16 %v2984
    %v3472 = vunpack.c.h.b16 %v2984
    %v3473 = vunpack.c.l.b16 %v2985
    %v3474 = vunpack.c.h.b16 %v2985
    %v3475 = vunpack.c.l.b16 %v2986
    %v3476 = vunpack.c.h.b16 %v2986
    %v3477 = vunpack.c.l.b16 %v2987
    %v3478 = vunpack.c.h.b16 %v2987
    %v3479 = vunpack.c.l.b16 %v2988
    %v3480 = vunpack.c.h.b16 %v2988
    %v3481 = vunpack.c.l.b16 %v2989
    %v3482 = vunpack.c.h.b16 %v2989
    %v3483 = vunpack.c.l.b16 %v2990
    %v3484 = vunpack.c.h.b16 %v2990
    %v3485 = vunpack.c.l.b16 %v2991
    %v3486 = vunpack.c.h.b16 %v2991
    %v3487 = vunpack.c.l.b16 %v2992
    %v3488 = vunpack.c.h.b16 %v2992
    %v3489 = vunpack.c.l.b16 %v2993
    %v3490 = vunpack.c.h.b16 %v2993
    %v3491 = vunpack.c.l.b16 %v2994
    %v3492 = vunpack.c.h.b16 %v2994
    %v3493 = vunpack.c.l.b16 %v2995
    %v3494 = vunpack.c.h.b16 %v2995
    %v3495 = vunpack.c.l.b16 %v2996
    %v3496 = vunpack.c.h.b16 %v2996
    %v3497 = vunpack.c.l.b16 %v2997
    %v3498 = vunpack.c.h.b16 %v2997
    %v3499 = vunpack.c.l.b16 %v2998
    %v3500 = vunpack.c.h.b16 %v2998
    %v3501 = vunpack.c.l.b16 %v2999
    %v3502 = vunpack.c.h.b16 %v2999
    %v3503 = vunpack.c.l.b16 %v3000
    %v3504 = vunpack.c.h.b16 %v3000
    %v3505 = vunpack.c.l.b16 %v3001
    %v3506 = vunpack.c.h.b16 %v3001
    %v3507 = vunpack.c.l.b16 %v3002
    %v3508 = vunpack.c.h.b16 %v3002
    %v3509 = vunpack.c.l.b16 %v3003
    %v3510 = vunpack.c.h.b16 %v3003
    %v3511 = vunpack.c.l.b16 %v3004
    %v3512 = vunpack.c.h.b16 %v3004
    %v3513 = vunpack.c.l.b16 %v3005
    %v3514 = vunpack.c.h.b16 %v3005
    %v3515 = vunpack.c.l.b16 %v3006
    %v3516 = vunpack.c.h.b16 %v3006
    %v3517 = vunpack.c.l.b16 %v3007
    %v3518 = vunpack.c.h.b16 %v3007
    %v3519 = vunpack.c.l.b16 %v3008
    %v3520 = vunpack.c.h.b16 %v3008
    %v3521 = vunpack.c.l.b16 %v3009
    %v3522 = vunpack.c.h.b16 %v3009
    %v3523 = vunpack.c.l.b16 %v3010
    %v3524 = vunpack.c.h.b16 %v3010
    %v3525 = vunpack.c.l.b16 %v3011
    %v3526 = vunpack.c.h.b16 %v3011
    %v3527 = vunpack.c.l.b16 %v3012
    %v3528 = vunpack.c.h.b16 %v3012
    %v3529 = vunpack.c.l.b16 %v3013
    %v3530 = vunpack.c.h.b16 %v3013
    %v3531 = vunpack.c.l.b16 %v3014
    %v3532 = vunpack.c.h.b16 %v3014
    %v3533 = vunpack.c.l.b16 %v3015
    %v3534 = vunpack.c.h.b16 %v3015
    %v3535 = vunpack.c.l.b16 %v3016
    %v3536 = vunpack.c.h.b16 %v3016
    %v3537 = vunpack.c.l.b16 %v3017
    %v3538 = vunpack.c.h.b16 %v3017
    %v3539 = vunpack.c.l.b16 %v3018
    %v3540 = vunpack.c.h.b16 %v3018
    %v3541 = vunpack.c.l.b16 %v3019
    %v3542 = vunpack.c.h.b16 %v3019
    %v3543 = vunpack.c.l.b16 %v3020
    %v3544 = vunpack.c.h.b16 %v3020
    %v3545 = vunpack.c.l.b16 %v3021
    %v3546 = vunpack.c.h.b16 %v3021
    %v3547 = vunpack.c.l.b16 %v3022
    %v3548 = vunpack.c.h.b16 %v3022
    %v3549 = vunpack.c.l.b16 %v3023
    %v3550 = vunpack.c.h.b16 %v3023
    %v3551 = vunpack.c.l.b16 %v3024
    %v3552 = vunpack.c.h.b16 %v3024
    %v3553 = vunpack.c.l.b16 %v3025
    %v3554 = vunpack.c.h.b16 %v3025
    %v3555 = vunpack.c.l.b16 %v3026
    %v3556 = vunpack.c.h.b16 %v3026
    %v3557 = vunpack.c.l.b16 %v3027
    %v3558 = vunpack.c.h.b16 %v3027
    %v3559 = vunpack.c.l.b16 %v3028
    %v3560 = vunpack.c.h.b16 %v3028
    %v3561 = vunpack.c.l.b16 %v3029
    %v3562 = vunpack.c.h.b16 %v3029
    %v3563 = vunpack.c.l.b16 %v3030
    %v3564 = vunpack.c.h.b16 %v3030
    %v3565 = vunpack.c.l.b16 %v3031
    %v3566 = vunpack.c.h.b16 %v3031
    %v3567 = vunpack.c.l.b16 %v3032
    %v3568 = vunpack.c.h.b16 %v3032
    %v3569 = vunpack.c.l.b16 %v3033
    %v3570 = vunpack.c.h.b16 %v3033
    %v3571 = vunpack.c.l.b16 %v3034
    %v3572 = vunpack.c.h.b16 %v3034
    %v3573 = vunpack.c.l.b16 %v3035
    %v3574 = vunpack.c.h.b16 %v3035
    %v3575 = vunpack.c.l.b16 %v3036
    %v3576 = vunpack.c.h.b16 %v3036
    %v3577 = vunpack.c.l.b16 %v3037
    %v3578 = vunpack.c.h.b16 %v3037
    %v3579 = vunpack.c.l.b16 %v3038
    %v3580 = vunpack.c.h.b16 %v3038
    %v3581 = vunpack.c.l.b16 %v3039
    %v3582 = vunpack.c.h.b16 %v3039
    %v3583 = vunpack.c.l.b16 %v3040
    %v3584 = vunpack.c.h.b16 %v3040
    %v3585 = vunpack.c.l.b16 %v3041
    %v3586 = vunpack.c.h.b16 %v3041
    %v3587 = vunpack.c.l.b16 %v3042
    %v3588 = vunpack.c.h.b16 %v3042
    %v3589 = vunpack.c.l.b16 %v3043
    %v3590 = vunpack.c.h.b16 %v3043
    %v3591 = vunpack.c.l.b16 %v3044
    %v3592 = vunpack.c.h.b16 %v3044
    %v3593 = vunpack.c.l.b16 %v3045
    %v3594 = vunpack.c.h.b16 %v3045
    %v3595 = vunpack.c.l.b16 %v3046
    %v3596 = vunpack.c.h.b16 %v3046
    %v3597 = vunpack.c.l.b16 %v3047
    %v3598 = vunpack.c.h.b16 %v3047
    %v3599 = vunpack.c.l.b16 %v3048
    %v3600 = vunpack.c.h.b16 %v3048
    %v3601 = vunpack.c.l.b16 %v3049
    %v3602 = vunpack.c.h.b16 %v3049
    %v3603 = vunpack.c.l.b16 %v3050
    %v3604 = vunpack.c.h.b16 %v3050
    %v3605 = vunpack.c.l.b16 %v3051
    %v3606 = vunpack.c.h.b16 %v3051
    %v3607 = vunpack.c.l.b16 %v3052
    %v3608 = vunpack.c.h.b16 %v3052
    %v3609 = vunpack.c.l.b16 %v3053
    %v3610 = vunpack.c.h.b16 %v3053
    %v3611 = vunpack.c.l.b16 %v3054
    %v3612 = vunpack.c.h.b16 %v3054
    %v3613 = vunpack.c.l.b16 %v3055
    %v3614 = vunpack.c.h.b16 %v3055
    %v3615 = vunpack.c.l.b16 %v3056
    %v3616 = vunpack.c.h.b16 %v3056
    %v3617 = vunpack.c.l.b16 %v3057
    %v3618 = vunpack.c.h.b16 %v3057
    %v3619 = vunpack.c.l.b16 %v3058
    %v3620 = vunpack.c.h.b16 %v3058
    %v3621 = vunpack.c.l.b16 %v3059
    %v3622 = vunpack.c.h.b16 %v3059
    %v3623 = vunpack.c.l.b16 %v3060
    %v3624 = vunpack.c.h.b16 %v3060
    %v3625 = vunpack.c.l.b16 %v3061
    %v3626 = vunpack.c.h.b16 %v3061
    %v3627 = vunpack.c.l.b16 %v3062
    %v3628 = vunpack.c.h.b16 %v3062
    %v3629 = vunpack.c.l.b16 %v3063
    %v3630 = vunpack.c.h.b16 %v3063
    %v3631 = vunpack.c.l.b16 %v3064
    %v3632 = vunpack.c.h.b16 %v3064
    %v3633 = vunpack.c.l.b16 %v3065
    %v3634 = vunpack.c.h.b16 %v3065
    %v3635 = vunpack.c.l.b16 %v3066
    %v3636 = vunpack.c.h.b16 %v3066
    %v3637 = vunpack.c.l.b16 %v3067
    %v3638 = vunpack.c.h.b16 %v3067
    %v3639 = vunpack.c.l.b16 %v3068
    %v3640 = vunpack.c.h.b16 %v3068
    %v3641 = vunpack.c.l.b16 %v3069
    %v3642 = vunpack.c.h.b16 %v3069
    %v3643 = vunpack.c.l.b16 %v3070
    %v3644 = vunpack.c.h.b16 %v3070
    %v3645 = vunpack.c.l.b16 %v3071
    %v3646 = vunpack.c.h.b16 %v3071
    %v3647 = vunpack.c.l.b16 %v3072
    %v3648 = vunpack.c.h.b16 %v3072
    %v3649 = vunpack.c.l.b16 %v3073
    %v3650 = vunpack.c.h.b16 %v3073
    %v3651 = vunpack.c.l.b16 %v3074
    %v3652 = vunpack.c.h.b16 %v3074
    %v3653 = vunpack.c.l.b16 %v3075
    %v3654 = vunpack.c.h.b16 %v3075
    %v3655 = vunpack.c.l.b16 %v3076
    %v3656 = vunpack.c.h.b16 %v3076
    %v3657 = vunpack.c.l.b16 %v3077
    %v3658 = vunpack.c.h.b16 %v3077
    %v3659 = vunpack.c.l.b16 %v3078
    %v3660 = vunpack.c.h.b16 %v3078
    %v3661 = vunpack.c.l.b16 %v3079
    %v3662 = vunpack.c.h.b16 %v3079
    %v3663 = vunpack.c.l.b16 %v3080
    %v3664 = vunpack.c.h.b16 %v3080
    %v3665 = vunpack.c.l.b16 %v3081
    %v3666 = vunpack.c.h.b16 %v3081
    %v3667 = vunpack.c.l.b16 %v3082
    %v3668 = vunpack.c.h.b16 %v3082
    %v3669 = vunpack.c.l.b16 %v3083
    %v3670 = vunpack.c.h.b16 %v3083
    %v3671 = vunpack.c.l.b16 %v3084
    %v3672 = vunpack.c.h.b16 %v3084
    %v3673 = vunpack.c.l.b16 %v3085
    %v3674 = vunpack.c.h.b16 %v3085
    %v3675 = vunpack.c.l.b16 %v3086
    %v3676 = vunpack.c.h.b16 %v3086
    %v3677 = vunpack.c.l.b16 %v3087
    %v3678 = vunpack.c.h.b16 %v3087
    %v3679 = vunpack.c.l.b16 %v3088
    %v3680 = vunpack.c.h.b16 %v3088
    %v3681 = vunpack.c.l.b16 %v3089
    %v3682 = vunpack.c.h.b16 %v3089
    %v3683 = vunpack.c.l.b16 %v3090
    %v3684 = vunpack.c.h.b16 %v3090
    %v3685 = vunpack.c.l.b16 %v3091
    %v3686 = vunpack.c.h.b16 %v3091
    %v3687 = vunpack.c.l.b16 %v3092
    %v3688 = vunpack.c.h.b16 %v3092
    %v3689 = vunpack.c.l.b16 %v3093
    %v3690 = vunpack.c.h.b16 %v3093
    %v3691 = vunpack.c.l.b16 %v3094
    %v3692 = vunpack.c.h.b16 %v3094
    %v3693 = vunpack.c.l.b16 %v3095
    %v3694 = vunpack.c.h.b16 %v3095
    %v3695 = vunpack.c.l.b16 %v3096
    %v3696 = vunpack.c.h.b16 %v3096
    %v3697 = vunpack.c.l.b16 %v3097
    %v3698 = vunpack.c.h.b16 %v3097
    %v3699 = vunpack.c.l.b16 %v3098
    %v3700 = vunpack.c.h.b16 %v3098
    %v3701 = vunpack.c.l.b16 %v3099
    %v3702 = vunpack.c.h.b16 %v3099
    %v3703 = vunpack.c.l.b16 %v3100
    %v3704 = vunpack.c.h.b16 %v3100
    %v3705 = vunpack.c.l.b16 %v3101
    %v3706 = vunpack.c.h.b16 %v3101
    %v3707 = vunpack.c.l.b16 %v3102
    %v3708 = vunpack.c.h.b16 %v3102
    %v3709 = vunpack.c.l.b16 %v3103
    %v3710 = vunpack.c.h.b16 %v3103
    %v3711 = vunpack.c.l.b16 %v3104
    %v3712 = vunpack.c.h.b16 %v3104
    %v3713 = vpack.c.b16 %v3335, %v3329
    %v3714 = vpack.c.b16 %v3336, %v3330
    %v3715 = vpack.c.b16 %v3337, %v3331
    %v3716 = vpack.c.b16 %v3338, %v3332
    %v3717 = vpack.c.b16 %v3339, %v3333
    %v3718 = vpack.c.b16 %v3340, %v3334
    %v3719 = vpack.c.b16 %v3347, %v3341
    %v3720 = vpack.c.b16 %v3348, %v3342
    %v3721 = vpack.c.b16 %v3349, %v3343
    %v3722 = vpack.c.b16 %v3350, %v3344
    %v3723 = vpack.c.b16 %v3351, %v3345
    %v3724 = vpack.c.b16 %v3352, %v3346
    %v3725 = vpack.c.b16 %v3359, %v3353
    %v3726 = vpack.c.b16 %v3360, %v3354
    %v3727 = vpack.c.b16 %v3361, %v3355
    %v3728 = vpack.c.b16 %v3362, %v3356
    %v3729 = vpack.c.b16 %v3363, %v3357
    %v3730 = vpack.c.b16 %v3364, %v3358
    %v3731 = vpack.c.b16 %v3371, %v3365
    %v3732 = vpack.c.b16 %v3372, %v3366
    %v3733 = vpack.c.b16 %v3373, %v3367
    %v3734 = vpack.c.b16 %v3374, %v3368
    %v3735 = vpack.c.b16 %v3375, %v3369
    %v3736 = vpack.c.b16 %v3376, %v3370
    %v3737 = vpack.c.b16 %v3383, %v3377
    %v3738 = vpack.c.b16 %v3384, %v3378
    %v3739 = vpack.c.b16 %v3385, %v3379
    %v3740 = vpack.c.b16 %v3386, %v3380
    %v3741 = vpack.c.b16 %v3387, %v3381
    %v3742 = vpack.c.b16 %v3388, %v3382
    %v3743 = vpack.c.b16 %v3395, %v3389
    %v3744 = vpack.c.b16 %v3396, %v3390
    %v3745 = vpack.c.b16 %v3397, %v3391
    %v3746 = vpack.c.b16 %v3398, %v3392
    %v3747 = vpack.c.b16 %v3399, %v3393
    %v3748 = vpack.c.b16 %v3400, %v3394
    %v3749 = vpack.c.b16 %v3407, %v3401
    %v3750 = vpack.c.b16 %v3408, %v3402
    %v3751 = vpack.c.b16 %v3409, %v3403
    %v3752 = vpack.c.b16 %v3410, %v3404
    %v3753 = vpack.c.b16 %v3411, %v3405
    %v3754 = vpack.c.b16 %v3412, %v3406
    %v3755 = vpack.c.b16 %v3419, %v3413
    %v3756 = vpack.c.b16 %v3420, %v3414
    %v3757 = vpack.c.b16 %v3421, %v3415
    %v3758 = vpack.c.b16 %v3422, %v3416
    %v3759 = vpack.c.b16 %v3423, %v3417
    %v3760 = vpack.c.b16 %v3424, %v3418
    %v3761 = vpack.c.b16 %v3431, %v3425
    %v3762 = vpack.c.b16 %v3432, %v3426
    %v3763 = vpack.c.b16 %v3433, %v3427
    %v3764 = vpack.c.b16 %v3434, %v3428
    %v3765 = vpack.c.b16 %v3435, %v3429
    %v3766 = vpack.c.b16 %v3436, %v3430
    %v3767 = vpack.c.b16 %v3443, %v3437
    %v3768 = vpack.c.b16 %v3444, %v3438
    %v3769 = vpack.c.b16 %v3445, %v3439
    %v3770 = vpack.c.b16 %v3446, %v3440
    %v3771 = vpack.c.b16 %v3447, %v3441
    %v3772 = vpack.c.b16 %v3448, %v3442
    %v3773 = vpack.c.b16 %v3455, %v3449
    %v3774 = vpack.c.b16 %v3456, %v3450
    %v3775 = vpack.c.b16 %v3457, %v3451
    %v3776 = vpack.c.b16 %v3458, %v3452
    %v3777 = vpack.c.b16 %v3459, %v3453
    %v3778 = vpack.c.b16 %v3460, %v3454
    %v3779 = vpack.c.b16 %v3467, %v3461
    %v3780 = vpack.c.b16 %v3468, %v3462
    %v3781 = vpack.c.b16 %v3469, %v3463
    %v3782 = vpack.c.b16 %v3470, %v3464
    %v3783 = vpack.c.b16 %v3471, %v3465
    %v3784 = vpack.c.b16 %v3472, %v3466
    %v3785 = vpack.c.b16 %v3479, %v3473
    %v3786 = vpack.c.b16 %v3480, %v3474
    %v3787 = vpack.c.b16 %v3481, %v3475
    %v3788 = vpack.c.b16 %v3482, %v3476
    %v3789 = vpack.c.b16 %v3483, %v3477
    %v3790 = vpack.c.b16 %v3484, %v3478
    %v3791 = vpack.c.b16 %v3491, %v3485
    %v3792 = vpack.c.b16 %v3492, %v3486
    %v3793 = vpack.c.b16 %v3493, %v3487
    %v3794 = vpack.c.b16 %v3494, %v3488
    %v3795 = vpack.c.b16 %v3495, %v3489
    %v3796 = vpack.c.b16 %v3496, %v3490
    %v3797 = vpack.c.b16 %v3503, %v3497
    %v3798 = vpack.c.b16 %v3504, %v3498
    %v3799 = vpack.c.b16 %v3505, %v3499
    %v3800 = vpack.c.b16 %v3506, %v3500
    %v3801 = vpack.c.b16 %v3507, %v3501
    %v3802 = vpack.c.b16 %v3508, %v3502
    %v3803 = vpack.c.b16 %v3515, %v3509
    %v3804 = vpack.c.b16 %v3516, %v3510
    %v3805 = vpack.c.b16 %v3517, %v3511
    %v3806 = vpack.c.b16 %v3518, %v3512
    %v3807 = vpack.c.b16 %v3519, %v3513
    %v3808 = vpack.c.b16 %v3520, %v3514
    %v3809 = vpack.c.b16 %v3527, %v3521
    %v3810 = vpack.c.b16 %v3528, %v3522
    %v3811 = vpack.c.b16 %v3529, %v3523
    %v3812 = vpack.c.b16 %v3530, %v3524
    %v3813 = vpack.c.b16 %v3531, %v3525
    %v3814 = vpack.c.b16 %v3532, %v3526
    %v3815 = vpack.c.b16 %v3539, %v3533
    %v3816 = vpack.c.b16 %v3540, %v3534
    %v3817 = vpack.c.b16 %v3541, %v3535
    %v3818 = vpack.c.b16 %v3542, %v3536
    %v3819 = vpack.c.b16 %v3543, %v3537
    %v3820 = vpack.c.b16 %v3544, %v3538
    %v3821 = vpack.c.b16 %v3551, %v3545
    %v3822 = vpack.c.b16 %v3552, %v3546
    %v3823 = vpack.c.b16 %v3553, %v3547
    %v3824 = vpack.c.b16 %v3554, %v3548
    %v3825 = vpack.c.b16 %v3555, %v3549
    %v3826 = vpack.c.b16 %v3556, %v3550
    %v3827 = vpack.c.b16 %v3563, %v3557
    %v3828 = vpack.c.b16 %v3564, %v3558
    %v3829 = vpack.c.b16 %v3565, %v3559
    %v3830 = vpack.c.b16 %v3566, %v3560
    %v3831 = vpack.c.b16 %v3567, %v3561
    %v3832 = vpack.c.b16 %v3568, %v3562
    %v3833 = vpack.c.b16 %v3575, %v3569
    %v3834 = vpack.c.b16 %v3576, %v3570
    %v3835 = vpack.c.b16 %v3577, %v3571
    %v3836 = vpack.c.b16 %v3578, %v3572
    %v3837 = vpack.c.b16 %v3579, %v3573
    %v3838 = vpack.c.b16 %v3580, %v3574
    %v3839 = vpack.c.b16 %v3587, %v3581
    %v3840 = vpack.c.b16 %v3588, %v3582
    %v3841 = vpack.c.b16 %v3589, %v3583
    %v3842 = vpack.c.b16 %v3590, %v3584
    %v3843 = vpack.c.b16 %v3591, %v3585
    %v3844 = vpack.c.b16 %v3592, %v3586
    %v3845 = vpack.c.b16 %v3599, %v3593
    %v3846 = vpack.c.b16 %v3600, %v3594
    %v3847 = vpack.c.b16 %v3601, %v3595
    %v3848 = vpack.c.b16 %v3602, %v3596
    %v3849 = vpack.c.b16 %v3603, %v3597
    %v3850 = vpack.c.b16 %v3604, %v3598
    %v3851 = vpack.c.b16 %v3611, %v3605
    %v3852 = vpack.c.b16 %v3612, %v3606
    %v3853 = vpack.c.b16 %v3613, %v3607
    %v3854 = vpack.c.b16 %v3614, %v3608
    %v3855 = vpack.c.b16 %v3615, %v3609
    %v3856 = vpack.c.b16 %v3616, %v3610
    %v3857 = vpack.c.b16 %v3623, %v3617
    %v3858 = vpack.c.b16 %v3624, %v3618
    %v3859 = vpack.c.b16 %v3625, %v3619
    %v3860 = vpack.c.b16 %v3626, %v3620
    %v3861 = vpack.c.b16 %v3627, %v3621
    %v3862 = vpack.c.b16 %v3628, %v3622
    %v3863 = vpack.c.b16 %v3635, %v3629
    %v3864 = vpack.c.b16 %v3636, %v3630
    %v3865 = vpack.c.b16 %v3637, %v3631
    %v3866 = vpack.c.b16 %v3638, %v3632
    %v3867 = vpack.c.b16 %v3639, %v3633
    %v3868 = vpack.c.b16 %v3640, %v3634
    %v3869 = vpack.c.b16 %v3647, %v3641
    %v3870 = vpack.c.b16 %v3648, %v3642
    %v3871 = vpack.c.b16 %v3649, %v3643
    %v3872 = vpack.c.b16 %v3650, %v3644
    %v3873 = vpack.c.b16 %v3651, %v3645
    %v3874 = vpack.c.b16 %v3652, %v3646
    %v3875 = vpack.c.b16 %v3659, %v3653
    %v3876 = vpack.c.b16 %v3660, %v3654
    %v3877 = vpack.c.b16 %v3661, %v3655
    %v3878 = vpack.c.b16 %v3662, %v3656
    %v3879 = vpack.c.b16 %v3663, %v3657
    %v3880 = vpack.c.b16 %v3664, %v3658
    %v3881 = vpack.c.b16 %v3671, %v3665
    %v3882 = vpack.c.b16 %v3672, %v3666
    %v3883 = vpack.c.b16 %v3673, %v3667
    %v3884 = vpack.c.b16 %v3674, %v3668
    %v3885 = vpack.c.b16 %v3675, %v3669
    %v3886 = vpack.c.b16 %v3676, %v3670
    %v3887 = vpack.c.b16 %v3683, %v3677
    %v3888 = vpack.c.b16 %v3684, %v3678
    %v3889 = vpack.c.b16 %v3685, %v3679
    %v3890 = vpack.c.b16 %v3686, %v3680
    %v3891 = vpack.c.b16 %v3687, %v3681
    %v3892 = vpack.c.b16 %v3688, %v3682
    %v3893 = vpack.c.b16 %v3695, %v3689
    %v3894 = vpack.c.b16 %v3696, %v3690
    %v3895 = vpack.c.b16 %v3697, %v3691
    %v3896 = vpack.c.b16 %v3698, %v3692
    %v3897 = vpack.c.b16 %v3699, %v3693
    %v3898 = vpack.c.b16 %v3700, %v3694
    %v3899 = vpack.c.b16 %v3707, %v3701
    %v3900 = vpack.c.b16 %v3708, %v3702
    %v3901 = vpack.c.b16 %v3709, %v3703
    %v3902 = vpack.c.b16 %v3710, %v3704
    %v3903 = vpack.c.b16 %v3711, %v3705
    %v3904 = vpack.c.b16 %v3712, %v3706
    %4097 = vmatprep.subr.bf16.mxu0 %v3714
    %4098 = vmatpush1.bf16.msra.mxu0 %v3713
    %4099 = vmatprep.subr.bf16.mxu0 %v3720
    %4100 = vmatpush1.bf16.msra.mxu0 %v3719
    %4101 = vmatprep.subr.bf16.mxu0 %v3726
    %4102 = vmatpush1.bf16.msra.mxu0 %v3725
    %4103 = vmatprep.subr.bf16.mxu0 %v3732
    %4104 = vmatpush1.bf16.msra.mxu0 %v3731
    %4105 = vmatprep.subr.bf16.mxu0 %v3738
    %4106 = vmatpush1.bf16.msra.mxu0 %v3737
    %4107 = vmatprep.subr.bf16.mxu0 %v3744
    %4108 = vmatpush1.bf16.msra.mxu0 %v3743
    %4109 = vmatprep.subr.bf16.mxu0 %v3750
    %4110 = vmatpush1.bf16.msra.mxu0 %v3749
    %4111 = vmatprep.subr.bf16.mxu0 %v3756
    %4112 = vmatpush1.bf16.msra.mxu0 %v3755
    %4113 = vmatprep.subr.bf16.mxu0 %v3762
    %4114 = vmatpush1.bf16.msra.mxu0 %v3761
    %4115 = vmatprep.subr.bf16.mxu0 %v3768
    %4116 = vmatpush1.bf16.msra.mxu0 %v3767
    %4117 = vmatprep.subr.bf16.mxu0 %v3774
    %4118 = vmatpush1.bf16.msra.mxu0 %v3773
    %4119 = vmatprep.subr.bf16.mxu0 %v3780
    %4120 = vmatpush1.bf16.msra.mxu0 %v3779
    %4121 = vmatprep.subr.bf16.mxu0 %v3786
    %4122 = vmatpush1.bf16.msra.mxu0 %v3785
    %4123 = vmatprep.subr.bf16.mxu0 %v3792
    %4124 = vmatpush1.bf16.msra.mxu0 %v3791
    %4125 = vmatprep.subr.bf16.mxu0 %v3798
    %4126 = vmatpush1.bf16.msra.mxu0 %v3797
    %4127 = vmatprep.subr.bf16.mxu0 %v3804
    %4128 = vmatpush1.bf16.msra.mxu0 %v3803
    %4129 = vmatprep.mubr.bf16.mxu0 %v2910
    %4130 = vmatmul.mubr.bf16.gmra.mrb[0].mxu0 %v2909
    %v4131 = vpop.f32.mrb[0].mxu0
    %v4132 = vadd.f32 %v3110, %v4131
    %v4133 = vpop.f32.mrb[0].mxu0
    %v4134 = vadd.f32 %v3114, %v4133
    %v4135 = vpop.f32.mrb[0].mxu0
    %v4136 = vpop.f32.mrb[0].mxu0
    %4137 = vdwg.mxu0
    %4138 = vmatprep.subr.bf16.mxu0 %v3810
    %4139 = vmatpush1.bf16.msra.mxu0 %v3809
    %4140 = vmatprep.subr.bf16.mxu0 %v3816
    %4141 = vmatpush1.bf16.msra.mxu0 %v3815
    %4142 = vmatprep.subr.bf16.mxu0 %v3822
    %4143 = vmatpush1.bf16.msra.mxu0 %v3821
    %4144 = vmatprep.subr.bf16.mxu0 %v3828
    %4145 = vmatpush1.bf16.msra.mxu0 %v3827
    %4146 = vmatprep.subr.bf16.mxu0 %v3834
    %4147 = vmatpush1.bf16.msra.mxu0 %v3833
    %4148 = vmatprep.subr.bf16.mxu0 %v3840
    %4149 = vmatpush1.bf16.msra.mxu0 %v3839
    %4150 = vmatprep.subr.bf16.mxu0 %v3846
    %4151 = vmatpush1.bf16.msra.mxu0 %v3845
    %4152 = vmatprep.subr.bf16.mxu0 %v3852
    %4153 = vmatpush1.bf16.msra.mxu0 %v3851
    %4154 = vmatprep.subr.bf16.mxu0 %v3858
    %4155 = vmatpush1.bf16.msra.mxu0 %v3857
    %4156 = vmatprep.subr.bf16.mxu0 %v3864
    %4157 = vmatpush1.bf16.msra.mxu0 %v3863
    %4158 = vmatprep.subr.bf16.mxu0 %v3870
    %4159 = vmatpush1.bf16.msra.mxu0 %v3869
    %4160 = vmatprep.subr.bf16.mxu0 %v3876
    %4161 = vmatpush1.bf16.msra.mxu0 %v3875
    %4162 = vmatprep.subr.bf16.mxu0 %v3882
    %4163 = vmatpush1.bf16.msra.mxu0 %v3881
    %4164 = vmatprep.subr.bf16.mxu0 %v3888
    %4165 = vmatpush1.bf16.msra.mxu0 %v3887
    %4166 = vmatprep.subr.bf16.mxu0 %v3894
    %4167 = vmatpush1.bf16.msra.mxu0 %v3893
    %4168 = vmatprep.subr.bf16.mxu0 %v3900
    %4169 = vmatpush1.bf16.msra.mxu0 %v3899
    %4170 = vmatprep.mubr.bf16.mxu0 %v2912
    %4171 = vmatmul.mubr.bf16.gmra.mrb[0].mxu0 %v2911
    %v4172 = vpop.f32.mrb[0].mxu0
    %v4173 = vadd.f32 %v4132, %v4172
    %v4174 = vpop.f32.mrb[0].mxu0
    %v4175 = vadd.f32 %v4134, %v4174
    %v4176 = vpop.f32.mrb[0].mxu0
    %v4177 = vpop.f32.mrb[0].mxu0
    %4178 = vdwg.mxu0
    %4179 = vmatprep.subr.bf16.mxu0 %v3716
    %4180 = vmatpush1.bf16.msra.mxu0 %v3715
    %4181 = vmatprep.subr.bf16.mxu0 %v3722
    %4182 = vmatpush1.bf16.msra.mxu0 %v3721
    %4183 = vmatprep.subr.bf16.mxu0 %v3728
    %4184 = vmatpush1.bf16.msra.mxu0 %v3727
    %4185 = vmatprep.subr.bf16.mxu0 %v3734
    %4186 = vmatpush1.bf16.msra.mxu0 %v3733
    %4187 = vmatprep.subr.bf16.mxu0 %v3740
    %4188 = vmatpush1.bf16.msra.mxu0 %v3739
    %4189 = vmatprep.subr.bf16.mxu0 %v3746
    %4190 = vmatpush1.bf16.msra.mxu0 %v3745
    %4191 = vmatprep.subr.bf16.mxu0 %v3752
    %4192 = vmatpush1.bf16.msra.mxu0 %v3751
    %4193 = vmatprep.subr.bf16.mxu0 %v3758
    %4194 = vmatpush1.bf16.msra.mxu0 %v3757
    %4195 = vmatprep.subr.bf16.mxu0 %v3764
    %4196 = vmatpush1.bf16.msra.mxu0 %v3763
    %4197 = vmatprep.subr.bf16.mxu0 %v3770
    %4198 = vmatpush1.bf16.msra.mxu0 %v3769
    %4199 = vmatprep.subr.bf16.mxu0 %v3776
    %4200 = vmatpush1.bf16.msra.mxu0 %v3775
    %4201 = vmatprep.subr.bf16.mxu0 %v3782
    %4202 = vmatpush1.bf16.msra.mxu0 %v3781
    %4203 = vmatprep.subr.bf16.mxu0 %v3788
    %4204 = vmatpush1.bf16.msra.mxu0 %v3787
    %4205 = vmatprep.subr.bf16.mxu0 %v3794
    %4206 = vmatpush1.bf16.msra.mxu0 %v3793
    %4207 = vmatprep.subr.bf16.mxu0 %v3800
    %4208 = vmatpush1.bf16.msra.mxu0 %v3799
    %4209 = vmatprep.subr.bf16.mxu0 %v3806
    %4210 = vmatpush1.bf16.msra.mxu0 %v3805
    %4211 = vmatprep.mubr.bf16.mxu0 %v2910
    %4212 = vmatmul.mubr.bf16.gmra.mrb[0].mxu0 %v2909
    %v4213 = vpop.f32.mrb[0].mxu0
    %v4214 = vadd.f32 %v3118, %v4213
    %v4215 = vpop.f32.mrb[0].mxu0
    %v4216 = vadd.f32 %v3122, %v4215
    %v4217 = vpop.f32.mrb[0].mxu0
    %v4218 = vpop.f32.mrb[0].mxu0
    %4219 = vdwg.mxu0
    %4220 = vmatprep.subr.bf16.mxu0 %v3812
    %4221 = vmatpush1.bf16.msra.mxu0 %v3811
    %4222 = vmatprep.subr.bf16.mxu0 %v3818
    %4223 = vmatpush1.bf16.msra.mxu0 %v3817
    %4224 = vmatprep.subr.bf16.mxu0 %v3824
    %4225 = vmatpush1.bf16.msra.mxu0 %v3823
    %4226 = vmatprep.subr.bf16.mxu0 %v3830
    %4227 = vmatpush1.bf16.msra.mxu0 %v3829
    %4228 = vmatprep.subr.bf16.mxu0 %v3836
    %4229 = vmatpush1.bf16.msra.mxu0 %v3835
    %4230 = vmatprep.subr.bf16.mxu0 %v3842
    %4231 = vmatpush1.bf16.msra.mxu0 %v3841
    %4232 = vmatprep.subr.bf16.mxu0 %v3848
    %4233 = vmatpush1.bf16.msra.mxu0 %v3847
    %4234 = vmatprep.subr.bf16.mxu0 %v3854
    %4235 = vmatpush1.bf16.msra.mxu0 %v3853
    %4236 = vmatprep.subr.bf16.mxu0 %v3860
    %4237 = vmatpush1.bf16.msra.mxu0 %v3859
    %4238 = vmatprep.subr.bf16.mxu0 %v3866
    %4239 = vmatpush1.bf16.msra.mxu0 %v3865
    %4240 = vmatprep.subr.bf16.mxu0 %v3872
    %4241 = vmatpush1.bf16.msra.mxu0 %v3871
    %4242 = vmatprep.subr.bf16.mxu0 %v3878
    %4243 = vmatpush1.bf16.msra.mxu0 %v3877
    %4244 = vmatprep.subr.bf16.mxu0 %v3884
    %4245 = vmatpush1.bf16.msra.mxu0 %v3883
    %4246 = vmatprep.subr.bf16.mxu0 %v3890
    %4247 = vmatpush1.bf16.msra.mxu0 %v3889
    %4248 = vmatprep.subr.bf16.mxu0 %v3896
    %4249 = vmatpush1.bf16.msra.mxu0 %v3895
    %4250 = vmatprep.subr.bf16.mxu0 %v3902
    %4251 = vmatpush1.bf16.msra.mxu0 %v3901
    %4252 = vmatprep.mubr.bf16.mxu0 %v2912
    %4253 = vmatmul.mubr.bf16.gmra.mrb[0].mxu0 %v2911
    %v4254 = vpop.f32.mrb[0].mxu0
    %v4255 = vadd.f32 %v4214, %v4254
    %v4256 = vpop.f32.mrb[0].mxu0
    %v4257 = vadd.f32 %v4216, %v4256
    %v4258 = vpop.f32.mrb[0].mxu0
    %v4259 = vpop.f32.mrb[0].mxu0
    %4260 = vdwg.mxu0
    %4261 = vmatprep.subr.bf16.mxu0 %v3718
    %4262 = vmatpush1.bf16.msra.mxu0 %v3717
    %4263 = vmatprep.subr.bf16.mxu0 %v3724
    %4264 = vmatpush1.bf16.msra.mxu0 %v3723
    %4265 = vmatprep.subr.bf16.mxu0 %v3730
    %4266 = vmatpush1.bf16.msra.mxu0 %v3729
    %4267 = vmatprep.subr.bf16.mxu0 %v3736
    %4268 = vmatpush1.bf16.msra.mxu0 %v3735
    %4269 = vmatprep.subr.bf16.mxu0 %v3742
    %4270 = vmatpush1.bf16.msra.mxu0 %v3741
    %4271 = vmatprep.subr.bf16.mxu0 %v3748
    %4272 = vmatpush1.bf16.msra.mxu0 %v3747
    %4273 = vmatprep.subr.bf16.mxu0 %v3754
    %4274 = vmatpush1.bf16.msra.mxu0 %v3753
    %4275 = vmatprep.subr.bf16.mxu0 %v3760
    %4276 = vmatpush1.bf16.msra.mxu0 %v3759
    %4277 = vmatprep.subr.bf16.mxu0 %v3766
    %4278 = vmatpush1.bf16.msra.mxu0 %v3765
    %4279 = vmatprep.subr.bf16.mxu0 %v3772
    %4280 = vmatpush1.bf16.msra.mxu0 %v3771
    %4281 = vmatprep.subr.bf16.mxu0 %v3778
    %4282 = vmatpush1.bf16.msra.mxu0 %v3777
    %4283 = vmatprep.subr.bf16.mxu0 %v3784
    %4284 = vmatpush1.bf16.msra.mxu0 %v3783
    %4285 = vmatprep.subr.bf16.mxu0 %v3790
    %4286 = vmatpush1.bf16.msra.mxu0 %v3789
    %4287 = vmatprep.subr.bf16.mxu0 %v3796
    %4288 = vmatpush1.bf16.msra.mxu0 %v3795
    %4289 = vmatprep.subr.bf16.mxu0 %v3802
    %4290 = vmatpush1.bf16.msra.mxu0 %v3801
    %4291 = vmatprep.subr.bf16.mxu0 %v3808
    %4292 = vmatpush1.bf16.msra.mxu0 %v3807
    %4293 = vmatprep.mubr.bf16.mxu0 %v2910
    %4294 = vmatmul.mubr.bf16.gmra.mrb[0].mxu0 %v2909
    %v4295 = vpop.f32.mrb[0].mxu0
    %v4296 = vadd.f32 %v3126, %v4295
    %v4297 = vpop.f32.mrb[0].mxu0
    %v4298 = vadd.f32 %v3130, %v4297
    %v4299 = vpop.f32.mrb[0].mxu0
    %v4300 = vpop.f32.mrb[0].mxu0
    %4301 = vdwg.mxu0
    %4302 = vmatprep.subr.bf16.mxu0 %v3814
    %4303 = vmatpush1.bf16.msra.mxu0 %v3813
    %4304 = vmatprep.subr.bf16.mxu0 %v3820
    %4305 = vmatpush1.bf16.msra.mxu0 %v3819
    %4306 = vmatprep.subr.bf16.mxu0 %v3826
    %4307 = vmatpush1.bf16.msra.mxu0 %v3825
    %4308 = vmatprep.subr.bf16.mxu0 %v3832
    %4309 = vmatpush1.bf16.msra.mxu0 %v3831
    %4310 = vmatprep.subr.bf16.mxu0 %v3838
    %4311 = vmatpush1.bf16.msra.mxu0 %v3837
    %4312 = vmatprep.subr.bf16.mxu0 %v3844
    %4313 = vmatpush1.bf16.msra.mxu0 %v3843
    %4314 = vmatprep.subr.bf16.mxu0 %v3850
    %4315 = vmatpush1.bf16.msra.mxu0 %v3849
    %4316 = vmatprep.subr.bf16.mxu0 %v3856
    %4317 = vmatpush1.bf16.msra.mxu0 %v3855
    %4318 = vmatprep.subr.bf16.mxu0 %v3862
    %4319 = vmatpush1.bf16.msra.mxu0 %v3861
    %4320 = vmatprep.subr.bf16.mxu0 %v3868
    %4321 = vmatpush1.bf16.msra.mxu0 %v3867
    %4322 = vmatprep.subr.bf16.mxu0 %v3874
    %4323 = vmatpush1.bf16.msra.mxu0 %v3873
    %4324 = vmatprep.subr.bf16.mxu0 %v3880
    %4325 = vmatpush1.bf16.msra.mxu0 %v3879
    %4326 = vmatprep.subr.bf16.mxu0 %v3886
    %4327 = vmatpush1.bf16.msra.mxu0 %v3885
    %4328 = vmatprep.subr.bf16.mxu0 %v3892
    %4329 = vmatpush1.bf16.msra.mxu0 %v3891
    %4330 = vmatprep.subr.bf16.mxu0 %v3898
    %4331 = vmatpush1.bf16.msra.mxu0 %v3897
    %4332 = vmatprep.subr.bf16.mxu0 %v3904
    %4333 = vmatpush1.bf16.msra.mxu0 %v3903
    %4334 = vmatprep.mubr.bf16.mxu0 %v2912
    %4335 = vmatmul.mubr.bf16.gmra.mrb[0].mxu0 %v2911
    %v4336 = vpop.f32.mrb[0].mxu0
    %v4337 = vadd.f32 %v4296, %v4336
    %v4338 = vpop.f32.mrb[0].mxu0
    %v4339 = vadd.f32 %v4298, %v4338
    %v4340 = vpop.f32.mrb[0].mxu0
    %v4341 = vpop.f32.mrb[0].mxu0
    %4342 = vdwg.mxu0
    %v4343 = vld [vmem:[%s17] sm:$0x3f]
    %v4344 = vld [vmem:[%s18] sm:$0x3f]
    %vm4345 = vcmp.ge.f32.partialorder %v4173, 0.0
    %vm4346 = vcmp.ge.f32.partialorder %v4175, 0.0
    %vm4347 = vcmp.ge.f32.partialorder %v4255, 0.0
    %vm4348 = vcmp.ge.f32.partialorder %v4257, 0.0
    %vm4349 = vcmp.ge.f32.partialorder %v4337, 0.0
    %vm4350 = vcmp.ge.f32.partialorder %v4339, 0.0
    %v4351 = vmul.f32 %v4173, 0.01
    %v4352 = vmul.f32 %v4175, 0.01
    %v4353 = vmul.f32 %v4255, 0.01
    %v4354 = vmul.f32 %v4257, 0.01
    %v4355 = vmul.f32 %v4337, 0.01
    %v4356 = vmul.f32 %v4339, 0.01
    %v4357 = vsel %vm4345, %v4173, %v4351
    %v4358 = vsel %vm4346, %v4175, %v4352
    %v4359 = vsel %vm4347, %v4255, %v4353
    %v4360 = vsel %vm4348, %v4257, %v4354
    %v4361 = vsel %vm4349, %v4337, %v4355
    %v4362 = vsel %vm4350, %v4339, %v4356
    %vm4363 = vcmask 1041408
    %v4364 = vsel %vm4363, %v4357, 0.0
    %v4365 = vrot.slane %v4364, 4
    %v4366 = vadd.f32 %v4364, %v4365
    %v4367 = vrot.slane %v4366, 2
    %v4368 = vadd.f32 %v4366, %v4367
    %v4369 = vrot.slane %v4368, 1
    %v4370 = vadd.f32 %v4368, %v4369
    %v4371 = vsel %vm4363, %v4358, 0.0
    %v4372 = vrot.slane %v4371, 4
    %v4373 = vadd.f32 %v4371, %v4372
    %v4374 = vrot.slane %v4373, 2
    %v4375 = vadd.f32 %v4373, %v4374
    %v4376 = vrot.slane %v4375, 1
    %v4377 = vadd.f32 %v4375, %v4376
    %v4378 = vsel %vm4363, %v4359, 0.0
    %v4379 = vrot.slane %v4378, 4
    %v4380 = vadd.f32 %v4378, %v4379
    %v4381 = vrot.slane %v4380, 2
    %v4382 = vadd.f32 %v4380, %v4381
    %v4383 = vrot.slane %v4382, 1
    %v4384 = vadd.f32 %v4382, %v4383
    %v4385 = vsel %vm4363, %v4360, 0.0
    %v4386 = vrot.slane %v4385, 4
    %v4387 = vadd.f32 %v4385, %v4386
    %v4388 = vrot.slane %v4387, 2
    %v4389 = vadd.f32 %v4387, %v4388
    %v4390 = vrot.slane %v4389, 1
    %v4391 = vadd.f32 %v4389, %v4390
    %v4392 = vsel %vm4363, %v4361, 0.0
    %v4393 = vrot.slane %v4392, 4
    %v4394 = vadd.f32 %v4392, %v4393
    %v4395 = vrot.slane %v4394, 2
    %v4396 = vadd.f32 %v4394, %v4395
    %v4397 = vrot.slane %v4396, 1
    %v4398 = vadd.f32 %v4396, %v4397
    %v4399 = vsel %vm4363, %v4362, 0.0
    %v4400 = vrot.slane %v4399, 4
    %v4401 = vadd.f32 %v4399, %v4400
    %v4402 = vrot.slane %v4401, 2
    %v4403 = vadd.f32 %v4401, %v4402
    %v4404 = vrot.slane %v4403, 1
    %v4405 = vadd.f32 %v4403, %v4404
    %v4406 = vmul.f32 %v4370, 0.5
    %v4407 = vmul.f32 %v4377, 0.5
    %v4408 = vmul.f32 %v4384, 0.5
    %v4409 = vmul.f32 %v4391, 0.5
    %v4410 = vmul.f32 %v4398, 0.5
    %v4411 = vmul.f32 %v4405, 0.5
    %v4412 = vmul.f32 %v4357, %v4357
    %v4413 = vmul.f32 %v4358, %v4358
    %v4414 = vmul.f32 %v4359, %v4359
    %v4415 = vmul.f32 %v4360, %v4360
    %v4416 = vmul.f32 %v4361, %v4361
    %v4417 = vmul.f32 %v4362, %v4362
    %v4418 = vsel %vm4363, %v4412, 0.0
    %v4419 = vrot.slane %v4418, 4
    %v4420 = vadd.f32 %v4418, %v4419
    %v4421 = vrot.slane %v4420, 2
    %v4422 = vadd.f32 %v4420, %v4421
    %v4423 = vrot.slane %v4422, 1
    %v4424 = vadd.f32 %v4422, %v4423
    %v4425 = vsel %vm4363, %v4413, 0.0
    %v4426 = vrot.slane %v4425, 4
    %v4427 = vadd.f32 %v4425, %v4426
    %v4428 = vrot.slane %v4427, 2
    %v4429 = vadd.f32 %v4427, %v4428
    %v4430 = vrot.slane %v4429, 1
    %v4431 = vadd.f32 %v4429, %v4430
    %v4432 = vsel %vm4363, %v4414, 0.0
    %v4433 = vrot.slane %v4432, 4
    %v4434 = vadd.f32 %v4432, %v4433
    %v4435 = vrot.slane %v4434, 2
    %v4436 = vadd.f32 %v4434, %v4435
    %v4437 = vrot.slane %v4436, 1
    %v4438 = vadd.f32 %v4436, %v4437
    %v4439 = vsel %vm4363, %v4415, 0.0
    %v4440 = vrot.slane %v4439, 4
    %v4441 = vadd.f32 %v4439, %v4440
    %v4442 = vrot.slane %v4441, 2
    %v4443 = vadd.f32 %v4441, %v4442
    %v4444 = vrot.slane %v4443, 1
    %v4445 = vadd.f32 %v4443, %v4444
    %v4446 = vsel %vm4363, %v4416, 0.0
    %v4447 = vrot.slane %v4446, 4
    %v4448 = vadd.f32 %v4446, %v4447
    %v4449 = vrot.slane %v4448, 2
    %v4450 = vadd.f32 %v4448, %v4449
    %v4451 = vrot.slane %v4450, 1
    %v4452 = vadd.f32 %v4450, %v4451
    %v4453 = vsel %vm4363, %v4417, 0.0
    %v4454 = vrot.slane %v4453, 4
    %v4455 = vadd.f32 %v4453, %v4454
    %v4456 = vrot.slane %v4455, 2
    %v4457 = vadd.f32 %v4455, %v4456
    %v4458 = vrot.slane %v4457, 1
    %v4459 = vadd.f32 %v4457, %v4458
    %v4460 = vmul.f32 %v4424, 0.5
    %v4461 = vmul.f32 %v4431, 0.5
    %v4462 = vmul.f32 %v4438, 0.5
    %v4463 = vmul.f32 %v4445, 0.5
    %v4464 = vmul.f32 %v4452, 0.5
    %v4465 = vmul.f32 %v4459, 0.5
    %v4466 = vmul.f32 %v4406, %v4406
    %v4467 = vmul.f32 %v4407, %v4407
    %v4468 = vmul.f32 %v4408, %v4408
    %v4469 = vmul.f32 %v4409, %v4409
    %v4470 = vmul.f32 %v4410, %v4410
    %v4471 = vmul.f32 %v4411, %v4411
    %v4472 = vsub.f32 %v4460, %v4466
    %v4473 = vsub.f32 %v4461, %v4467
    %v4474 = vsub.f32 %v4462, %v4468
    %v4475 = vsub.f32 %v4463, %v4469
    %v4476 = vsub.f32 %v4464, %v4470
    %v4477 = vsub.f32 %v4465, %v4471
    %v4478 = vmax.f32 %v4472, 0.0
    %v4479 = vmax.f32 %v4473, 0.0
    %v4480 = vmax.f32 %v4474, 0.0
    %v4481 = vmax.f32 %v4475, 0.0
    %v4482 = vmax.f32 %v4476, 0.0
    %v4483 = vmax.f32 %v4477, 0.0
    %v4484 = vadd.f32 %v4478, 1e-05
    %v4485 = vadd.f32 %v4479, 1e-05
    %v4486 = vadd.f32 %v4480, 1e-05
    %v4487 = vadd.f32 %v4481, 1e-05
    %v4488 = vadd.f32 %v4482, 1e-05
    %v4489 = vadd.f32 %v4483, 1e-05
    %v4490 = vrsqrt.pop %v4484
    %v4491 = vrsqrt.pop %v4485
    %v4492 = vrsqrt.pop %v4486
    %v4493 = vrsqrt.pop %v4487
    %v4494 = vrsqrt.pop %v4488
    %v4495 = vrsqrt.pop %v4489
    %v4497 = vlaneseq
    %v4498 = vshrl.u32 %v4497, 7
    %v4499 = vsub.s32 0, %v4498
    %v4500 = vrot.slane %v4343, %v4499
    %v4501 = vlaneseq
    %v4502 = vshrl.u32 %v4501, 7
    %v4503 = vsub.s32 1, %v4502
    %v4504 = vrot.slane %v4343, %v4503
    %v4505 = vlaneseq
    %v4506 = vshrl.u32 %v4505, 7
    %v4507 = vsub.s32 2, %v4506
    %v4508 = vrot.slane %v4343, %v4507
    %v4509 = vlaneseq
    %v4510 = vshrl.u32 %v4509, 7
    %v4511 = vsub.s32 3, %v4510
    %v4512 = vrot.slane %v4343, %v4511
    %v4513 = vlaneseq
    %v4514 = vshrl.u32 %v4513, 7
    %v4515 = vsub.s32 4, %v4514
    %v4516 = vrot.slane %v4343, %v4515
    %v4517 = vlaneseq
    %v4518 = vshrl.u32 %v4517, 7
    %v4519 = vsub.s32 5, %v4518
    %v4520 = vrot.slane %v4343, %v4519
    %v4527 = vmul.f32 %v4490, %v4500
    %v4528 = vmul.f32 %v4491, %v4504
    %v4529 = vmul.f32 %v4492, %v4508
    %v4530 = vmul.f32 %v4493, %v4512
    %v4531 = vmul.f32 %v4494, %v4516
    %v4532 = vmul.f32 %v4495, %v4520
    %v4533 = vsub.f32 %v4357, %v4406
    %v4534 = vsub.f32 %v4358, %v4407
    %v4535 = vsub.f32 %v4359, %v4408
    %v4536 = vsub.f32 %v4360, %v4409
    %v4537 = vsub.f32 %v4361, %v4410
    %v4538 = vsub.f32 %v4362, %v4411
    %v4539 = vlaneseq
    %v4540 = vshrl.u32 %v4539, 7
    %v4541 = vsub.s32 0, %v4540
    %v4542 = vrot.slane %v4527, %v4541
    %v4543 = vlaneseq
    %v4544 = vshrl.u32 %v4543, 7
    %v4545 = vsub.s32 0, %v4544
    %v4546 = vrot.slane %v4528, %v4545
    %v4547 = vlaneseq
    %v4548 = vshrl.u32 %v4547, 7
    %v4549 = vsub.s32 0, %v4548
    %v4550 = vrot.slane %v4529, %v4549
    %v4551 = vlaneseq
    %v4552 = vshrl.u32 %v4551, 7
    %v4553 = vsub.s32 0, %v4552
    %v4554 = vrot.slane %v4530, %v4553
    %v4555 = vlaneseq
    %v4556 = vshrl.u32 %v4555, 7
    %v4557 = vsub.s32 0, %v4556
    %v4558 = vrot.slane %v4531, %v4557
    %v4559 = vlaneseq
    %v4560 = vshrl.u32 %v4559, 7
    %v4561 = vsub.s32 0, %v4560
    %v4562 = vrot.slane %v4532, %v4561
    %v4563 = vmul.f32 %v4533, %v4542
    %v4564 = vmul.f32 %v4534, %v4546
    %v4565 = vmul.f32 %v4535, %v4550
    %v4566 = vmul.f32 %v4536, %v4554
    %v4567 = vmul.f32 %v4537, %v4558
    %v4568 = vmul.f32 %v4538, %v4562
    %v4570 = vlaneseq
    %v4571 = vshrl.u32 %v4570, 7
    %v4572 = vsub.s32 0, %v4571
    %v4573 = vrot.slane %v4344, %v4572
    %v4574 = vlaneseq
    %v4575 = vshrl.u32 %v4574, 7
    %v4576 = vsub.s32 1, %v4575
    %v4577 = vrot.slane %v4344, %v4576
    %v4578 = vlaneseq
    %v4579 = vshrl.u32 %v4578, 7
    %v4580 = vsub.s32 2, %v4579
    %v4581 = vrot.slane %v4344, %v4580
    %v4582 = vlaneseq
    %v4583 = vshrl.u32 %v4582, 7
    %v4584 = vsub.s32 3, %v4583
    %v4585 = vrot.slane %v4344, %v4584
    %v4586 = vlaneseq
    %v4587 = vshrl.u32 %v4586, 7
    %v4588 = vsub.s32 4, %v4587
    %v4589 = vrot.slane %v4344, %v4588
    %v4590 = vlaneseq
    %v4591 = vshrl.u32 %v4590, 7
    %v4592 = vsub.s32 5, %v4591
    %v4593 = vrot.slane %v4344, %v4592
    %v4600 = vadd.f32 %v4563, %v4573
    %v4601 = vadd.f32 %v4564, %v4577
    %v4602 = vadd.f32 %v4565, %v4581
    %v4603 = vadd.f32 %v4566, %v4585
    %v4604 = vadd.f32 %v4567, %v4589
    %v4605 = vadd.f32 %v4568, %v4593
    %v4612 = vcombine.low %v4600, %v4601
    %v4613 = vcombine.low %v4602, %v4603
    %v4615 = vunpack.c.l.s4 1983009808
    %v4616 = vunpack.c.0.s8 %v4615
    %v4617 = vlaneseq
    %v4618 = vshrl.u32 %v4617, 7
    %v4619 = vsub.s32 %v4616, %v4618
    %v4620 = vrot.slane %v4612, %v4619
    %v4622 = vunpack.c.l.s4 1983009808
    %v4623 = vunpack.c.0.s8 %v4622
    %v4624 = vlaneseq
    %v4625 = vshrl.u32 %v4624, 7
    %v4626 = vsub.s32 %v4623, %v4625
    %v4627 = vrot.slane %v4613, %v4626
    %v4628 = vcombine.low %v4620, %v4627
    %v4629 = vcombine.low %v4604, %v4605
    %v4631 = vunpack.c.l.s4 1983009808
    %v4632 = vunpack.c.0.s8 %v4631
    %v4633 = vlaneseq
    %v4634 = vshrl.u32 %v4633, 7
    %v4635 = vsub.s32 %v4632, %v4634
    %v4636 = vrot.slane %v4629, %v4635
    %4639 = vst [vmem:[#allocation5] sm:$0xff] %v4628
    %4640 = vst [vmem:[#allocation5 + $0x8] sm:$0xf] %v4636
    // Predicated region
    $region82: #{cnn_arc_forward.1} parent=1 // pred_check
      _
    $region83: #{cnn_arc_forward.1} parent=1 // pred_check_branch
      %4642 = sbr.rel (0) target = $region85
    $region84: #{cnn_arc_forward.1} parent=1 // pred_region
      %s4644 = ssub.s32 192, 192
      %4645 = vsyncadd [#allocation4], %s4644
      %s4647 = sshll.u32 [#allocation5], 4
      %s4648 = int_to_ptr.vmem [resolvable:$true] %s4647
      %4650 = dma.vmem_to_hbm [thread:$0]  %s4648, 192, %s19, [#allocation4]
    $region85: #{cnn_arc_forward.1} parent=1 // pred_fallthru
      _
    // Predicated region
    $region86: #{cnn_arc_forward.1} parent=1 // pred_check
      _
    $region87: #{cnn_arc_forward.1} parent=1 // pred_check_branch
      %4652 = sbr.rel (0) target = $region89
    $region88: #{cnn_arc_forward.1} parent=1 // pred_region
      %4653 = dma.done [#allocation4], 192
    $region89: #{cnn_arc_forward.1} parent=1 // pred_fallthru
      _
    %4654 = vsyncpa [#allocation3], 1
    %4655 = vsyncpa [#allocation4], 1

</llo_original>
